<compile_context>
chip_gen: v7x
topology: tpu7x:2x2x1
jax: 0.10.0
libtpu: 0.0.40
codegen_flags: <defaults>
</compile_context>

<pallas_src>
import functools
import math

import jax
import jax.numpy as jnp
from jax import lax
from jax.experimental import pallas as pl
from jax.experimental.pallas import tpu as pltpu


def _round_up(v, m):
    return (v + m - 1) // m * m


# --------------------------------------------------------------------------- #
# pass 1: [classes | Q] + critical-instance query q_max (carried across tiles)
# --------------------------------------------------------------------------- #
def _instance_kernel(x_ref, wiq_ref, biq_ref,
                     classes_ref, q_ref, qmax_ref, runmax_ref,
                     *, n_valid, tile_n, cp):
    t = pl.program_id(0)

    @pl.when(t == 0)
    def _():
        runmax_ref[...] = jnp.full_like(runmax_ref, -jnp.inf)
        qmax_ref[...] = jnp.zeros_like(qmax_ref)

    feats = x_ref[...]                                               # (TN, KP) bf16
    # One fused 256-wide matmul: [classes | Q] = feats @ [Wi^T | Wq^T] + [bi | bq]
    cq = jnp.dot(feats, wiq_ref[...],
                 preferred_element_type=jnp.float32) + biq_ref[...]  # (TN, CP+QDP) f32
    classes = cq[:, :cp]                                             # (TN, CP)
    q = cq[:, cp:]                                                   # (TN, QDP)
    classes_ref[...] = classes
    q_ref[...] = q.astype(q_ref.dtype)

    # --- critical-instance tracking (first-occurrence argmax semantics) ---
    row = lax.broadcasted_iota(jnp.int32, classes.shape, 0)          # (TN, CP)
    valid = (t * tile_n + row) < n_valid
    cm = jnp.where(valid, classes, -jnp.inf)
    tmax = jnp.max(cm, axis=0, keepdims=True)                        # (1, CP)
    tidx = jnp.min(jnp.where(cm == tmax, row, tile_n),
                   axis=0, keepdims=True)                            # (1, CP)
    onehot = (row == tidx).astype(jnp.bfloat16)                      # (TN, CP)
    tqmax = lax.dot_general(onehot, q.astype(jnp.bfloat16),
                            (((0,), (0,)), ((), ())),
                            preferred_element_type=jnp.float32)      # (CP, QDP)

    # Strictly-greater update keeps the earliest tile on exact ties (== argmax).
    upd = (tmax > runmax_ref[...]).astype(jnp.float32)               # (1, CP)
    runmax_ref[...] = jnp.maximum(runmax_ref[...], tmax)
    # Lane->sublane "transpose" of the per-class mask without an XLU transpose:
    eye = (lax.broadcasted_iota(jnp.int32, (cp, cp), 0) ==
           lax.broadcasted_iota(jnp.int32, (cp, cp), 1))
    updT = jnp.sum(jnp.where(eye, upd, 0.0), axis=1, keepdims=True)  # (CP, 1)
    qmax_ref[...] = qmax_ref[...] * (1.0 - updT) + tqmax * updT


# --------------------------------------------------------------------------- #
# pass 2: online-softmax attention -> bag B, prediction, softmax stats (m, l)
# --------------------------------------------------------------------------- #
def _attention_kernel(q_ref, x_ref, qmax_ref, wfcc_ref, bfcc_ref,
                      pred_ref, b_ref, m_ref, l_ref,
                      *, n_valid, tile_n, c, scale):
    t = pl.program_id(0)
    nt = pl.num_programs(0)

    @pl.when(t == 0)
    def _():
        m_ref[...] = jnp.full_like(m_ref, -jnp.inf)
        l_ref[...] = jnp.zeros_like(l_ref)
        b_ref[...] = jnp.zeros_like(b_ref)

    q = q_ref[...]                                                   # (TN, QDP) bf16
    qmax = qmax_ref[...].astype(jnp.bfloat16)                        # (CP, QDP)
    # class-major logits so the softmax stats live as (CP, 1) (no transposes)
    logits = lax.dot_general(qmax, q, (((1,), (1,)), ((), ())),
                             preferred_element_type=jnp.float32) * scale   # (CP, TN)
    col = lax.broadcasted_iota(jnp.int32, logits.shape, 1)
    logits = jnp.where(t * tile_n + col < n_valid, logits, -jnp.inf)

    m_old = m_ref[...]                                               # (CP, 1)
    m_new = jnp.maximum(m_old, jnp.max(logits, axis=1, keepdims=True))
    alpha = jnp.exp(m_old - m_new)                                   # (CP, 1)
    p = jnp.exp(logits - m_new)                                      # (CP, TN)
    l_ref[...] = alpha * l_ref[...] + jnp.sum(p, axis=1, keepdims=True)
    b_ref[...] = alpha * b_ref[...] + jnp.dot(p.astype(jnp.bfloat16), x_ref[...],
                                              preferred_element_type=jnp.float32)
    m_ref[...] = m_new

    @pl.when(t == nt - 1)
    def _():
        inv = 1.0 / l_ref[...]                                       # exact; (CP, 1)
        bag = b_ref[...] * inv                                       # (CP, KP)
        b_ref[...] = bag
        # fcc Conv1d(C, C, kernel=K): pred += B[c_in, :] @ Wfcc[c_in]  (static loop)
        pred = bfcc_ref[...]                                         # (1, CP)
        for cin in range(c):
            pred = pred + jnp.dot(bag[cin:cin + 1, :].astype(jnp.bfloat16),
                                  wfcc_ref[cin],
                                  preferred_element_type=jnp.float32)
        pred_ref[...] = pred


# --------------------------------------------------------------------------- #
# pass 3: normalized attention map A (independent per tile -> "parallel")
# --------------------------------------------------------------------------- #
def _normalize_kernel(q_ref, qmax_ref, m_ref, inv_ref, a_ref, *, scale):
    q = q_ref[...]                                                   # (TN, QDP) bf16
    qmax = qmax_ref[...].astype(jnp.bfloat16)                        # (CP, QDP)
    logits = lax.dot_general(q, qmax, (((1,), (1,)), ((), ())),
                             preferred_element_type=jnp.float32) * scale   # (TN, CP)
    a_ref[...] = jnp.exp(logits - m_ref[...]) * inv_ref[...]


# --------------------------------------------------------------------------- #
# wrappers
# --------------------------------------------------------------------------- #
def prepare_dsmil_params(Wi, bi, Wq, bq, Wfcc, bfcc):
    """One-time layout prep (hoisted out of the per-call path).

    PyTorch layouts: Wi (C,K), bi (C,), Wq (QD,K), bq (QD,), Wfcc (C,C,K), bfcc (C,).
    Returns lane-dense bf16 weights / f32 biases padded to 128-lane multiples.
    """
    C, K = Wi.shape
    QD = Wq.shape[0]
    KP, CP, QDP = _round_up(K, 128), _round_up(C, 128), _round_up(QD, 128)
    f32, bf16 = jnp.float32, jnp.bfloat16

    wiq = jnp.zeros((KP, CP + QDP), f32)
    wiq = wiq.at[:K, :C].set(Wi.T).at[:K, CP:CP + QD].set(Wq.T)
    biq = jnp.zeros((1, CP + QDP), f32).at[0, :C].set(bi).at[0, CP:CP + QD].set(bq)
    # wfcc[c_in, k, c_out] = Wfcc[c_out, c_in, k]
    wfcc = jnp.zeros((C, KP, CP), f32).at[:, :K, :C].set(jnp.transpose(Wfcc, (1, 2, 0)))
    bfcc_p = jnp.zeros((1, CP), f32).at[0, :C].set(bfcc)
    return wiq.astype(bf16), biq, wfcc.astype(bf16), bfcc_p


@functools.partial(jax.jit, static_argnames=("qd", "tile_n"))
def dsmil_forward(x, wiq, biq, wfcc, bfcc, *, qd, tile_n=512):
    """x: (N, K) bag of instances -> (classes, prediction_bag, A, B)."""
    N, K = x.shape
    C = wfcc.shape[0]
    KP = wiq.shape[0]
    CP = _round_up(C, 128)
    QDP = wiq.shape[1] - CP
    assert wfcc.shape[1:] == (KP, CP)
    f32, bf16 = jnp.float32, jnp.bfloat16
    scale = 1.0 / math.sqrt(qd)

    tn = max(16, min(_round_up(tile_n, 16), _round_up(N, 16)))
    n_pad = _round_up(N, tn)
    nt = n_pad // tn

    # Skip the pad copy entirely when the bag is already aligned (typical K=512/1024).
    if (N, K) == (n_pad, KP):
        xp = x.astype(bf16)
    else:
        xp = jnp.zeros((n_pad, KP), bf16).at[:N, :K].set(x.astype(bf16))

    # Scoped-VMEM budget from the actual tile sizes (double-buffered N tiles +
    # resident weights/accumulators), with headroom; clamped below v7x's 64 MiB.
    est = (2 * (tn * KP * 2 + tn * CP * 4 + tn * QDP * 2)
           + KP * (CP + QDP) * 2 + C * KP * CP * 2
           + CP * KP * 4 + CP * QDP * 4 + (4 << 20))
    vmem_limit = int(min(max(2 * est, 32 << 20), 56 << 20))
    cp_seq = pltpu.CompilerParams(dimension_semantics=("arbitrary",),
                                  vmem_limit_bytes=vmem_limit)
    cp_par = pltpu.CompilerParams(dimension_semantics=("parallel",),
                                  vmem_limit_bytes=vmem_limit)

    # ---- pass 1: [classes | Q] + q_max ----
    classes_p, q_p, qmax = pl.pallas_call(
        functools.partial(_instance_kernel, n_valid=N, tile_n=tn, cp=CP),
        grid=(nt,),
        in_specs=[pl.BlockSpec((tn, KP), lambda t: (t, 0)),
                  pl.BlockSpec((KP, CP + QDP), lambda t: (0, 0)),
                  pl.BlockSpec((1, CP + QDP), lambda t: (0, 0))],
        out_specs=(pl.BlockSpec((tn, CP), lambda t: (t, 0)),
                   pl.BlockSpec((tn, QDP), lambda t: (t, 0)),
                   pl.BlockSpec((CP, QDP), lambda t: (0, 0))),
        out_shape=(jax.ShapeDtypeStruct((n_pad, CP), f32),
                   jax.ShapeDtypeStruct((n_pad, QDP), bf16),
                   jax.ShapeDtypeStruct((CP, QDP), f32)),
        scratch_shapes=[pltpu.VMEM((1, CP), f32)],
        compiler_params=cp_seq,
    )(xp, wiq, biq)

    # ---- pass 2: online-softmax attention -> B, prediction, (m, l) ----
    pred_p, b_p, m_col, l_col = pl.pallas_call(
        functools.partial(_attention_kernel, n_valid=N, tile_n=tn, c=C, scale=scale),
        grid=(nt,),
        in_specs=[pl.BlockSpec((tn, QDP), lambda t: (t, 0)),
                  pl.BlockSpec((tn, KP), lambda t: (t, 0)),
                  pl.BlockSpec((CP, QDP), lambda t: (0, 0)),
                  pl.BlockSpec((C, KP, CP), lambda t: (0, 0, 0)),
                  pl.BlockSpec((1, CP), lambda t: (0, 0))],
        out_specs=(pl.BlockSpec((1, CP), lambda t: (0, 0)),
                   pl.BlockSpec((CP, KP), lambda t: (0, 0)),
                   pl.BlockSpec((CP, 1), lambda t: (0, 0)),
                   pl.BlockSpec((CP, 1), lambda t: (0, 0))),
        out_shape=(jax.ShapeDtypeStruct((1, CP), f32),
                   jax.ShapeDtypeStruct((CP, KP), f32),
                   jax.ShapeDtypeStruct((CP, 1), f32),
                   jax.ShapeDtypeStruct((CP, 1), f32)),
        compiler_params=cp_seq,
    )(q_p, xp, qmax, wfcc, bfcc)

    # ---- pass 3: normalized attention map A ----
    m_row = jnp.transpose(m_col)             # (1, CP); tiny XLA transpose, not in-kernel
    inv_row = 1.0 / jnp.transpose(l_col)     # exact reciprocal: A columns sum to 1
    a_p = pl.pallas_call(
        functools.partial(_normalize_kernel, scale=scale),
        grid=(nt,),
        in_specs=[pl.BlockSpec((tn, QDP), lambda t: (t, 0)),
                  pl.BlockSpec((CP, QDP), lambda t: (0, 0)),
                  pl.BlockSpec((1, CP), lambda t: (0, 0)),
                  pl.BlockSpec((1, CP), lambda t: (0, 0))],
        out_specs=pl.BlockSpec((tn, CP), lambda t: (t, 0)),
        out_shape=jax.ShapeDtypeStruct((n_pad, CP), f32),
        compiler_params=cp_par,
    )(q_p, qmax, m_row, inv_row)

    # Slice off row / lane padding (pad class columns are never read above).
    return classes_p[:N, :C], pred_p[:, :C], a_p[:N, :C], b_p[:C, :K]


if __name__ == "__main__":
    # Small shapes; tile_n=16 forces a 3-step grid (incl. a partially-valid last tile)
    # so the multi-tile argmax carry, online softmax and masking paths are exercised.
    N, K, C, QD = 40, 32, 4, 24
    TN = 16

    key = jax.random.PRNGKey(0)
    kx, k1, k2, k3 = jax.random.split(key, 4)
    x = jax.random.normal(kx, (N, K), jnp.float32)

    # Deterministic kaiming_normal_ style init (gain sqrt(2), fan_in); biases = 0.
    Wi = jax.random.normal(k1, (C, K), jnp.float32) * math.sqrt(2.0 / K)
    bi = jnp.zeros((C,), jnp.float32)
    Wq = jax.random.normal(k2, (QD, K), jnp.float32) * math.sqrt(2.0 / K)
    bq = jnp.zeros((QD,), jnp.float32)
    Wfcc = jax.random.normal(k3, (C, C, K), jnp.float32) * math.sqrt(2.0 / (C * K))
    bfcc = jnp.zeros((C,), jnp.float32)

    wiq, biq, wfcc_p, bfcc_p = prepare_dsmil_params(Wi, bi, Wq, bq, Wfcc, bfcc)
    classes, pred, A, B = dsmil_forward(x, wiq, biq, wfcc_p, bfcc_p, qd=QD, tile_n=TN)
    jax.block_until_ready((classes, pred, A, B))

    # ---- pure-JAX reference ----
    classes_r = x @ Wi.T + bi
    Q_r = x @ Wq.T + bq
    # Critical-instance index taken from the kernel's own class scores so that a
    # bf16-pass rounding flip of a near-tie argmax cannot fail the check; the class
    # scores themselves are verified independently against the f32 reference below.
    idx_r = jnp.argmax(classes, axis=0)
    q_max_r = Q_r[idx_r]
    A_r = jax.nn.softmax((Q_r @ q_max_r.T) / math.sqrt(QD), axis=0)
    B_r = A_r.T @ x
    pred_r = (jnp.sum(Wfcc * B_r[None, :, :], axis=(1, 2)) + bfcc)[None, :]

    assert classes.shape == (N, C) and A.shape == (N, C)
    assert pred.shape == (1, C) and B.shape == (C, K)
    # Tolerances account for bf16 operand storage / bf16-pass MXU matmuls.
    assert jnp.allclose(classes, classes_r, atol=2e-2, rtol=2e-2)
    assert jnp.allclose(A, A_r, atol=2e-2, rtol=2e-2)
    assert jnp.allclose(B, B_r, atol=3e-2, rtol=3e-2)
    assert jnp.allclose(pred, pred_r, atol=5e-2, rtol=5e-2)

    print("KERNEL_OK")
</pallas_src>

<mosaic_0001>
module attributes {stable_mosaic.version = 11 : i64} {
  func.func @_instance_kernel(%arg0: i32, %arg1: memref<16x128xbf16, #tpu.memory_space<vmem>>, %arg2: memref<128x256xbf16, #tpu.memory_space<vmem>>, %arg3: memref<1x256xf32, #tpu.memory_space<vmem>>, %arg4: memref<16x128xf32, #tpu.memory_space<vmem>>, %arg5: memref<16x128xbf16, #tpu.memory_space<vmem>>, %arg6: memref<128x128xf32, #tpu.memory_space<vmem>>, %arg7: memref<1x128xf32, #tpu.memory_space<vmem>>) attributes {dimension_semantics = [#tpu.dimension_semantics<arbitrary>], iteration_bounds = array<i64: 3>, scalar_prefetch = 0 : i64, scratch_operands = 1 : i64, tpu.core_type = #tpu.core_type<tc>, window_params = [{transform_indices = @transform_0, window_bounds = array<i64: 16, 128>}, {pipeline_mode = #tpu.pipeline_mode<synchronous>, transform_indices = @transform_1, window_bounds = array<i64: 128, 256>}, {pipeline_mode = #tpu.pipeline_mode<synchronous>, transform_indices = @transform_2, window_bounds = array<i64: 1, 256>}, {transform_indices = @transform_3, window_bounds = array<i64: 16, 128>}, {transform_indices = @transform_4, window_bounds = array<i64: 16, 128>}, {pipeline_mode = #tpu.pipeline_mode<synchronous>, transform_indices = @transform_5, window_bounds = array<i64: 128, 128>}]} {
    %c0_i32 = arith.constant 0 : i32
    %0 = arith.cmpi eq, %arg0, %c0_i32 : i32
    %1 = arith.extui %0 : i1 to i32
    %c0_i32_0 = arith.constant 0 : i32
    %2 = arith.cmpi ne, %1, %c0_i32_0 : i32
    scf.if %2 {
      %cst_28 = arith.constant 0xFF800000 : f32
      %62 = vector.broadcast %cst_28 : f32 to vector<1x128xf32>
      %c0_29 = arith.constant 0 : index
      %c0_30 = arith.constant 0 : index
      %63 = vector.load %arg7[%c0_29, %c0_30] : memref<1x128xf32, #tpu.memory_space<vmem>>, vector<1x128xf32>
      tpu.vector_store %arg7[%c0_29, %c0_30], %62 {strides = array<i32>} : memref<1x128xf32, #tpu.memory_space<vmem>>, vector<1x128xf32>,
      %cst_31 = arith.constant 0.000000e+00 : f32
      %64 = vector.broadcast %cst_31 : f32 to vector<128x128xf32>
      %c0_32 = arith.constant 0 : index
      %c0_33 = arith.constant 0 : index
      %65 = vector.load %arg6[%c0_32, %c0_33] : memref<128x128xf32, #tpu.memory_space<vmem>>, vector<128x128xf32>
      tpu.vector_store %arg6[%c0_32, %c0_33], %64 {strides = array<i32>} : memref<128x128xf32, #tpu.memory_space<vmem>>, vector<128x128xf32>,
    } else {
    }
    %c0 = arith.constant 0 : index
    %c0_1 = arith.constant 0 : index
    %3 = vector.load %arg1[%c0, %c0_1] : memref<16x128xbf16, #tpu.memory_space<vmem>>, vector<16x128xbf16>
    %c0_2 = arith.constant 0 : index
    %c0_3 = arith.constant 0 : index
    %4 = vector.load %arg2[%c0_2, %c0_3] : memref<128x256xbf16, #tpu.memory_space<vmem>>, vector<128x256xbf16>
    %cst = arith.constant dense<0.000000e+00> : vector<16x256xf32>
    %5 = tpu.matmul %3, %4, %cst {dimension_numbers = #tpu.dot_dimension_numbers<[1], [0], [0], [1], [0, 0, 1, 1], [], []>} : vector<16x128xbf16>, vector<128x256xbf16>, vector<16x256xf32> -> vector<16x256xf32>
    %c0_4 = arith.constant 0 : index
    %c0_5 = arith.constant 0 : index
    %6 = vector.load %arg3[%c0_4, %c0_5] : memref<1x256xf32, #tpu.memory_space<vmem>>, vector<1x256xf32>
    %7 = vector.broadcast %6 : vector<1x256xf32> to vector<16x256xf32>
    %8 = arith.addf %5, %7 : vector<16x256xf32>
    %9 = vector.extract_strided_slice %8 {offsets = [0, 0], sizes = [16, 128], strides = [1, 1]} : vector<16x256xf32> to vector<16x128xf32>
    %10 = vector.extract_strided_slice %8 {offsets = [0, 128], sizes = [16, 128], strides = [1, 1]} : vector<16x256xf32> to vector<16x128xf32>
    %c0_6 = arith.constant 0 : index
    %c0_7 = arith.constant 0 : index
    %11 = vector.load %arg4[%c0_6, %c0_7] : memref<16x128xf32, #tpu.memory_space<vmem>>, vector<16x128xf32>
    tpu.vector_store %arg4[%c0_6, %c0_7], %9 {strides = array<i32>} : memref<16x128xf32, #tpu.memory_space<vmem>>, vector<16x128xf32>,
    %12 = arith.truncf %10 : vector<16x128xf32> to vector<16x128xbf16>
    %c0_8 = arith.constant 0 : index
    %c0_9 = arith.constant 0 : index
    %13 = vector.load %arg5[%c0_8, %c0_9] : memref<16x128xbf16, #tpu.memory_space<vmem>>, vector<16x128xbf16>
    tpu.vector_store %arg5[%c0_8, %c0_9], %12 {strides = array<i32>} : memref<16x128xbf16, #tpu.memory_space<vmem>>, vector<16x128xbf16>,
    %14 = tpu.iota {dimensions = array<i32: 0>} : vector<16x128xi32>
    %c16_i32 = arith.constant 16 : i32
    %15 = arith.muli %arg0, %c16_i32 : i32
    %16 = vector.broadcast %15 : i32 to vector<16x128xi32>
    %17 = arith.addi %16, %14 : vector<16x128xi32>
    %c40_i32 = arith.constant 40 : i32
    %18 = vector.broadcast %c40_i32 : i32 to vector<16x128xi32>
    %19 = arith.cmpi slt, %17, %18 : vector<16x128xi32>
    %cst_10 = arith.constant 0xFF800000 : f32
    %20 = vector.broadcast %cst_10 : f32 to vector<16x128xf32>
    %21 = arith.select %19, %9, %20 : vector<16x128xi1>, vector<16x128xf32>
    %cst_11 = arith.constant dense<0xFF800000> : vector<128xf32>
    %22 = vector.multi_reduction <maximumf>, %21, %cst_11 [0] : vector<16x128xf32> to vector<128xf32>
    %23 = vector.shape_cast %22 : vector<128xf32> to vector<1x128xf32>
    %24 = vector.broadcast %23 : vector<1x128xf32> to vector<16x128xf32>
    %25 = arith.cmpf oeq, %21, %24 : vector<16x128xf32>
    %c16_i32_12 = arith.constant 16 : i32
    %26 = vector.broadcast %c16_i32_12 : i32 to vector<16x128xi32>
    %27 = arith.select %25, %14, %26 : vector<16x128xi1>, vector<16x128xi32>
    %cst_13 = arith.constant dense<2147483647> : vector<128xi32>
    %28 = vector.multi_reduction <minsi>, %27, %cst_13 [0] : vector<16x128xi32> to vector<128xi32>
    %29 = vector.shape_cast %28 : vector<128xi32> to vector<1x128xi32>
    %30 = vector.broadcast %29 : vector<1x128xi32> to vector<16x128xi32>
    %31 = arith.cmpi eq, %14, %30 : vector<16x128xi32>
    %32 = arith.extui %31 : vector<16x128xi1> to vector<16x128xi32>
    %33 = arith.sitofp %32 : vector<16x128xi32> to vector<16x128xf32>
    %34 = arith.truncf %33 : vector<16x128xf32> to vector<16x128xbf16>
    %35 = arith.truncf %10 : vector<16x128xf32> to vector<16x128xbf16>
    %cst_14 = arith.constant dense<0.000000e+00> : vector<128x128xf32>
    %36 = tpu.matmul %34, %35, %cst_14 {dimension_numbers = #tpu.dot_dimension_numbers<[0], [0], [1], [1], [0, 1, 1, 1], [], []>} : vector<16x128xbf16>, vector<16x128xbf16>, vector<128x128xf32> -> vector<128x128xf32>
    %c0_15 = arith.constant 0 : index
    %c0_16 = arith.constant 0 : index
    %37 = vector.load %arg7[%c0_15, %c0_16] : memref<1x128xf32, #tpu.memory_space<vmem>>, vector<1x128xf32>
    %38 = arith.cmpf ogt, %23, %37 : vector<1x128xf32>
    %39 = arith.extui %38 : vector<1x128xi1> to vector<1x128xi32>
    %40 = arith.sitofp %39 : vector<1x128xi32> to vector<1x128xf32>
    %c0_17 = arith.constant 0 : index
    %c0_18 = arith.constant 0 : index
    %41 = vector.load %arg7[%c0_17, %c0_18] : memref<1x128xf32, #tpu.memory_space<vmem>>, vector<1x128xf32>
    %42 = arith.maximumf %41, %23 : vector<1x128xf32>
    %c0_19 = arith.constant 0 : index
    %c0_20 = arith.constant 0 : index
    %43 = vector.load %arg7[%c0_19, %c0_20] : memref<1x128xf32, #tpu.memory_space<vmem>>, vector<1x128xf32>
    tpu.vector_store %arg7[%c0_19, %c0_20], %42 {strides = array<i32>} : memref<1x128xf32, #tpu.memory_space<vmem>>, vector<1x128xf32>,
    %44 = tpu.iota {dimensions = array<i32: 0>} : vector<128x128xi32>
    %45 = tpu.iota {dimensions = array<i32: 1>} : vector<128x128xi32>
    %46 = arith.cmpi eq, %44, %45 : vector<128x128xi32>
    %cst_21 = arith.constant 0.000000e+00 : f32
    %47 = vector.shape_cast %40 : vector<1x128xf32> to vector<1x128xf32>
    %48 = vector.broadcast %47 : vector<1x128xf32> to vector<128x128xf32>
    %49 = vector.broadcast %cst_21 : f32 to vector<128x128xf32>
    %50 = arith.select %46, %48, %49 : vector<128x128xi1>, vector<128x128xf32>
    %cst_22 = arith.constant dense<0.000000e+00> : vector<128xf32>
    %51 = vector.multi_reduction <add>, %50, %cst_22 [1] : vector<128x128xf32> to vector<128xf32>
    %52 = vector.shape_cast %51 : vector<128xf32> to vector<128x1xf32>
    %c0_23 = arith.constant 0 : index
    %c0_24 = arith.constant 0 : index
    %53 = vector.load %arg6[%c0_23, %c0_24] : memref<128x128xf32, #tpu.memory_space<vmem>>, vector<128x128xf32>
    %cst_25 = arith.constant 1.000000e+00 : f32
    %54 = vector.broadcast %cst_25 : f32 to vector<128x1xf32>
    %55 = arith.subf %54, %52 : vector<128x1xf32>
    %56 = vector.broadcast %55 : vector<128x1xf32> to vector<128x128xf32>
    %57 = arith.mulf %53, %56 : vector<128x128xf32>
    %58 = vector.broadcast %52 : vector<128x1xf32> to vector<128x128xf32>
    %59 = arith.mulf %36, %58 : vector<128x128xf32>
    %60 = arith.addf %57, %59 : vector<128x128xf32>
    %c0_26 = arith.constant 0 : index
    %c0_27 = arith.constant 0 : index
    %61 = vector.load %arg6[%c0_26, %c0_27] : memref<128x128xf32, #tpu.memory_space<vmem>>, vector<128x128xf32>
    tpu.vector_store %arg6[%c0_26, %c0_27], %60 {strides = array<i32>} : memref<128x128xf32, #tpu.memory_space<vmem>>, vector<128x128xf32>,
    return
  }
  func.func @transform_0(%arg0: i32) -> (i32, i32) {
    %c0_i32 = arith.constant 0 : i32
    %c0_i32_0 = arith.constant 0 : i32
    return %arg0, %c0_i32 : i32, i32
  }
  func.func @transform_1(%arg0: i32) -> (i32, i32) {
    %c0_i32 = arith.constant 0 : i32
    %c0_i32_0 = arith.constant 0 : i32
    %c0_i32_1 = arith.constant 0 : i32
    return %c0_i32, %c0_i32_0 : i32, i32
  }
  func.func @transform_2(%arg0: i32) -> (i32, i32) {
    %c0_i32 = arith.constant 0 : i32
    %c0_i32_0 = arith.constant 0 : i32
    %c0_i32_1 = arith.constant 0 : i32
    return %c0_i32, %c0_i32_0 : i32, i32
  }
  func.func @transform_3(%arg0: i32) -> (i32, i32) {
    %c0_i32 = arith.constant 0 : i32
    %c0_i32_0 = arith.constant 0 : i32
    return %arg0, %c0_i32 : i32, i32
  }
  func.func @transform_4(%arg0: i32) -> (i32, i32) {
    %c0_i32 = arith.constant 0 : i32
    %c0_i32_0 = arith.constant 0 : i32
    return %arg0, %c0_i32 : i32, i32
  }
  func.func @transform_5(%arg0: i32) -> (i32, i32) {
    %c0_i32 = arith.constant 0 : i32
    %c0_i32_0 = arith.constant 0 : i32
    %c0_i32_1 = arith.constant 0 : i32
    return %c0_i32, %c0_i32_0 : i32, i32
  }
}

module attributes {stable_mosaic.version = 11 : i64} {
  func.func @_attention_kernel(%arg0: i32, %arg1: memref<16x128xbf16, #tpu.memory_space<vmem>>, %arg2: memref<16x128xbf16, #tpu.memory_space<vmem>>, %arg3: memref<128x128xf32, #tpu.memory_space<vmem>>, %arg4: memref<4x128x128xbf16, #tpu.memory_space<vmem>>, %arg5: memref<1x128xf32, #tpu.memory_space<vmem>>, %arg6: memref<1x128xf32, #tpu.memory_space<vmem>>, %arg7: memref<128x128xf32, #tpu.memory_space<vmem>>, %arg8: memref<128x1xf32, #tpu.memory_space<vmem>>, %arg9: memref<128x1xf32, #tpu.memory_space<vmem>>) attributes {dimension_semantics = [#tpu.dimension_semantics<arbitrary>], iteration_bounds = array<i64: 3>, scalar_prefetch = 0 : i64, scratch_operands = 0 : i64, tpu.core_type = #tpu.core_type<tc>, window_params = [{transform_indices = @transform_0, window_bounds = array<i64: 16, 128>}, {transform_indices = @transform_1, window_bounds = array<i64: 16, 128>}, {pipeline_mode = #tpu.pipeline_mode<synchronous>, transform_indices = @transform_2, window_bounds = array<i64: 128, 128>}, {pipeline_mode = #tpu.pipeline_mode<synchronous>, transform_indices = @transform_3, window_bounds = array<i64: 4, 128, 128>}, {pipeline_mode = #tpu.pipeline_mode<synchronous>, transform_indices = @transform_4, window_bounds = array<i64: 1, 128>}, {pipeline_mode = #tpu.pipeline_mode<synchronous>, transform_indices = @transform_5, window_bounds = array<i64: 1, 128>}, {pipeline_mode = #tpu.pipeline_mode<synchronous>, transform_indices = @transform_6, window_bounds = array<i64: 128, 128>}, {pipeline_mode = #tpu.pipeline_mode<synchronous>, transform_indices = @transform_7, window_bounds = array<i64: 128, 1>}, {pipeline_mode = #tpu.pipeline_mode<synchronous>, transform_indices = @transform_8, window_bounds = array<i64: 128, 1>}]} {
    %c0_i32 = arith.constant 0 : i32
    %0 = arith.cmpi eq, %arg0, %c0_i32 : i32
    %1 = arith.extui %0 : i1 to i32
    %c0_i32_0 = arith.constant 0 : i32
    %2 = arith.cmpi ne, %1, %c0_i32_0 : i32
    scf.if %2 {
      %cst_24 = arith.constant 0xFF800000 : f32
      %44 = vector.broadcast %cst_24 : f32 to vector<128x1xf32>
      %c0_25 = arith.constant 0 : index
      %c0_26 = arith.constant 0 : index
      %45 = vector.load %arg8[%c0_25, %c0_26] : memref<128x1xf32, #tpu.memory_space<vmem>>, vector<128x1xf32>
      tpu.vector_store %arg8[%c0_25, %c0_26], %44 {strides = array<i32>} : memref<128x1xf32, #tpu.memory_space<vmem>>, vector<128x1xf32>,
      %cst_27 = arith.constant 0.000000e+00 : f32
      %46 = vector.broadcast %cst_27 : f32 to vector<128x1xf32>
      %c0_28 = arith.constant 0 : index
      %c0_29 = arith.constant 0 : index
      %47 = vector.load %arg9[%c0_28, %c0_29] : memref<128x1xf32, #tpu.memory_space<vmem>>, vector<128x1xf32>
      tpu.vector_store %arg9[%c0_28, %c0_29], %46 {strides = array<i32>} : memref<128x1xf32, #tpu.memory_space<vmem>>, vector<128x1xf32>,
      %cst_30 = arith.constant 0.000000e+00 : f32
      %48 = vector.broadcast %cst_30 : f32 to vector<128x128xf32>
      %c0_31 = arith.constant 0 : index
      %c0_32 = arith.constant 0 : index
      %49 = vector.load %arg7[%c0_31, %c0_32] : memref<128x128xf32, #tpu.memory_space<vmem>>, vector<128x128xf32>
      tpu.vector_store %arg7[%c0_31, %c0_32], %48 {strides = array<i32>} : memref<128x128xf32, #tpu.memory_space<vmem>>, vector<128x128xf32>,
    } else {
    }
    %c0 = arith.constant 0 : index
    %c0_1 = arith.constant 0 : index
    %3 = vector.load %arg1[%c0, %c0_1] : memref<16x128xbf16, #tpu.memory_space<vmem>>, vector<16x128xbf16>
    %c0_2 = arith.constant 0 : index
    %c0_3 = arith.constant 0 : index
    %4 = vector.load %arg3[%c0_2, %c0_3] : memref<128x128xf32, #tpu.memory_space<vmem>>, vector<128x128xf32>
    %5 = arith.truncf %4 : vector<128x128xf32> to vector<128x128xbf16>
    %cst = arith.constant dense<0.000000e+00> : vector<128x16xf32>
    %6 = tpu.matmul %5, %3, %cst {dimension_numbers = #tpu.dot_dimension_numbers<[1], [1], [0], [0], [0, 0, 1, 0], [], []>} : vector<128x128xbf16>, vector<16x128xbf16>, vector<128x16xf32> -> vector<128x16xf32>
    %cst_4 = arith.constant 0.204124153 : f32
    %7 = vector.broadcast %cst_4 : f32 to vector<128x16xf32>
    %8 = arith.mulf %6, %7 : vector<128x16xf32>
    %9 = tpu.iota {dimensions = array<i32: 1>} : vector<128x16xi32>
    %c16_i32 = arith.constant 16 : i32
    %10 = arith.muli %arg0, %c16_i32 : i32
    %11 = vector.broadcast %10 : i32 to vector<128x16xi32>
    %12 = arith.addi %11, %9 : vector<128x16xi32>
    %c40_i32 = arith.constant 40 : i32
    %13 = vector.broadcast %c40_i32 : i32 to vector<128x16xi32>
    %14 = arith.cmpi slt, %12, %13 : vector<128x16xi32>
    %cst_5 = arith.constant 0xFF800000 : f32
    %15 = vector.broadcast %cst_5 : f32 to vector<128x16xf32>
    %16 = arith.select %14, %8, %15 : vector<128x16xi1>, vector<128x16xf32>
    %c0_6 = arith.constant 0 : index
    %c0_7 = arith.constant 0 : index
    %17 = vector.load %arg8[%c0_6, %c0_7] : memref<128x1xf32, #tpu.memory_space<vmem>>, vector<128x1xf32>
    %cst_8 = arith.constant dense<0xFF800000> : vector<128xf32>
    %18 = vector.multi_reduction <maximumf>, %16, %cst_8 [1] : vector<128x16xf32> to vector<128xf32>
    %19 = vector.shape_cast %18 : vector<128xf32> to vector<128x1xf32>
    %20 = arith.maximumf %17, %19 : vector<128x1xf32>
    %21 = arith.subf %17, %20 : vector<128x1xf32>
    %22 = math.exp %21 : vector<128x1xf32>
    %23 = vector.broadcast %20 : vector<128x1xf32> to vector<128x16xf32>
    %24 = arith.subf %16, %23 : vector<128x16xf32>
    %25 = math.exp %24 : vector<128x16xf32>
    %c0_9 = arith.constant 0 : index
    %c0_10 = arith.constant 0 : index
    %26 = vector.load %arg9[%c0_9, %c0_10] : memref<128x1xf32, #tpu.memory_space<vmem>>, vector<128x1xf32>
    %27 = arith.mulf %22, %26 : vector<128x1xf32>
    %cst_11 = arith.constant dense<0.000000e+00> : vector<128xf32>
    %28 = vector.multi_reduction <add>, %25, %cst_11 [1] : vector<128x16xf32> to vector<128xf32>
    %29 = vector.shape_cast %28 : vector<128xf32> to vector<128x1xf32>
    %30 = arith.addf %27, %29 : vector<128x1xf32>
    %c0_12 = arith.constant 0 : index
    %c0_13 = arith.constant 0 : index
    %31 = vector.load %arg9[%c0_12, %c0_13] : memref<128x1xf32, #tpu.memory_space<vmem>>, vector<128x1xf32>
    tpu.vector_store %arg9[%c0_12, %c0_13], %30 {strides = array<i32>} : memref<128x1xf32, #tpu.memory_space<vmem>>, vector<128x1xf32>,
    %c0_14 = arith.constant 0 : index
    %c0_15 = arith.constant 0 : index
    %32 = vector.load %arg7[%c0_14, %c0_15] : memref<128x128xf32, #tpu.memory_space<vmem>>, vector<128x128xf32>
    %33 = vector.broadcast %22 : vector<128x1xf32> to vector<128x128xf32>
    %34 = arith.mulf %33, %32 : vector<128x128xf32>
    %35 = arith.truncf %25 : vector<128x16xf32> to vector<128x16xbf16>
    %c0_16 = arith.constant 0 : index
    %c0_17 = arith.constant 0 : index
    %36 = vector.load %arg2[%c0_16, %c0_17] : memref<16x128xbf16, #tpu.memory_space<vmem>>, vector<16x128xbf16>
    %cst_18 = arith.constant dense<0.000000e+00> : vector<128x128xf32>
    %37 = tpu.matmul %35, %36, %cst_18 {dimension_numbers = #tpu.dot_dimension_numbers<[1], [0], [0], [1], [0, 0, 1, 1], [], []>} : vector<128x16xbf16>, vector<16x128xbf16>, vector<128x128xf32> -> vector<128x128xf32>
    %38 = arith.addf %34, %37 : vector<128x128xf32>
    %c0_19 = arith.constant 0 : index
    %c0_20 = arith.constant 0 : index
    %39 = vector.load %arg7[%c0_19, %c0_20] : memref<128x128xf32, #tpu.memory_space<vmem>>, vector<128x128xf32>
    tpu.vector_store %arg7[%c0_19, %c0_20], %38 {strides = array<i32>} : memref<128x128xf32, #tpu.memory_space<vmem>>, vector<128x128xf32>,
    %c0_21 = arith.constant 0 : index
    %c0_22 = arith.constant 0 : index
    %40 = vector.load %arg8[%c0_21, %c0_22] : memref<128x1xf32, #tpu.memory_space<vmem>>, vector<128x1xf32>
    tpu.vector_store %arg8[%c0_21, %c0_22], %20 {strides = array<i32>} : memref<128x1xf32, #tpu.memory_space<vmem>>, vector<128x1xf32>,
    %c2_i32 = arith.constant 2 : i32
    %41 = arith.cmpi eq, %arg0, %c2_i32 : i32
    %42 = arith.extui %41 : i1 to i32
    %c0_i32_23 = arith.constant 0 : i32
    %43 = arith.cmpi ne, %42, %c0_i32_23 : i32
    scf.if %43 {
      %c0_24 = arith.constant 0 : index
      %c0_25 = arith.constant 0 : index
      %44 = vector.load %arg9[%c0_24, %c0_25] : memref<128x1xf32, #tpu.memory_space<vmem>>, vector<128x1xf32>
      %cst_26 = arith.constant 1.000000e+00 : f32
      %45 = vector.broadcast %cst_26 : f32 to vector<128x1xf32>
      %46 = arith.divf %45, %44 : vector<128x1xf32>
      %c0_27 = arith.constant 0 : index
      %c0_28 = arith.constant 0 : index
      %47 = vector.load %arg7[%c0_27, %c0_28] : memref<128x128xf32, #tpu.memory_space<vmem>>, vector<128x128xf32>
      %48 = vector.broadcast %46 : vector<128x1xf32> to vector<128x128xf32>
      %49 = arith.mulf %47, %48 : vector<128x128xf32>
      %c0_29 = arith.constant 0 : index
      %c0_30 = arith.constant 0 : index
      %50 = vector.load %arg7[%c0_29, %c0_30] : memref<128x128xf32, #tpu.memory_space<vmem>>, vector<128x128xf32>
      tpu.vector_store %arg7[%c0_29, %c0_30], %49 {strides = array<i32>} : memref<128x128xf32, #tpu.memory_space<vmem>>, vector<128x128xf32>,
      %c0_31 = arith.constant 0 : index
      %c0_32 = arith.constant 0 : index
      %51 = vector.load %arg5[%c0_31, %c0_32] : memref<1x128xf32, #tpu.memory_space<vmem>>, vector<1x128xf32>
      %52 = vector.extract_strided_slice %49 {offsets = [0, 0], sizes = [1, 128], strides = [1, 1]} : vector<128x128xf32> to vector<1x128xf32>
      %53 = arith.truncf %52 : vector<1x128xf32> to vector<1x128xbf16>
      %c0_33 = arith.constant 0 : index
      %c0_34 = arith.constant 0 : index
      %c0_35 = arith.constant 0 : index
      %54 = vector.load %arg4[%c0_33, %c0_34, %c0_35] : memref<4x128x128xbf16, #tpu.memory_space<vmem>>, vector<1x128x128xbf16>
      %55 = vector.shape_cast %54 : vector<1x128x128xbf16> to vector<128x128xbf16>
      %cst_36 = arith.constant dense<0.000000e+00> : vector<1x128xf32>
      %56 = tpu.matmul %53, %55, %cst_36 {dimension_numbers = #tpu.dot_dimension_numbers<[1], [0], [0], [1], [0, 0, 1, 1], [], []>} : vector<1x128xbf16>, vector<128x128xbf16>, vector<1x128xf32> -> vector<1x128xf32>
      %57 = arith.addf %51, %56 : vector<1x128xf32>
      %58 = vector.extract_strided_slice %49 {offsets = [1, 0], sizes = [1, 128], strides = [1, 1]} : vector<128x128xf32> to vector<1x128xf32>
      %59 = arith.truncf %58 : vector<1x128xf32> to vector<1x128xbf16>
      %c1 = arith.constant 1 : index
      %c0_37 = arith.constant 0 : index
      %c0_38 = arith.constant 0 : index
      %60 = vector.load %arg4[%c1, %c0_37, %c0_38] : memref<4x128x128xbf16, #tpu.memory_space<vmem>>, vector<1x128x128xbf16>
      %61 = vector.shape_cast %60 : vector<1x128x128xbf16> to vector<128x128xbf16>
      %cst_39 = arith.constant dense<0.000000e+00> : vector<1x128xf32>
      %62 = tpu.matmul %59, %61, %cst_39 {dimension_numbers = #tpu.dot_dimension_numbers<[1], [0], [0], [1], [0, 0, 1, 1], [], []>} : vector<1x128xbf16>, vector<128x128xbf16>, vector<1x128xf32> -> vector<1x128xf32>
      %63 = arith.addf %57, %62 : vector<1x128xf32>
      %64 = vector.extract_strided_slice %49 {offsets = [2, 0], sizes = [1, 128], strides = [1, 1]} : vector<128x128xf32> to vector<1x128xf32>
      %65 = arith.truncf %64 : vector<1x128xf32> to vector<1x128xbf16>
      %c2 = arith.constant 2 : index
      %c0_40 = arith.constant 0 : index
      %c0_41 = arith.constant 0 : index
      %66 = vector.load %arg4[%c2, %c0_40, %c0_41] : memref<4x128x128xbf16, #tpu.memory_space<vmem>>, vector<1x128x128xbf16>
      %67 = vector.shape_cast %66 : vector<1x128x128xbf16> to vector<128x128xbf16>
      %cst_42 = arith.constant dense<0.000000e+00> : vector<1x128xf32>
      %68 = tpu.matmul %65, %67, %cst_42 {dimension_numbers = #tpu.dot_dimension_numbers<[1], [0], [0], [1], [0, 0, 1, 1], [], []>} : vector<1x128xbf16>, vector<128x128xbf16>, vector<1x128xf32> -> vector<1x128xf32>
      %69 = arith.addf %63, %68 : vector<1x128xf32>
      %70 = vector.extract_strided_slice %49 {offsets = [3, 0], sizes = [1, 128], strides = [1, 1]} : vector<128x128xf32> to vector<1x128xf32>
      %71 = arith.truncf %70 : vector<1x128xf32> to vector<1x128xbf16>
      %c3 = arith.constant 3 : index
      %c0_43 = arith.constant 0 : index
      %c0_44 = arith.constant 0 : index
      %72 = vector.load %arg4[%c3, %c0_43, %c0_44] : memref<4x128x128xbf16, #tpu.memory_space<vmem>>, vector<1x128x128xbf16>
      %73 = vector.shape_cast %72 : vector<1x128x128xbf16> to vector<128x128xbf16>
      %cst_45 = arith.constant dense<0.000000e+00> : vector<1x128xf32>
      %74 = tpu.matmul %71, %73, %cst_45 {dimension_numbers = #tpu.dot_dimension_numbers<[1], [0], [0], [1], [0, 0, 1, 1], [], []>} : vector<1x128xbf16>, vector<128x128xbf16>, vector<1x128xf32> -> vector<1x128xf32>
      %75 = arith.addf %69, %74 : vector<1x128xf32>
      %c0_46 = arith.constant 0 : index
      %c0_47 = arith.constant 0 : index
      %76 = vector.load %arg6[%c0_46, %c0_47] : memref<1x128xf32, #tpu.memory_space<vmem>>, vector<1x128xf32>
      tpu.vector_store %arg6[%c0_46, %c0_47], %75 {strides = array<i32>} : memref<1x128xf32, #tpu.memory_space<vmem>>, vector<1x128xf32>,
    } else {
    }
    return
  }
  func.func @transform_0(%arg0: i32) -> (i32, i32) {
    %c0_i32 = arith.constant 0 : i32
    %c0_i32_0 = arith.constant 0 : i32
    return %arg0, %c0_i32 : i32, i32
  }
  func.func @transform_1(%arg0: i32) -> (i32, i32) {
    %c0_i32 = arith.constant 0 : i32
    %c0_i32_0 = arith.constant 0 : i32
    return %arg0, %c0_i32 : i32, i32
  }
  func.func @transform_2(%arg0: i32) -> (i32, i32) {
    %c0_i32 = arith.constant 0 : i32
    %c0_i32_0 = arith.constant 0 : i32
    %c0_i32_1 = arith.constant 0 : i32
    return %c0_i32, %c0_i32_0 : i32, i32
  }
  func.func @transform_3(%arg0: i32) -> (i32, i32, i32) {
    %c0_i32 = arith.constant 0 : i32
    %c0_i32_0 = arith.constant 0 : i32
    %c0_i32_1 = arith.constant 0 : i32
    %c0_i32_2 = arith.constant 0 : i32
    return %c0_i32, %c0_i32_0, %c0_i32_1 : i32, i32, i32
  }
  func.func @transform_4(%arg0: i32) -> (i32, i32) {
    %c0_i32 = arith.constant 0 : i32
    %c0_i32_0 = arith.constant 0 : i32
    %c0_i32_1 = arith.constant 0 : i32
    return %c0_i32, %c0_i32_0 : i32, i32
  }
  func.func @transform_5(%arg0: i32) -> (i32, i32) {
    %c0_i32 = arith.constant 0 : i32
    %c0_i32_0 = arith.constant 0 : i32
    %c0_i32_1 = arith.constant 0 : i32
    return %c0_i32, %c0_i32_0 : i32, i32
  }
  func.func @transform_6(%arg0: i32) -> (i32, i32) {
    %c0_i32 = arith.constant 0 : i32
    %c0_i32_0 = arith.constant 0 : i32
    %c0_i32_1 = arith.constant 0 : i32
    return %c0_i32, %c0_i32_0 : i32, i32
  }
  func.func @transform_7(%arg0: i32) -> (i32, i32) {
    %c0_i32 = arith.constant 0 : i32
    %c0_i32_0 = arith.constant 0 : i32
    %c0_i32_1 = arith.constant 0 : i32
    return %c0_i32, %c0_i32_0 : i32, i32
  }
  func.func @transform_8(%arg0: i32) -> (i32, i32) {
    %c0_i32 = arith.constant 0 : i32
    %c0_i32_0 = arith.constant 0 : i32
    %c0_i32_1 = arith.constant 0 : i32
    return %c0_i32, %c0_i32_0 : i32, i32
  }
}

module attributes {stable_mosaic.version = 11 : i64} {
  func.func @_normalize_kernel(%arg0: i32, %arg1: memref<16x128xbf16, #tpu.memory_space<vmem>>, %arg2: memref<128x128xf32, #tpu.memory_space<vmem>>, %arg3: memref<1x128xf32, #tpu.memory_space<vmem>>, %arg4: memref<1x128xf32, #tpu.memory_space<vmem>>, %arg5: memref<16x128xf32, #tpu.memory_space<vmem>>) attributes {dimension_semantics = [#tpu.dimension_semantics<parallel>], iteration_bounds = array<i64: 3>, scalar_prefetch = 0 : i64, scratch_operands = 0 : i64, tpu.core_type = #tpu.core_type<tc>, window_params = [{transform_indices = @transform_0, window_bounds = array<i64: 16, 128>}, {pipeline_mode = #tpu.pipeline_mode<synchronous>, transform_indices = @transform_1, window_bounds = array<i64: 128, 128>}, {pipeline_mode = #tpu.pipeline_mode<synchronous>, transform_indices = @transform_2, window_bounds = array<i64: 1, 128>}, {pipeline_mode = #tpu.pipeline_mode<synchronous>, transform_indices = @transform_3, window_bounds = array<i64: 1, 128>}, {transform_indices = @transform_4, window_bounds = array<i64: 16, 128>}]} {
    %c0 = arith.constant 0 : index
    %c0_0 = arith.constant 0 : index
    %0 = vector.load %arg1[%c0, %c0_0] : memref<16x128xbf16, #tpu.memory_space<vmem>>, vector<16x128xbf16>
    %c0_1 = arith.constant 0 : index
    %c0_2 = arith.constant 0 : index
    %1 = vector.load %arg2[%c0_1, %c0_2] : memref<128x128xf32, #tpu.memory_space<vmem>>, vector<128x128xf32>
    %2 = arith.truncf %1 : vector<128x128xf32> to vector<128x128xbf16>
    %cst = arith.constant dense<0.000000e+00> : vector<16x128xf32>
    %3 = tpu.matmul %0, %2, %cst {dimension_numbers = #tpu.dot_dimension_numbers<[1], [1], [0], [0], [0, 0, 1, 0], [], []>} : vector<16x128xbf16>, vector<128x128xbf16>, vector<16x128xf32> -> vector<16x128xf32>
    %cst_3 = arith.constant 0.204124153 : f32
    %4 = vector.broadcast %cst_3 : f32 to vector<16x128xf32>
    %5 = arith.mulf %3, %4 : vector<16x128xf32>
    %c0_4 = arith.constant 0 : index
    %c0_5 = arith.constant 0 : index
    %6 = vector.load %arg3[%c0_4, %c0_5] : memref<1x128xf32, #tpu.memory_space<vmem>>, vector<1x128xf32>
    %7 = vector.broadcast %6 : vector<1x128xf32> to vector<16x128xf32>
    %8 = arith.subf %5, %7 : vector<16x128xf32>
    %9 = math.exp %8 : vector<16x128xf32>
    %c0_6 = arith.constant 0 : index
    %c0_7 = arith.constant 0 : index
    %10 = vector.load %arg4[%c0_6, %c0_7] : memref<1x128xf32, #tpu.memory_space<vmem>>, vector<1x128xf32>
    %11 = vector.broadcast %10 : vector<1x128xf32> to vector<16x128xf32>
    %12 = arith.mulf %9, %11 : vector<16x128xf32>
    %c0_8 = arith.constant 0 : index
    %c0_9 = arith.constant 0 : index
    %13 = vector.load %arg5[%c0_8, %c0_9] : memref<16x128xf32, #tpu.memory_space<vmem>>, vector<16x128xf32>
    tpu.vector_store %arg5[%c0_8, %c0_9], %12 {strides = array<i32>} : memref<16x128xf32, #tpu.memory_space<vmem>>, vector<16x128xf32>,
    return
  }
  func.func @transform_0(%arg0: i32) -> (i32, i32) {
    %c0_i32 = arith.constant 0 : i32
    %c0_i32_0 = arith.constant 0 : i32
    return %arg0, %c0_i32 : i32, i32
  }
  func.func @transform_1(%arg0: i32) -> (i32, i32) {
    %c0_i32 = arith.constant 0 : i32
    %c0_i32_0 = arith.constant 0 : i32
    %c0_i32_1 = arith.constant 0 : i32
    return %c0_i32, %c0_i32_0 : i32, i32
  }
  func.func @transform_2(%arg0: i32) -> (i32, i32) {
    %c0_i32 = arith.constant 0 : i32
    %c0_i32_0 = arith.constant 0 : i32
    %c0_i32_1 = arith.constant 0 : i32
    return %c0_i32, %c0_i32_0 : i32, i32
  }
  func.func @transform_3(%arg0: i32) -> (i32, i32) {
    %c0_i32 = arith.constant 0 : i32
    %c0_i32_0 = arith.constant 0 : i32
    %c0_i32_1 = arith.constant 0 : i32
    return %c0_i32, %c0_i32_0 : i32, i32
  }
  func.func @transform_4(%arg0: i32) -> (i32, i32) {
    %c0_i32 = arith.constant 0 : i32
    %c0_i32_0 = arith.constant 0 : i32
    return %arg0, %c0_i32 : i32, i32
  }
}

</mosaic_0001>

<llo_original>
// kernel: dsmil_forward.5
$region0: #{dsmil_forward.5}
  #allocation0 [shape = 'u32[]', space=smem, size = 0x4, offset = 0x4, fixed_abs, tag = 'smem constant byte address 0x4 - core index']
  #allocation1 [shape = 'u32[144,128]{1,0:T(1,128)}', space=vmem, size = 0x12000, scoped, tag = 'internal scratch']
  %s0 = inlined_call_operand.vmem [shape: bf16[48,128], index: 0, kind: input, shape index: {}]
  %s1 = inlined_call_operand.vmem [shape: f32[128,128], index: 1, kind: input, shape index: {}]
  %s2 = inlined_call_operand.vmem [shape: f32[1,128], index: 2, kind: input, shape index: {}]
  %s3 = inlined_call_operand.vmem [shape: f32[1,128], index: 3, kind: input, shape index: {}]
  %s4 = inlined_call_operand.vmem [shape: f32[48,128], index: 4, kind: output, shape index: {}]
  %s5 = sld [smem:[#allocation0]]
  $region49: #{dsmil_forward.5} parent=0
    _
  %s7 = ssub.s32 1, %s5
  %s8 = scalar_select 0, %s7, %s5
  loop: start=0, step=1, limit=5
  $region2: #{dsmil_forward.5} parent=0 // loop_pre_header
    _
  $region3: #{dsmil_forward.5} parent=0 // loop_header
    %s10 = sphi 0, %s14
    %p11 = scmp.ge.s32.totalorder %s10, 5
    %s20 = sphi 0, %s22
    %s23 = sphi 0, %s20
    %s24 = sphi 0, %s23
    %s40 = sphi 0, %s24
    %s44 = sphi 0, %s44
    %s46 = sphi 0, %s44
    %s47 = sphi 0, %s46
    %s61 = sphi 0, %s47
    %s65 = sphi 0, %s65
    %s67 = sphi 0, %s65
    %s68 = sphi 0, %s67
    %s82 = sphi 0, %s68
    %s86 = sphi 0, %s86
    %s88 = sphi 0, %s86
    %s89 = sphi 0, %s88
    %s103 = sphi 0, %s89
    %s109 = sphi 0, %s111
    %s112 = sphi 0, %s109
    %s113 = sphi 0, %s112
    %s129 = sphi 0, %s113
  $region4: #{dsmil_forward.5} parent=0 // loop_header_branch
    %13 = sbr.rel (%p11) target = $region8
  $region5: #{dsmil_forward.5} parent=0 // loop_body
    %s15 = ssub.s32 %s10, 1
    %s16 = ssub.s32 %s10, 2
    %s17 = sadd.s32 %s10, 1
    %s18 = ssub.s32 %s10, %s17
    %p19 = scmp.eq.s32.totalorder %s18, 0
    %s21 = sadd.s32 %s20, 1
    %s22 = scalar_select %p19, %s20, %s21
    %p25 = pneg %p19
    %p26 = scmp.eq.s32.totalorder %s10, 2
    %p27 = por %p25, %p26
    %p28 = scmp.ne.s32.totalorder %s20, %s23
    %p29 = scmp.eq.s32.totalorder %s10, 0
    %p30 = por %p28, %p29
    %p31 = scmp.ne.s32.totalorder %s20, %s23
    %p32 = scmp.eq.s32.totalorder %s15, 2
    %p33 = por %p31, %p32
    %p34 = scmp.ne.s32.totalorder %s23, %s24
    %p35 = scmp.eq.s32.totalorder %s15, 0
    %p36 = por %p34, %p35
    %p37 = scmp.ne.s32.totalorder %s23, %s24
    %p38 = scmp.eq.s32.totalorder %s16, 2
    %p39 = por %p37, %p38
    %p41 = scmp.ne.s32.totalorder %s24, %s40
    %p42 = scmp.eq.s32.totalorder %s16, 0
    %p43 = por %p41, %p42
    %s45 = sadd.s32 %s44, 1
    %p48 = scmp.eq.s32.totalorder %s10, 2
    %p49 = scmp.ne.s32.totalorder %s44, %s46
    %p50 = scmp.eq.s32.totalorder %s10, 0
    %p51 = por %p49, %p50
    %p52 = scmp.ne.s32.totalorder %s44, %s46
    %p53 = scmp.eq.s32.totalorder %s15, 2
    %p54 = por %p52, %p53
    %p55 = scmp.ne.s32.totalorder %s46, %s47
    %p56 = scmp.eq.s32.totalorder %s15, 0
    %p57 = por %p55, %p56
    %p58 = scmp.ne.s32.totalorder %s46, %s47
    %p59 = scmp.eq.s32.totalorder %s16, 2
    %p60 = por %p58, %p59
    %p62 = scmp.ne.s32.totalorder %s47, %s61
    %p63 = scmp.eq.s32.totalorder %s16, 0
    %p64 = por %p62, %p63
    %s66 = sadd.s32 %s65, 1
    %p69 = scmp.eq.s32.totalorder %s10, 2
    %p70 = scmp.ne.s32.totalorder %s65, %s67
    %p71 = scmp.eq.s32.totalorder %s10, 0
    %p72 = por %p70, %p71
    %p73 = scmp.ne.s32.totalorder %s65, %s67
    %p74 = scmp.eq.s32.totalorder %s15, 2
    %p75 = por %p73, %p74
    %p76 = scmp.ne.s32.totalorder %s67, %s68
    %p77 = scmp.eq.s32.totalorder %s15, 0
    %p78 = por %p76, %p77
    %p79 = scmp.ne.s32.totalorder %s67, %s68
    %p80 = scmp.eq.s32.totalorder %s16, 2
    %p81 = por %p79, %p80
    %p83 = scmp.ne.s32.totalorder %s68, %s82
    %p84 = scmp.eq.s32.totalorder %s16, 0
    %p85 = por %p83, %p84
    %s87 = sadd.s32 %s86, 1
    %p90 = scmp.eq.s32.totalorder %s10, 2
    %p91 = scmp.ne.s32.totalorder %s86, %s88
    %p92 = scmp.eq.s32.totalorder %s10, 0
    %p93 = por %p91, %p92
    %p94 = scmp.ne.s32.totalorder %s86, %s88
    %p95 = scmp.eq.s32.totalorder %s15, 2
    %p96 = por %p94, %p95
    %p97 = scmp.ne.s32.totalorder %s88, %s89
    %p98 = scmp.eq.s32.totalorder %s15, 0
    %p99 = por %p97, %p98
    %p100 = scmp.ne.s32.totalorder %s88, %s89
    %p101 = scmp.eq.s32.totalorder %s16, 2
    %p102 = por %p100, %p101
    %p104 = scmp.ne.s32.totalorder %s89, %s103
    %p105 = scmp.eq.s32.totalorder %s16, 0
    %p106 = por %p104, %p105
    %s107 = ssub.s32 %s10, %s17
    %p108 = scmp.eq.s32.totalorder %s107, 0
    %s110 = sadd.s32 %s109, 1
    %s111 = scalar_select %p108, %s109, %s110
    %p114 = pneg %p108
    %p115 = scmp.eq.s32.totalorder %s10, 2
    %p116 = por %p114, %p115
    %p117 = scmp.ne.s32.totalorder %s109, %s112
    %p118 = scmp.eq.s32.totalorder %s10, 0
    %p119 = por %p117, %p118
    %p120 = scmp.ne.s32.totalorder %s109, %s112
    %p121 = scmp.eq.s32.totalorder %s15, 2
    %p122 = por %p120, %p121
    %p123 = scmp.ne.s32.totalorder %s112, %s113
    %p124 = scmp.eq.s32.totalorder %s15, 0
    %p125 = por %p123, %p124
    %p126 = scmp.ne.s32.totalorder %s112, %s113
    %p127 = scmp.eq.s32.totalorder %s16, 2
    %p128 = por %p126, %p127
    %p130 = scmp.ne.s32.totalorder %s113, %s129
    %p131 = scmp.eq.s32.totalorder %s16, 0
    %p132 = por %p130, %p131
    %p133 = scmp.le.s32.totalorder 1, %s10
    %p134 = scmp.lt.s32.totalorder %s10, 4
    %p135 = pnand %p133, %p134
    %p136 = pneg %p135
    // Predicated region
    $region9: #{dsmil_forward.5} parent=5 // pred_check
      _
    $region10: #{dsmil_forward.5} parent=5 // pred_check_branch
      %138 = sbr.rel (%p135) target = $region12
    $region11: #{dsmil_forward.5} parent=5 // pred_region
      %s139 = ssub.s32 %s10, 1
      // Predicated region
      $region13: #{dsmil_forward.5} parent=11 // pred_check
        %p140 = pneg %p57
      $region14: #{dsmil_forward.5} parent=11 // pred_check_branch
        %142 = sbr.rel (%p140) target = $region16
      $region15: #{dsmil_forward.5} parent=11 // pred_region
        _
      $region16: #{dsmil_forward.5} parent=11 // pred_fallthru
        _
      // Predicated region
      $region17: #{dsmil_forward.5} parent=11 // pred_check
        %p143 = pneg %p78
      $region18: #{dsmil_forward.5} parent=11 // pred_check_branch
        %145 = sbr.rel (%p143) target = $region20
      $region19: #{dsmil_forward.5} parent=11 // pred_region
        _
      $region20: #{dsmil_forward.5} parent=11 // pred_fallthru
        _
      // Predicated region
      $region21: #{dsmil_forward.5} parent=11 // pred_check
        %p146 = pneg %p99
      $region22: #{dsmil_forward.5} parent=11 // pred_check_branch
        %148 = sbr.rel (%p146) target = $region24
      $region23: #{dsmil_forward.5} parent=11 // pred_region
        _
      $region24: #{dsmil_forward.5} parent=11 // pred_fallthru
        _
    $region12: #{dsmil_forward.5} parent=5 // pred_fallthru
      _
    %p149 = scmp.lt.s32.totalorder %s10, 3
    // Predicated region
    $region25: #{dsmil_forward.5} parent=5 // pred_check
      %p150 = pneg %p149
    $region26: #{dsmil_forward.5} parent=5 // pred_check_branch
      %152 = sbr.rel (%p150) target = $region28
    $region27: #{dsmil_forward.5} parent=5 // pred_region
      // Predicated region
      $region29: #{dsmil_forward.5} parent=27 // pred_check
        %p153 = pneg %p30
      $region30: #{dsmil_forward.5} parent=27 // pred_check_branch
        %155 = sbr.rel (%p153) target = $region32
      $region31: #{dsmil_forward.5} parent=27 // pred_region
        %s156 = smul.u32 2, %s10
        %p157 = scmp.lt.s32.totalorder %s156, 5
        %s158 = scalar_select %p157, %s156, 5
        %s159 = smul.addr %s158, 4
        %s160 = scalar_lea.vmem %s0, %s159
        %s161 = smul.u32 2, %s10
      $region32: #{dsmil_forward.5} parent=27 // pred_fallthru
        _
    $region28: #{dsmil_forward.5} parent=5 // pred_fallthru
      _
    %p162 = scmp.le.s32.totalorder 1, %s10
    %p163 = scmp.lt.s32.totalorder %s10, 4
    %p164 = pnand %p162, %p163
    %p165 = pneg %p164
    // Predicated region
    $region33: #{dsmil_forward.5} parent=5 // pred_check
      _
    $region34: #{dsmil_forward.5} parent=5 // pred_check_branch
      %167 = sbr.rel (%p164) target = $region36
    $region35: #{dsmil_forward.5} parent=5 // pred_region
      %s168 = ssub.s32 %s10, 1
      %s169 = smul.u32 2, %s15
      %p170 = scmp.lt.s32.totalorder %s169, 5
      %s171 = scalar_select %p170, %s169, 5
      %s172 = smul.addr %s171, 4
      %s173 = scalar_lea.vmem %s0, %s172
      %p174 = pneg %p36
      %p175 = pneg %p33
      %p176 = pneg %p57
      %p177 = pneg %p54
      %p178 = pneg %p78
      %p179 = pneg %p75
      %p180 = pneg %p99
      %p181 = pneg %p96
      %p182 = pneg %p125
      %p183 = pneg %p122
      %s184 = smul.u32 2, %s15
      %p185 = scmp.lt.s32.totalorder %s184, 5
      %s186 = scalar_select %p185, %s184, 5
      %s187 = smul.addr %s186, 8
      %s188 = scalar_lea.vmem %s4, %s187
      %s189 = smul.u32 2, %s15
      %p190 = scmp.lt.s32.totalorder %s189, 5
      %s191 = scalar_select %p190, %s189, 5
      %s192 = smul.addr %s191, 4
      %s193 = scalar_lea.vmem %s0, %s192
      %s194 = smul.u32 2, %s15
      %s195 = smul.u32 2, %s15
      %p196 = scmp.lt.s32.totalorder %s195, 5
      %s197 = scalar_select %p196, %s195, 5
      %s198 = smul.addr %s197, 8
      %s199 = scalar_lea.vmem %s4, %s198
      %s200 = smul.u32 2, %s15
      %v202 = vld [vmem:[%s193] sm:$0xf]
      %v203 = vld [vmem:[%s193 + $0x4] sm:$0xf]
      %v204 = vld [vmem:[%s1] sm:$0xff]
      %v205 = vld [vmem:[%s1 + $0x8] sm:$0xff]
      %v206 = vld [vmem:[%s1 + $0x10] sm:$0xff]
      %v207 = vld [vmem:[%s1 + $0x18] sm:$0xff]
      %v208 = vld [vmem:[%s1 + $0x20] sm:$0xff]
      %v209 = vld [vmem:[%s1 + $0x28] sm:$0xff]
      %v210 = vld [vmem:[%s1 + $0x30] sm:$0xff]
      %v211 = vld [vmem:[%s1 + $0x38] sm:$0xff]
      %v212 = vld [vmem:[%s1 + $0x40] sm:$0xff]
      %v213 = vld [vmem:[%s1 + $0x48] sm:$0xff]
      %v214 = vld [vmem:[%s1 + $0x50] sm:$0xff]
      %v215 = vld [vmem:[%s1 + $0x58] sm:$0xff]
      %v216 = vld [vmem:[%s1 + $0x60] sm:$0xff]
      %v217 = vld [vmem:[%s1 + $0x68] sm:$0xff]
      %v218 = vld [vmem:[%s1 + $0x70] sm:$0xff]
      %v219 = vld [vmem:[%s1 + $0x78] sm:$0xff]
      %v220 = vpack.c.bf16 %v205, %v204
      %v221 = vpack.c.bf16 %v207, %v206
      %v222 = vpack.c.bf16 %v209, %v208
      %v223 = vpack.c.bf16 %v211, %v210
      %v224 = vpack.c.bf16 %v213, %v212
      %v225 = vpack.c.bf16 %v215, %v214
      %v226 = vpack.c.bf16 %v217, %v216
      %v227 = vpack.c.bf16 %v219, %v218
      %v230 = vunpack.c.l.b16 %v202
      %v231 = vunpack.c.l.b16 %v203
      %v232 = vpack.c.b16 %v231, %v230
      %234 = vmatprep.subr.bf16.mxu0 0
      %235 = vmatpush1.bf16.xpose.msra.mxu0 %v220
      %236 = vmatprep.subr.bf16.mxu0 0
      %237 = vmatpush1.bf16.xpose.msra.mxu0 %v221
      %238 = vmatprep.subr.bf16.mxu0 0
      %239 = vmatpush1.bf16.xpose.msra.mxu0 %v222
      %240 = vmatprep.subr.bf16.mxu0 0
      %241 = vmatpush1.bf16.xpose.msra.mxu0 %v223
      %242 = vmatprep.subr.bf16.mxu0 0
      %243 = vmatpush1.bf16.xpose.msra.mxu0 %v224
      %244 = vmatprep.subr.bf16.mxu0 0
      %245 = vmatpush1.bf16.xpose.msra.mxu0 %v225
      %246 = vmatprep.subr.bf16.mxu0 0
      %247 = vmatpush1.bf16.xpose.msra.mxu0 %v226
      %248 = vmatprep.subr.bf16.mxu0 0
      %249 = vmatpush1.bf16.xpose.msra.mxu0 %v227
      %250 = vmatprep.subr.bf16.mxu0 0
      %251 = vmatpush1.bf16.xpose.msra.mxu0 0
      %252 = vmatprep.subr.bf16.mxu0 0
      %253 = vmatpush1.bf16.xpose.msra.mxu0 0
      %254 = vmatprep.subr.bf16.mxu0 0
      %255 = vmatpush1.bf16.xpose.msra.mxu0 0
      %256 = vmatprep.subr.bf16.mxu0 0
      %257 = vmatpush1.bf16.xpose.msra.mxu0 0
      %258 = vmatprep.subr.bf16.mxu0 0
      %259 = vmatpush1.bf16.xpose.msra.mxu0 0
      %260 = vmatprep.subr.bf16.mxu0 0
      %261 = vmatpush1.bf16.xpose.msra.mxu0 0
      %262 = vmatprep.subr.bf16.mxu0 0
      %263 = vmatpush1.bf16.xpose.msra.mxu0 0
      %264 = vmatprep.subr.bf16.mxu0 0
      %265 = vmatpush1.bf16.xpose.msra.mxu0 0
      %266 = vmatprep.mubr.bf16.mxu0 0
      %267 = vmatmul.mubr.bf16.gmra.mrb[0].mxu0 %v232
      %v268 = vpop.f32.mrb[0].mxu0
      %v269 = vadd.f32 0.0, %v268
      %v270 = vpop.f32.mrb[0].mxu0
      %v271 = vpop.f32.mrb[0].mxu0
      %v272 = vadd.f32 0.0, %v271
      %v273 = vpop.f32.mrb[0].mxu0
      %274 = vdwg.mxu0
      %v275 = vmul.f32 %v269, 0.20412415
      %v276 = vmul.f32 %v272, 0.20412415
      %v277 = vld [vmem:[%s2] sm:$0x1]
      %v279 = vlaneseq
      %v280 = vshrl.u32 %v279, 7
      %v281 = vsub.s32 0, %v280
      %v282 = vrot.slane %v277, %v281
      %v284 = vsub.f32 %v275, %v282
      %v285 = vsub.f32 %v276, %v282
      %v286 = vmul.f32 %v284, 1.442695
      %v287 = vpow.pop %v286
      %v288 = vmul.f32 %v285, 1.442695
      %v289 = vpow.pop %v288
      %v290 = vld [vmem:[%s3] sm:$0x1]
      %v292 = vlaneseq
      %v293 = vshrl.u32 %v292, 7
      %v294 = vsub.s32 0, %v293
      %v295 = vrot.slane %v290, %v294
      %v297 = vmul.f32 %v287, %v295
      %v298 = vmul.f32 %v289, %v295
      %299 = vst [vmem:[%s199] sm:$0xff] %v297
      %300 = vst [vmem:[%s199 + $0x8] sm:$0xff] %v298
      %s301 = smul.u32 2, %s15
      %p302 = scmp.lt.s32.totalorder %s301, 5
      %s303 = scalar_select %p302, %s301, 5
      %s304 = smul.addr %s303, 8
      %s305 = scalar_lea.vmem %s4, %s304
      // Predicated region
      $region37: #{dsmil_forward.5} parent=35 // pred_check
        %p306 = pneg %p122
      $region38: #{dsmil_forward.5} parent=35 // pred_check_branch
        %308 = sbr.rel (%p306) target = $region40
      $region39: #{dsmil_forward.5} parent=35 // pred_region
        %s309 = smul.u32 2, %s15
      $region40: #{dsmil_forward.5} parent=35 // pred_fallthru
        _
    $region36: #{dsmil_forward.5} parent=5 // pred_fallthru
      _
    %p310 = scmp.le.s32.totalorder 2, %s10
    // Predicated region
    $region41: #{dsmil_forward.5} parent=5 // pred_check
      %p311 = pneg %p310
    $region42: #{dsmil_forward.5} parent=5 // pred_check_branch
      %313 = sbr.rel (%p311) target = $region44
    $region43: #{dsmil_forward.5} parent=5 // pred_region
      %s314 = ssub.s32 %s10, 2
      // Predicated region
      $region45: #{dsmil_forward.5} parent=43 // pred_check
        %p315 = pneg %p128
      $region46: #{dsmil_forward.5} parent=43 // pred_check_branch
        %317 = sbr.rel (%p315) target = $region48
      $region47: #{dsmil_forward.5} parent=43 // pred_region
        %s318 = smul.u32 2, %s16
        %p319 = scmp.lt.s32.totalorder %s318, 5
        %s320 = scalar_select %p319, %s318, 5
        %s321 = smul.addr %s320, 8
        %s322 = scalar_lea.vmem %s4, %s321
      $region48: #{dsmil_forward.5} parent=43 // pred_fallthru
        _
    $region44: #{dsmil_forward.5} parent=5 // pred_fallthru
      _
  $region6: #{dsmil_forward.5} parent=0 // loop_footer
    %s14 = sadd.s32 1, %s10
  $region7: #{dsmil_forward.5} parent=0 // loop_footer_branch
    %9 = sbr.rel target = $region3
  $region8: #{dsmil_forward.5} parent=0 // loop_exit
    _

// kernel: dsmil_forward.3
$region0: #{dsmil_forward.3}
  #allocation0 [shape = 'u32[]', space=smem, size = 0x4, offset = 0x4, fixed_abs, tag = 'smem constant byte address 0x4 - core index']
  #allocation1 [shape = 'u32[144,128]{1,0:T(1,128)}', space=vmem, size = 0x12000, scoped, tag = 'internal scratch']
  #allocation2 [shape = 'f32[1,128]{1,0:T(1,128)}', space=vmem, size = 0x200, scoped, tag = 'scratch operand']
  %s0 = inlined_call_operand.vmem [shape: bf16[48,128], index: 0, kind: input, shape index: {}]
  %s1 = inlined_call_operand.hbm [shape: bf16[128,256], index: 1, kind: input, shape index: {}]
  %s2 = inlined_call_operand.hbm [shape: f32[1,256], index: 2, kind: input, shape index: {}]
  %s3 = inlined_call_operand.vmem [shape: f32[48,128], index: 3, kind: output, shape index: {0}]
  %s4 = inlined_call_operand.vmem [shape: bf16[48,128], index: 4, kind: output, shape index: {1}]
  %s5 = inlined_call_operand.vmem [shape: f32[128,128], index: 5, kind: output, shape index: {2}]
  %6 = xla_tuple %s3, %s4, %s5
  %s7 = sld [smem:[#allocation0]]
  $region73: #{dsmil_forward.3} parent=0
    _
  %s9 = ssub.s32 1, %s7
  %s10 = scalar_select 0, %s9, %s7
  $region1: #{dsmil_forward.3} parent=0
    #allocation3 [shape = 'u8[65536]{0}', space=vmem, size = 0x10000, scoped, tag = 'input window, operand 1, single buffered']
    #allocation4 [shape = 's32[2]{0}', space=sflag, size = 0x8, scoped, tag = 'scoped memory for dsmil_forward.3']
    #allocation5 [shape = 'u8[1024]{0}', space=vmem, size = 0x400, scoped, tag = 'input window, operand 2, single buffered']
    #allocation6 [shape = 's32[1]{0}', space=sflag, size = 0x4, scoped, tag = 'scoped memory for dsmil_forward.3']
    %11 = vsyncpa [#allocation4], 0
    %12 = vsyncpa [#allocation6], 0
    loop: start=0, step=1, limit=5
    $region2: #{dsmil_forward.3} parent=1 // loop_pre_header
      _
    $region3: #{dsmil_forward.3} parent=1 // loop_header
      %s14 = sphi 0, %s18
      %p15 = scmp.ge.s32.totalorder %s14, 5
      %s24 = sphi 0, %s26
      %s27 = sphi 0, %s24
      %s28 = sphi 0, %s27
      %s44 = sphi 0, %s28
      %s48 = sphi 0, %s48
      %s50 = sphi 0, %s48
      %s51 = sphi 0, %s50
      %s65 = sphi 0, %s51
      %s69 = sphi 0, %s69
      %s71 = sphi 0, %s69
      %s72 = sphi 0, %s71
      %s86 = sphi 0, %s72
      %s92 = sphi 0, %s94
      %s95 = sphi 0, %s92
      %s96 = sphi 0, %s95
      %s112 = sphi 0, %s96
      %s118 = sphi 0, %s120
      %s121 = sphi 0, %s118
      %s122 = sphi 0, %s121
      %s138 = sphi 0, %s122
      %s142 = sphi 0, %s142
      %s144 = sphi 0, %s142
      %s145 = sphi 0, %s144
      %s159 = sphi 0, %s145
    $region4: #{dsmil_forward.3} parent=1 // loop_header_branch
      %17 = sbr.rel (%p15) target = $region8
    $region5: #{dsmil_forward.3} parent=1 // loop_body
      %s19 = ssub.s32 %s14, 1
      %s20 = ssub.s32 %s14, 2
      %s21 = sadd.s32 %s14, 1
      %s22 = ssub.s32 %s14, %s21
      %p23 = scmp.eq.s32.totalorder %s22, 0
      %s25 = sadd.s32 %s24, 1
      %s26 = scalar_select %p23, %s24, %s25
      %p29 = pneg %p23
      %p30 = scmp.eq.s32.totalorder %s14, 2
      %p31 = por %p29, %p30
      %p32 = scmp.ne.s32.totalorder %s24, %s27
      %p33 = scmp.eq.s32.totalorder %s14, 0
      %p34 = por %p32, %p33
      %p35 = scmp.ne.s32.totalorder %s24, %s27
      %p36 = scmp.eq.s32.totalorder %s19, 2
      %p37 = por %p35, %p36
      %p38 = scmp.ne.s32.totalorder %s27, %s28
      %p39 = scmp.eq.s32.totalorder %s19, 0
      %p40 = por %p38, %p39
      %p41 = scmp.ne.s32.totalorder %s27, %s28
      %p42 = scmp.eq.s32.totalorder %s20, 2
      %p43 = por %p41, %p42
      %p45 = scmp.ne.s32.totalorder %s28, %s44
      %p46 = scmp.eq.s32.totalorder %s20, 0
      %p47 = por %p45, %p46
      %s49 = sadd.s32 %s48, 1
      %p52 = scmp.eq.s32.totalorder %s14, 2
      %p53 = scmp.ne.s32.totalorder %s48, %s50
      %p54 = scmp.eq.s32.totalorder %s14, 0
      %p55 = por %p53, %p54
      %p56 = scmp.ne.s32.totalorder %s48, %s50
      %p57 = scmp.eq.s32.totalorder %s19, 2
      %p58 = por %p56, %p57
      %p59 = scmp.ne.s32.totalorder %s50, %s51
      %p60 = scmp.eq.s32.totalorder %s19, 0
      %p61 = por %p59, %p60
      %p62 = scmp.ne.s32.totalorder %s50, %s51
      %p63 = scmp.eq.s32.totalorder %s20, 2
      %p64 = por %p62, %p63
      %p66 = scmp.ne.s32.totalorder %s51, %s65
      %p67 = scmp.eq.s32.totalorder %s20, 0
      %p68 = por %p66, %p67
      %s70 = sadd.s32 %s69, 1
      %p73 = scmp.eq.s32.totalorder %s14, 2
      %p74 = scmp.ne.s32.totalorder %s69, %s71
      %p75 = scmp.eq.s32.totalorder %s14, 0
      %p76 = por %p74, %p75
      %p77 = scmp.ne.s32.totalorder %s69, %s71
      %p78 = scmp.eq.s32.totalorder %s19, 2
      %p79 = por %p77, %p78
      %p80 = scmp.ne.s32.totalorder %s71, %s72
      %p81 = scmp.eq.s32.totalorder %s19, 0
      %p82 = por %p80, %p81
      %p83 = scmp.ne.s32.totalorder %s71, %s72
      %p84 = scmp.eq.s32.totalorder %s20, 2
      %p85 = por %p83, %p84
      %p87 = scmp.ne.s32.totalorder %s72, %s86
      %p88 = scmp.eq.s32.totalorder %s20, 0
      %p89 = por %p87, %p88
      %s90 = ssub.s32 %s14, %s21
      %p91 = scmp.eq.s32.totalorder %s90, 0
      %s93 = sadd.s32 %s92, 1
      %s94 = scalar_select %p91, %s92, %s93
      %p97 = pneg %p91
      %p98 = scmp.eq.s32.totalorder %s14, 2
      %p99 = por %p97, %p98
      %p100 = scmp.ne.s32.totalorder %s92, %s95
      %p101 = scmp.eq.s32.totalorder %s14, 0
      %p102 = por %p100, %p101
      %p103 = scmp.ne.s32.totalorder %s92, %s95
      %p104 = scmp.eq.s32.totalorder %s19, 2
      %p105 = por %p103, %p104
      %p106 = scmp.ne.s32.totalorder %s95, %s96
      %p107 = scmp.eq.s32.totalorder %s19, 0
      %p108 = por %p106, %p107
      %p109 = scmp.ne.s32.totalorder %s95, %s96
      %p110 = scmp.eq.s32.totalorder %s20, 2
      %p111 = por %p109, %p110
      %p113 = scmp.ne.s32.totalorder %s96, %s112
      %p114 = scmp.eq.s32.totalorder %s20, 0
      %p115 = por %p113, %p114
      %s116 = ssub.s32 %s14, %s21
      %p117 = scmp.eq.s32.totalorder %s116, 0
      %s119 = sadd.s32 %s118, 1
      %s120 = scalar_select %p117, %s118, %s119
      %p123 = pneg %p117
      %p124 = scmp.eq.s32.totalorder %s14, 2
      %p125 = por %p123, %p124
      %p126 = scmp.ne.s32.totalorder %s118, %s121
      %p127 = scmp.eq.s32.totalorder %s14, 0
      %p128 = por %p126, %p127
      %p129 = scmp.ne.s32.totalorder %s118, %s121
      %p130 = scmp.eq.s32.totalorder %s19, 2
      %p131 = por %p129, %p130
      %p132 = scmp.ne.s32.totalorder %s121, %s122
      %p133 = scmp.eq.s32.totalorder %s19, 0
      %p134 = por %p132, %p133
      %p135 = scmp.ne.s32.totalorder %s121, %s122
      %p136 = scmp.eq.s32.totalorder %s20, 2
      %p137 = por %p135, %p136
      %p139 = scmp.ne.s32.totalorder %s122, %s138
      %p140 = scmp.eq.s32.totalorder %s20, 0
      %p141 = por %p139, %p140
      %s143 = sadd.s32 %s142, 1
      %p146 = scmp.eq.s32.totalorder %s14, 2
      %p147 = scmp.ne.s32.totalorder %s142, %s144
      %p148 = scmp.eq.s32.totalorder %s14, 0
      %p149 = por %p147, %p148
      %p150 = scmp.ne.s32.totalorder %s142, %s144
      %p151 = scmp.eq.s32.totalorder %s19, 2
      %p152 = por %p150, %p151
      %p153 = scmp.ne.s32.totalorder %s144, %s145
      %p154 = scmp.eq.s32.totalorder %s19, 0
      %p155 = por %p153, %p154
      %p156 = scmp.ne.s32.totalorder %s144, %s145
      %p157 = scmp.eq.s32.totalorder %s20, 2
      %p158 = por %p156, %p157
      %p160 = scmp.ne.s32.totalorder %s145, %s159
      %p161 = scmp.eq.s32.totalorder %s20, 0
      %p162 = por %p160, %p161
      %p163 = scmp.le.s32.totalorder 1, %s14
      %p164 = scmp.lt.s32.totalorder %s14, 4
      %p165 = pnand %p163, %p164
      %p166 = pneg %p165
      // Predicated region
      $region9: #{dsmil_forward.3} parent=5 // pred_check
        _
      $region10: #{dsmil_forward.3} parent=5 // pred_check_branch
        %168 = sbr.rel (%p165) target = $region12
      $region11: #{dsmil_forward.3} parent=5 // pred_region
        %s169 = ssub.s32 %s14, 1
        // Predicated region
        $region13: #{dsmil_forward.3} parent=11 // pred_check
          %p170 = pneg %p61
        $region14: #{dsmil_forward.3} parent=11 // pred_check_branch
          %172 = sbr.rel (%p170) target = $region16
        $region15: #{dsmil_forward.3} parent=11 // pred_region
          %s174 = ssub.s32 2048, 2048
          %175 = vsyncadd [#allocation4], %s174
          %s176 = sshll.u32 [#allocation3], 4
          %s177 = int_to_ptr.vmem [resolvable:$true] %s176
          %182 = dma.hbm_to_vmem [thread:$0]  %s1, 2048, %s177, [#allocation4], 128, 128, 8
        $region16: #{dsmil_forward.3} parent=11 // pred_fallthru
          _
        // Predicated region
        $region17: #{dsmil_forward.3} parent=11 // pred_check
          %p183 = pneg %p82
        $region18: #{dsmil_forward.3} parent=11 // pred_check_branch
          %185 = sbr.rel (%p183) target = $region20
        $region19: #{dsmil_forward.3} parent=11 // pred_region
          %s187 = ssub.s32 32, 32
          %188 = vsyncadd [#allocation6], %s187
          %s190 = sshll.u32 [#allocation5], 4
          %s191 = int_to_ptr.vmem [resolvable:$true] %s190
          %193 = dma.hbm_to_vmem [thread:$0]  %s2, 32, %s191, [#allocation6]
        $region20: #{dsmil_forward.3} parent=11 // pred_fallthru
          _
      $region12: #{dsmil_forward.3} parent=5 // pred_fallthru
        _
      %p194 = scmp.lt.s32.totalorder %s14, 3
      // Predicated region
      $region21: #{dsmil_forward.3} parent=5 // pred_check
        %p195 = pneg %p194
      $region22: #{dsmil_forward.3} parent=5 // pred_check_branch
        %197 = sbr.rel (%p195) target = $region24
      $region23: #{dsmil_forward.3} parent=5 // pred_region
        // Predicated region
        $region25: #{dsmil_forward.3} parent=23 // pred_check
          %p198 = pneg %p34
        $region26: #{dsmil_forward.3} parent=23 // pred_check_branch
          %200 = sbr.rel (%p198) target = $region28
        $region27: #{dsmil_forward.3} parent=23 // pred_region
          %s201 = smul.u32 2, %s14
          %p202 = scmp.lt.s32.totalorder %s201, 5
          %s203 = scalar_select %p202, %s201, 5
          %s204 = smul.addr %s203, 4
          %s205 = scalar_lea.vmem %s0, %s204
          %s206 = smul.u32 2, %s14
        $region28: #{dsmil_forward.3} parent=23 // pred_fallthru
          _
      $region24: #{dsmil_forward.3} parent=5 // pred_fallthru
        _
      %p207 = scmp.le.s32.totalorder 1, %s14
      %p208 = scmp.lt.s32.totalorder %s14, 4
      %p209 = pnand %p207, %p208
      %p210 = pneg %p209
      // Predicated region
      $region29: #{dsmil_forward.3} parent=5 // pred_check
        _
      $region30: #{dsmil_forward.3} parent=5 // pred_check_branch
        %212 = sbr.rel (%p209) target = $region32
      $region31: #{dsmil_forward.3} parent=5 // pred_region
        %s213 = ssub.s32 %s14, 1
        // Predicated region
        $region33: #{dsmil_forward.3} parent=31 // pred_check
          %p214 = pneg %p61
        $region34: #{dsmil_forward.3} parent=31 // pred_check_branch
          %216 = sbr.rel (%p214) target = $region36
        $region35: #{dsmil_forward.3} parent=31 // pred_region
          %217 = dma.done [#allocation4], 2048
        $region36: #{dsmil_forward.3} parent=31 // pred_fallthru
          _
        // Predicated region
        $region37: #{dsmil_forward.3} parent=31 // pred_check
          %p218 = pneg %p82
        $region38: #{dsmil_forward.3} parent=31 // pred_check_branch
          %220 = sbr.rel (%p218) target = $region40
        $region39: #{dsmil_forward.3} parent=31 // pred_region
          %221 = dma.done [#allocation6], 32
        $region40: #{dsmil_forward.3} parent=31 // pred_fallthru
          _
        %s222 = smul.u32 2, %s19
        %p223 = scmp.lt.s32.totalorder %s222, 5
        %s224 = scalar_select %p223, %s222, 5
        %s225 = smul.addr %s224, 4
        %s226 = scalar_lea.vmem %s0, %s225
        %p227 = pneg %p40
        %p228 = pneg %p37
        %p229 = pneg %p61
        %p230 = pneg %p58
        %p231 = pneg %p82
        %p232 = pneg %p79
        %p233 = pneg %p108
        %p234 = pneg %p105
        %s235 = smul.u32 2, %s19
        %p236 = scmp.lt.s32.totalorder %s235, 5
        %s237 = scalar_select %p236, %s235, 5
        %s238 = smul.addr %s237, 8
        %s239 = scalar_lea.vmem %s3, %s238
        %p240 = pneg %p134
        %p241 = pneg %p131
        %s242 = smul.u32 2, %s19
        %p243 = scmp.lt.s32.totalorder %s242, 5
        %s244 = scalar_select %p243, %s242, 5
        %s245 = smul.addr %s244, 4
        %s246 = scalar_lea.vmem %s4, %s245
        %p247 = pneg %p155
        %p248 = pneg %p152
        %s249 = smul.u32 2, %s19
        %p250 = scmp.lt.s32.totalorder %s249, 5
        %s251 = scalar_select %p250, %s249, 5
        %s252 = smul.addr %s251, 4
        %s253 = scalar_lea.vmem %s0, %s252
        %s254 = smul.u32 2, %s19
        %s255 = smul.u32 2, %s19
        %p256 = scmp.lt.s32.totalorder %s255, 5
        %s257 = scalar_select %p256, %s255, 5
        %s258 = smul.addr %s257, 8
        %s259 = scalar_lea.vmem %s3, %s258
        %s260 = smul.u32 2, %s19
        %s261 = smul.u32 2, %s19
        %p262 = scmp.lt.s32.totalorder %s261, 5
        %s263 = scalar_select %p262, %s261, 5
        %s264 = smul.addr %s263, 4
        %s265 = scalar_lea.vmem %s4, %s264
        %s266 = smul.u32 2, %s19
        %p268 = scmp.eq.s32.totalorder %s19, 0
        // Predicated region
        $region41: #{dsmil_forward.3} parent=31 // pred_check
          %p269 = pneg %p268
        $region42: #{dsmil_forward.3} parent=31 // pred_check_branch
          %271 = sbr.rel (%p269) target = $region44
        $region43: #{dsmil_forward.3} parent=31 // pred_region
          %272 = vst [vmem:[#allocation2] sm:$0x1] -inf
          %273 = vst [vmem:[%s5] sm:$0xff] 0.0
          %274 = vst [vmem:[%s5 + $0x8] sm:$0xff] 0.0
          %275 = vst [vmem:[%s5 + $0x10] sm:$0xff] 0.0
          %276 = vst [vmem:[%s5 + $0x18] sm:$0xff] 0.0
          %277 = vst [vmem:[%s5 + $0x20] sm:$0xff] 0.0
          %278 = vst [vmem:[%s5 + $0x28] sm:$0xff] 0.0
          %279 = vst [vmem:[%s5 + $0x30] sm:$0xff] 0.0
          %280 = vst [vmem:[%s5 + $0x38] sm:$0xff] 0.0
          %281 = vst [vmem:[%s5 + $0x40] sm:$0xff] 0.0
          %282 = vst [vmem:[%s5 + $0x48] sm:$0xff] 0.0
          %283 = vst [vmem:[%s5 + $0x50] sm:$0xff] 0.0
          %284 = vst [vmem:[%s5 + $0x58] sm:$0xff] 0.0
          %285 = vst [vmem:[%s5 + $0x60] sm:$0xff] 0.0
          %286 = vst [vmem:[%s5 + $0x68] sm:$0xff] 0.0
          %287 = vst [vmem:[%s5 + $0x70] sm:$0xff] 0.0
          %288 = vst [vmem:[%s5 + $0x78] sm:$0xff] 0.0
        $region44: #{dsmil_forward.3} parent=31 // pred_fallthru
          _
        %v289 = vld [vmem:[%s253] sm:$0xf]
        %v290 = vld [vmem:[%s253 + $0x4] sm:$0xf]
        %v291 = vld [vmem:[#allocation3] sm:$0xff]
        %v292 = vld [vmem:[#allocation3 + $0x8] sm:$0xff]
        %v293 = vld [vmem:[#allocation3 + $0x10] sm:$0xff]
        %v294 = vld [vmem:[#allocation3 + $0x18] sm:$0xff]
        %v295 = vld [vmem:[#allocation3 + $0x20] sm:$0xff]
        %v296 = vld [vmem:[#allocation3 + $0x28] sm:$0xff]
        %v297 = vld [vmem:[#allocation3 + $0x30] sm:$0xff]
        %v298 = vld [vmem:[#allocation3 + $0x38] sm:$0xff]
        %v299 = vld [vmem:[#allocation3 + $0x40] sm:$0xff]
        %v300 = vld [vmem:[#allocation3 + $0x48] sm:$0xff]
        %v301 = vld [vmem:[#allocation3 + $0x50] sm:$0xff]
        %v302 = vld [vmem:[#allocation3 + $0x58] sm:$0xff]
        %v303 = vld [vmem:[#allocation3 + $0x60] sm:$0xff]
        %v304 = vld [vmem:[#allocation3 + $0x68] sm:$0xff]
        %v305 = vld [vmem:[#allocation3 + $0x70] sm:$0xff]
        %v306 = vld [vmem:[#allocation3 + $0x78] sm:$0xff]
        %v307 = vld [vmem:[#allocation5] sm:$0x3]
        %v309 = vlaneseq
        %v310 = vshrl.u32 %v309, 7
        %v311 = vsub.s32 0, %v310
        %v312 = vrot.slane %v307, %v311
        %v313 = vlaneseq
        %v314 = vshrl.u32 %v313, 7
        %v315 = vsub.s32 1, %v314
        %v316 = vrot.slane %v307, %v315
        %v321 = vunpack.c.l.b16 %v289
        %v322 = vunpack.c.l.b16 %v290
        %v323 = vpack.c.b16 %v322, %v321
        %v341 = vunpack.c.l.b16 %v291
        %v342 = vunpack.c.h.b16 %v291
        %v343 = vunpack.c.l.b16 %v292
        %v344 = vunpack.c.h.b16 %v292
        %v345 = vunpack.c.l.b16 %v293
        %v346 = vunpack.c.h.b16 %v293
        %v347 = vunpack.c.l.b16 %v294
        %v348 = vunpack.c.h.b16 %v294
        %v349 = vunpack.c.l.b16 %v295
        %v350 = vunpack.c.h.b16 %v295
        %v351 = vunpack.c.l.b16 %v296
        %v352 = vunpack.c.h.b16 %v296
        %v353 = vunpack.c.l.b16 %v297
        %v354 = vunpack.c.h.b16 %v297
        %v355 = vunpack.c.l.b16 %v298
        %v356 = vunpack.c.h.b16 %v298
        %v357 = vunpack.c.l.b16 %v299
        %v358 = vunpack.c.h.b16 %v299
        %v359 = vunpack.c.l.b16 %v300
        %v360 = vunpack.c.h.b16 %v300
        %v361 = vunpack.c.l.b16 %v301
        %v362 = vunpack.c.h.b16 %v301
        %v363 = vunpack.c.l.b16 %v302
        %v364 = vunpack.c.h.b16 %v302
        %v365 = vunpack.c.l.b16 %v303
        %v366 = vunpack.c.h.b16 %v303
        %v367 = vunpack.c.l.b16 %v304
        %v368 = vunpack.c.h.b16 %v304
        %v369 = vunpack.c.l.b16 %v305
        %v370 = vunpack.c.h.b16 %v305
        %v371 = vunpack.c.l.b16 %v306
        %v372 = vunpack.c.h.b16 %v306
        %v373 = vpack.c.b16 %v343, %v341
        %v374 = vpack.c.b16 %v344, %v342
        %v375 = vpack.c.b16 %v347, %v345
        %v376 = vpack.c.b16 %v348, %v346
        %v377 = vpack.c.b16 %v351, %v349
        %v378 = vpack.c.b16 %v352, %v350
        %v379 = vpack.c.b16 %v355, %v353
        %v380 = vpack.c.b16 %v356, %v354
        %v381 = vpack.c.b16 %v359, %v357
        %v382 = vpack.c.b16 %v360, %v358
        %v383 = vpack.c.b16 %v363, %v361
        %v384 = vpack.c.b16 %v364, %v362
        %v385 = vpack.c.b16 %v367, %v365
        %v386 = vpack.c.b16 %v368, %v366
        %v387 = vpack.c.b16 %v371, %v369
        %v388 = vpack.c.b16 %v372, %v370
        %405 = vmatprep.subr.bf16.mxu0 %v374
        %406 = vmatpush1.bf16.msra.mxu0 %v373
        %407 = vmatprep.subr.bf16.mxu0 %v376
        %408 = vmatpush1.bf16.msra.mxu0 %v375
        %409 = vmatprep.subr.bf16.mxu0 %v378
        %410 = vmatpush1.bf16.msra.mxu0 %v377
        %411 = vmatprep.subr.bf16.mxu0 %v380
        %412 = vmatpush1.bf16.msra.mxu0 %v379
        %413 = vmatprep.subr.bf16.mxu0 %v382
        %414 = vmatpush1.bf16.msra.mxu0 %v381
        %415 = vmatprep.subr.bf16.mxu0 %v384
        %416 = vmatpush1.bf16.msra.mxu0 %v383
        %417 = vmatprep.subr.bf16.mxu0 %v386
        %418 = vmatpush1.bf16.msra.mxu0 %v385
        %419 = vmatprep.subr.bf16.mxu0 %v388
        %420 = vmatpush1.bf16.msra.mxu0 %v387
        %421 = vmatprep.subr.bf16.mxu0 0
        %422 = vmatpush1.bf16.msra.mxu0 0
        %423 = vmatprep.subr.bf16.mxu0 0
        %424 = vmatpush1.bf16.msra.mxu0 0
        %425 = vmatprep.subr.bf16.mxu0 0
        %426 = vmatpush1.bf16.msra.mxu0 0
        %427 = vmatprep.subr.bf16.mxu0 0
        %428 = vmatpush1.bf16.msra.mxu0 0
        %429 = vmatprep.subr.bf16.mxu0 0
        %430 = vmatpush1.bf16.msra.mxu0 0
        %431 = vmatprep.subr.bf16.mxu0 0
        %432 = vmatpush1.bf16.msra.mxu0 0
        %433 = vmatprep.subr.bf16.mxu0 0
        %434 = vmatpush1.bf16.msra.mxu0 0
        %435 = vmatprep.subr.bf16.mxu0 0
        %436 = vmatpush1.bf16.msra.mxu0 0
        %437 = vmatprep.mubr.bf16.mxu0 0
        %438 = vmatmul.mubr.bf16.gmra.mrb[0].mxu0 %v323
        %v439 = vpop.f32.mrb[0].mxu0
        %v440 = vadd.f32 %v312, %v439
        %v441 = vpop.f32.mrb[0].mxu0
        %v442 = vadd.f32 %v316, %v441
        %v443 = vpop.f32.mrb[0].mxu0
        %v444 = vadd.f32 %v312, %v443
        %v445 = vpop.f32.mrb[0].mxu0
        %v446 = vadd.f32 %v316, %v445
        %447 = vdwg.mxu0
        %448 = vst [vmem:[%s259] sm:$0xff] %v440
        %449 = vst [vmem:[%s259 + $0x8] sm:$0xff] %v444
        %v450 = vpack.c.bf16 %v446, %v442
        %v452 = vunpack.c.l.b16 %v450
        %v453 = vunpack.c.h.b16 %v450
        %v454 = vpack.c.b16 %v452, %v452
        %v455 = vpack.c.b16 %v453, %v453
        %458 = vst [vmem:[%s265] sm:$0xf] %v454
        %459 = vst [vmem:[%s265 + $0x4] sm:$0xf] %v455
        %v460 = vlaneseq
        %v461 = vshrl.u32 %v460, 7
        %v462 = vadd.s32 %v461, 8
        %s463 = smul.u32 %s19, 16
        %v464 = vstv %s463
        %v465 = vadd.s32 %v464, %v461
        %v466 = vadd.s32 %v464, %v462
        %vm467 = vcmp.lt.s32.totalorder %v465, 40
        %vm468 = vcmp.lt.s32.totalorder %v466, 40
        %v469 = vsel %vm467, %v440, -inf
        %v470 = vsel %vm468, %v444, -inf
        %v471 = vmax.f32 %v469, %v470
        %v472 = vrot.slane %v471, 4
        %v473 = vmax.f32 %v471, %v472
        %v474 = vrot.slane %v473, 2
        %v475 = vmax.f32 %v473, %v474
        %v476 = vrot.slane %v475, 1
        %v477 = vmax.f32 %v475, %v476
        %vm478 = vcmp.eq.f32.partialorder %v469, %v477
        %vm479 = vcmp.eq.f32.partialorder %v470, %v477
        %v480 = vsel %vm478, %v461, 16
        %v481 = vsel %vm479, %v462, 16
        %vm482 = vcmp.lt.s32.totalorder %v480, %v481
        %v483 = vsel %vm482, %v480, %v481
        %v484 = vrot.slane %v483, 4
        %vm485 = vcmp.lt.s32.totalorder %v483, %v484
        %v486 = vsel %vm485, %v483, %v484
        %v487 = vrot.slane %v486, 2
        %vm488 = vcmp.lt.s32.totalorder %v486, %v487
        %v489 = vsel %vm488, %v486, %v487
        %v490 = vrot.slane %v489, 1
        %vm491 = vcmp.lt.s32.totalorder %v489, %v490
        %v492 = vsel %vm491, %v489, %v490
        %vm493 = vcmp.eq.s32.totalorder %v461, %v492
        %vm494 = vcmp.eq.s32.totalorder %v462, %v492
        %v495 = vsel %vm493, 1, 0
        %v496 = vsel %vm494, 1, 0
        %v497 = vcvt.s32.f32 %v495
        %v498 = vcvt.s32.f32 %v496
        %v499 = vpack.c.bf16 %v498, %v497
        %500 = vxpose.xlu0.c.b16.start [1/8] %v499, 128
        %501 = vxpose.xlu0.c.b16.cont [2/8] 0, 128
        %502 = vxpose.xlu0.c.b16.cont [3/8] 0, 128
        %503 = vxpose.xlu0.c.b16.cont [4/8] 0, 128
        %504 = vxpose.xlu0.c.b16.cont [5/8] 0, 128
        %505 = vxpose.xlu0.c.b16.cont [6/8] 0, 128
        %506 = vxpose.xlu0.c.b16.cont [7/8] 0, 128
        %507 = vxpose.xlu0.c.b16.end [8/8] 0, 128
        %v508 = vpop.trf.xlu0
        %v509 = vpop.trf.xlu0
        %v510 = vpop.trf.xlu0
        %v511 = vpop.trf.xlu0
        %v512 = vpop.trf.xlu0
        %v513 = vpop.trf.xlu0
        %v514 = vpop.trf.xlu0
        %v515 = vpop.trf.xlu0
        %vm516 = vcmask 130048
        %v518 = vsel %vm516, %v508, 0
        %v521 = vsel %vm516, %v509, 0
        %v524 = vsel %vm516, %v510, 0
        %v527 = vsel %vm516, %v511, 0
        %v530 = vsel %vm516, %v512, 0
        %v533 = vsel %vm516, %v513, 0
        %v536 = vsel %vm516, %v514, 0
        %v539 = vsel %vm516, %v515, 0
        %541 = vmatprep.subr.bf16.mxu0 0
        %542 = vmatpush1.bf16.msra.mxu0 %v450
        %543 = vmatprep.subr.bf16.mxu0 0
        %544 = vmatpush1.bf16.msra.mxu0 0
        %545 = vmatprep.subr.bf16.mxu0 0
        %546 = vmatpush1.bf16.msra.mxu0 0
        %547 = vmatprep.subr.bf16.mxu0 0
        %548 = vmatpush1.bf16.msra.mxu0 0
        %549 = vmatprep.subr.bf16.mxu0 0
        %550 = vmatpush1.bf16.msra.mxu0 0
        %551 = vmatprep.subr.bf16.mxu0 0
        %552 = vmatpush1.bf16.msra.mxu0 0
        %553 = vmatprep.subr.bf16.mxu0 0
        %554 = vmatpush1.bf16.msra.mxu0 0
        %555 = vmatprep.subr.bf16.mxu0 0
        %556 = vmatpush1.bf16.msra.mxu0 0
        %557 = vmatprep.subr.bf16.mxu0 0
        %558 = vmatpush1.bf16.msra.mxu0 0
        %559 = vmatprep.subr.bf16.mxu0 0
        %560 = vmatpush1.bf16.msra.mxu0 0
        %561 = vmatprep.subr.bf16.mxu0 0
        %562 = vmatpush1.bf16.msra.mxu0 0
        %563 = vmatprep.subr.bf16.mxu0 0
        %564 = vmatpush1.bf16.msra.mxu0 0
        %565 = vmatprep.subr.bf16.mxu0 0
        %566 = vmatpush1.bf16.msra.mxu0 0
        %567 = vmatprep.subr.bf16.mxu0 0
        %568 = vmatpush1.bf16.msra.mxu0 0
        %569 = vmatprep.subr.bf16.mxu0 0
        %570 = vmatpush1.bf16.msra.mxu0 0
        %571 = vmatprep.subr.bf16.mxu0 0
        %572 = vmatpush1.bf16.msra.mxu0 0
        %573 = vmatprep.mubr.bf16.mxu0 0
        %574 = vmatmul.mubr.bf16.gmra.mrb[0].mxu0 %v518
        %v575 = vpop.f32.mrb[0].mxu0
        %v576 = vadd.f32 0.0, %v575
        %v577 = vpop.f32.mrb[0].mxu0
        %v578 = vpop.f32.mrb[0].mxu0
        %v579 = vadd.f32 0.0, %v578
        %v580 = vpop.f32.mrb[0].mxu0
        %581 = vmatprep.mubr.bf16.mxu0 0
        %582 = vmatmul.mubr.bf16.gmra.mrb[0].mxu0 %v521
        %v583 = vpop.f32.mrb[0].mxu0
        %v584 = vadd.f32 0.0, %v583
        %v585 = vpop.f32.mrb[0].mxu0
        %v586 = vpop.f32.mrb[0].mxu0
        %v587 = vadd.f32 0.0, %v586
        %v588 = vpop.f32.mrb[0].mxu0
        %589 = vmatprep.mubr.bf16.mxu0 0
        %590 = vmatmul.mubr.bf16.gmra.mrb[0].mxu0 %v524
        %v591 = vpop.f32.mrb[0].mxu0
        %v592 = vadd.f32 0.0, %v591
        %v593 = vpop.f32.mrb[0].mxu0
        %v594 = vpop.f32.mrb[0].mxu0
        %v595 = vadd.f32 0.0, %v594
        %v596 = vpop.f32.mrb[0].mxu0
        %597 = vmatprep.mubr.bf16.mxu0 0
        %598 = vmatmul.mubr.bf16.gmra.mrb[0].mxu0 %v527
        %v599 = vpop.f32.mrb[0].mxu0
        %v600 = vadd.f32 0.0, %v599
        %v601 = vpop.f32.mrb[0].mxu0
        %v602 = vpop.f32.mrb[0].mxu0
        %v603 = vadd.f32 0.0, %v602
        %v604 = vpop.f32.mrb[0].mxu0
        %605 = vmatprep.mubr.bf16.mxu0 0
        %606 = vmatmul.mubr.bf16.gmra.mrb[0].mxu0 %v530
        %v607 = vpop.f32.mrb[0].mxu0
        %v608 = vadd.f32 0.0, %v607
        %v609 = vpop.f32.mrb[0].mxu0
        %v610 = vpop.f32.mrb[0].mxu0
        %v611 = vadd.f32 0.0, %v610
        %v612 = vpop.f32.mrb[0].mxu0
        %613 = vmatprep.mubr.bf16.mxu0 0
        %614 = vmatmul.mubr.bf16.gmra.mrb[0].mxu0 %v533
        %v615 = vpop.f32.mrb[0].mxu0
        %v616 = vadd.f32 0.0, %v615
        %v617 = vpop.f32.mrb[0].mxu0
        %v618 = vpop.f32.mrb[0].mxu0
        %v619 = vadd.f32 0.0, %v618
        %v620 = vpop.f32.mrb[0].mxu0
        %621 = vmatprep.mubr.bf16.mxu0 0
        %622 = vmatmul.mubr.bf16.gmra.mrb[0].mxu0 %v536
        %v623 = vpop.f32.mrb[0].mxu0
        %v624 = vadd.f32 0.0, %v623
        %v625 = vpop.f32.mrb[0].mxu0
        %v626 = vpop.f32.mrb[0].mxu0
        %v627 = vadd.f32 0.0, %v626
        %v628 = vpop.f32.mrb[0].mxu0
        %629 = vmatprep.mubr.bf16.mxu0 0
        %630 = vmatmul.mubr.bf16.gmra.mrb[0].mxu0 %v539
        %v631 = vpop.f32.mrb[0].mxu0
        %v632 = vadd.f32 0.0, %v631
        %v633 = vpop.f32.mrb[0].mxu0
        %v634 = vpop.f32.mrb[0].mxu0
        %v635 = vadd.f32 0.0, %v634
        %v636 = vpop.f32.mrb[0].mxu0
        %637 = vdwg.mxu0
        %v638 = vld [vmem:[#allocation2] sm:$0x1]
        %vm639 = vcmp.gt.f32.partialorder %v477, %v638
        %v640 = vsel %vm639, 1, 0
        %v641 = vcvt.s32.f32 %v640
        %v642 = vmax.f32 %v638, %v477
        %643 = vst [vmem:[#allocation2] sm:$0x1] %v642
        %v644 = vadd.s32 %v461, 16
        %v645 = vadd.s32 %v461, 24
        %v646 = vadd.s32 %v461, 32
        %v647 = vadd.s32 %v461, 40
        %v648 = vadd.s32 %v461, 48
        %v649 = vadd.s32 %v461, 56
        %v650 = vadd.s32 %v461, 64
        %v651 = vadd.s32 %v461, 72
        %v652 = vadd.s32 %v461, 80
        %v653 = vadd.s32 %v461, 88
        %v654 = vadd.s32 %v461, 96
        %v655 = vadd.s32 %v461, 104
        %v656 = vadd.s32 %v461, 112
        %v657 = vadd.s32 %v461, 120
        %v658 = vlaneseq
        %v659 = vand.u32 %v658, 127
        %vm660 = vcmp.eq.s32.totalorder %v461, %v659
        %vm661 = vcmp.eq.s32.totalorder %v462, %v659
        %vm662 = vcmp.eq.s32.totalorder %v644, %v659
        %vm663 = vcmp.eq.s32.totalorder %v645, %v659
        %vm664 = vcmp.eq.s32.totalorder %v646, %v659
        %vm665 = vcmp.eq.s32.totalorder %v647, %v659
        %vm666 = vcmp.eq.s32.totalorder %v648, %v659
        %vm667 = vcmp.eq.s32.totalorder %v649, %v659
        %vm668 = vcmp.eq.s32.totalorder %v650, %v659
        %vm669 = vcmp.eq.s32.totalorder %v651, %v659
        %vm670 = vcmp.eq.s32.totalorder %v652, %v659
        %vm671 = vcmp.eq.s32.totalorder %v653, %v659
        %vm672 = vcmp.eq.s32.totalorder %v654, %v659
        %vm673 = vcmp.eq.s32.totalorder %v655, %v659
        %vm674 = vcmp.eq.s32.totalorder %v656, %v659
        %vm675 = vcmp.eq.s32.totalorder %v657, %v659
        %v676 = vlaneseq
        %v677 = vshrl.u32 %v676, 7
        %v678 = vsub.s32 0, %v677
        %v679 = vrot.slane %v641, %v678
        %v680 = vsel %vm660, %v679, 0.0
        %v681 = vsel %vm661, %v679, 0.0
        %v682 = vsel %vm662, %v679, 0.0
        %v683 = vsel %vm663, %v679, 0.0
        %v684 = vsel %vm664, %v679, 0.0
        %v685 = vsel %vm665, %v679, 0.0
        %v686 = vsel %vm666, %v679, 0.0
        %v687 = vsel %vm667, %v679, 0.0
        %v688 = vsel %vm668, %v679, 0.0
        %v689 = vsel %vm669, %v679, 0.0
        %v690 = vsel %vm670, %v679, 0.0
        %v691 = vsel %vm671, %v679, 0.0
        %v692 = vsel %vm672, %v679, 0.0
        %v693 = vsel %vm673, %v679, 0.0
        %v694 = vsel %vm674, %v679, 0.0
        %v695 = vsel %vm675, %v679, 0.0
        %696 = vadd.xlane.f32.xlu0 %v680
        %v697 = vpop.xlane.xlu0 %696
        %698 = vadd.xlane.f32.xlu0 %v681
        %v699 = vpop.xlane.xlu0 %698
        %700 = vadd.xlane.f32.xlu0 %v682
        %v701 = vpop.xlane.xlu0 %700
        %702 = vadd.xlane.f32.xlu0 %v683
        %v703 = vpop.xlane.xlu0 %702
        %704 = vadd.xlane.f32.xlu0 %v684
        %v705 = vpop.xlane.xlu0 %704
        %706 = vadd.xlane.f32.xlu0 %v685
        %v707 = vpop.xlane.xlu0 %706
        %708 = vadd.xlane.f32.xlu0 %v686
        %v709 = vpop.xlane.xlu0 %708
        %710 = vadd.xlane.f32.xlu0 %v687
        %v711 = vpop.xlane.xlu0 %710
        %712 = vadd.xlane.f32.xlu0 %v688
        %v713 = vpop.xlane.xlu0 %712
        %714 = vadd.xlane.f32.xlu0 %v689
        %v715 = vpop.xlane.xlu0 %714
        %716 = vadd.xlane.f32.xlu0 %v690
        %v717 = vpop.xlane.xlu0 %716
        %718 = vadd.xlane.f32.xlu0 %v691
        %v719 = vpop.xlane.xlu0 %718
        %720 = vadd.xlane.f32.xlu0 %v692
        %v721 = vpop.xlane.xlu0 %720
        %722 = vadd.xlane.f32.xlu0 %v693
        %v723 = vpop.xlane.xlu0 %722
        %724 = vadd.xlane.f32.xlu0 %v694
        %v725 = vpop.xlane.xlu0 %724
        %726 = vadd.xlane.f32.xlu0 %v695
        %v727 = vpop.xlane.xlu0 %726
        %v728 = vld [vmem:[%s5] sm:$0xff]
        %v729 = vld [vmem:[%s5 + $0x8] sm:$0xff]
        %v730 = vld [vmem:[%s5 + $0x10] sm:$0xff]
        %v731 = vld [vmem:[%s5 + $0x18] sm:$0xff]
        %v732 = vld [vmem:[%s5 + $0x20] sm:$0xff]
        %v733 = vld [vmem:[%s5 + $0x28] sm:$0xff]
        %v734 = vld [vmem:[%s5 + $0x30] sm:$0xff]
        %v735 = vld [vmem:[%s5 + $0x38] sm:$0xff]
        %v736 = vld [vmem:[%s5 + $0x40] sm:$0xff]
        %v737 = vld [vmem:[%s5 + $0x48] sm:$0xff]
        %v738 = vld [vmem:[%s5 + $0x50] sm:$0xff]
        %v739 = vld [vmem:[%s5 + $0x58] sm:$0xff]
        %v740 = vld [vmem:[%s5 + $0x60] sm:$0xff]
        %v741 = vld [vmem:[%s5 + $0x68] sm:$0xff]
        %v742 = vld [vmem:[%s5 + $0x70] sm:$0xff]
        %v743 = vld [vmem:[%s5 + $0x78] sm:$0xff]
        %v744 = vsub.f32 1.0, %v697
        %v745 = vsub.f32 1.0, %v699
        %v746 = vsub.f32 1.0, %v701
        %v747 = vsub.f32 1.0, %v703
        %v748 = vsub.f32 1.0, %v705
        %v749 = vsub.f32 1.0, %v707
        %v750 = vsub.f32 1.0, %v709
        %v751 = vsub.f32 1.0, %v711
        %v752 = vsub.f32 1.0, %v713
        %v753 = vsub.f32 1.0, %v715
        %v754 = vsub.f32 1.0, %v717
        %v755 = vsub.f32 1.0, %v719
        %v756 = vsub.f32 1.0, %v721
        %v757 = vsub.f32 1.0, %v723
        %v758 = vsub.f32 1.0, %v725
        %v759 = vsub.f32 1.0, %v727
        %v760 = vmul.f32 %v728, %v744
        %v761 = vmul.f32 %v729, %v745
        %v762 = vmul.f32 %v730, %v746
        %v763 = vmul.f32 %v731, %v747
        %v764 = vmul.f32 %v732, %v748
        %v765 = vmul.f32 %v733, %v749
        %v766 = vmul.f32 %v734, %v750
        %v767 = vmul.f32 %v735, %v751
        %v768 = vmul.f32 %v736, %v752
        %v769 = vmul.f32 %v737, %v753
        %v770 = vmul.f32 %v738, %v754
        %v771 = vmul.f32 %v739, %v755
        %v772 = vmul.f32 %v740, %v756
        %v773 = vmul.f32 %v741, %v757
        %v774 = vmul.f32 %v742, %v758
        %v775 = vmul.f32 %v743, %v759
        %v776 = vmul.f32 %v576, %v697
        %v777 = vmul.f32 %v579, %v699
        %v778 = vmul.f32 %v584, %v701
        %v779 = vmul.f32 %v587, %v703
        %v780 = vmul.f32 %v592, %v705
        %v781 = vmul.f32 %v595, %v707
        %v782 = vmul.f32 %v600, %v709
        %v783 = vmul.f32 %v603, %v711
        %v784 = vmul.f32 %v608, %v713
        %v785 = vmul.f32 %v611, %v715
        %v786 = vmul.f32 %v616, %v717
        %v787 = vmul.f32 %v619, %v719
        %v788 = vmul.f32 %v624, %v721
        %v789 = vmul.f32 %v627, %v723
        %v790 = vmul.f32 %v632, %v725
        %v791 = vmul.f32 %v635, %v727
        %v792 = vadd.f32 %v760, %v776
        %v793 = vadd.f32 %v761, %v777
        %v794 = vadd.f32 %v762, %v778
        %v795 = vadd.f32 %v763, %v779
        %v796 = vadd.f32 %v764, %v780
        %v797 = vadd.f32 %v765, %v781
        %v798 = vadd.f32 %v766, %v782
        %v799 = vadd.f32 %v767, %v783
        %v800 = vadd.f32 %v768, %v784
        %v801 = vadd.f32 %v769, %v785
        %v802 = vadd.f32 %v770, %v786
        %v803 = vadd.f32 %v771, %v787
        %v804 = vadd.f32 %v772, %v788
        %v805 = vadd.f32 %v773, %v789
        %v806 = vadd.f32 %v774, %v790
        %v807 = vadd.f32 %v775, %v791
        %808 = vst [vmem:[%s5] sm:$0xff] %v792
        %809 = vst [vmem:[%s5 + $0x8] sm:$0xff] %v793
        %810 = vst [vmem:[%s5 + $0x10] sm:$0xff] %v794
        %811 = vst [vmem:[%s5 + $0x18] sm:$0xff] %v795
        %812 = vst [vmem:[%s5 + $0x20] sm:$0xff] %v796
        %813 = vst [vmem:[%s5 + $0x28] sm:$0xff] %v797
        %814 = vst [vmem:[%s5 + $0x30] sm:$0xff] %v798
        %815 = vst [vmem:[%s5 + $0x38] sm:$0xff] %v799
        %816 = vst [vmem:[%s5 + $0x40] sm:$0xff] %v800
        %817 = vst [vmem:[%s5 + $0x48] sm:$0xff] %v801
        %818 = vst [vmem:[%s5 + $0x50] sm:$0xff] %v802
        %819 = vst [vmem:[%s5 + $0x58] sm:$0xff] %v803
        %820 = vst [vmem:[%s5 + $0x60] sm:$0xff] %v804
        %821 = vst [vmem:[%s5 + $0x68] sm:$0xff] %v805
        %822 = vst [vmem:[%s5 + $0x70] sm:$0xff] %v806
        %823 = vst [vmem:[%s5 + $0x78] sm:$0xff] %v807
        %s824 = smul.u32 2, %s19
        %p825 = scmp.lt.s32.totalorder %s824, 5
        %s826 = scalar_select %p825, %s824, 5
        %s827 = smul.addr %s826, 8
        %s828 = scalar_lea.vmem %s3, %s827
        %s829 = smul.u32 2, %s19
        %p830 = scmp.lt.s32.totalorder %s829, 5
        %s831 = scalar_select %p830, %s829, 5
        %s832 = smul.addr %s831, 4
        %s833 = scalar_lea.vmem %s4, %s832
        // Predicated region
        $region45: #{dsmil_forward.3} parent=31 // pred_check
          %p834 = pneg %p105
        $region46: #{dsmil_forward.3} parent=31 // pred_check_branch
          %836 = sbr.rel (%p834) target = $region48
        $region47: #{dsmil_forward.3} parent=31 // pred_region
          %s837 = smul.u32 2, %s19
        $region48: #{dsmil_forward.3} parent=31 // pred_fallthru
          _
        // Predicated region
        $region49: #{dsmil_forward.3} parent=31 // pred_check
          %p838 = pneg %p131
        $region50: #{dsmil_forward.3} parent=31 // pred_check_branch
          %840 = sbr.rel (%p838) target = $region52
        $region51: #{dsmil_forward.3} parent=31 // pred_region
          %s841 = smul.u32 2, %s19
        $region52: #{dsmil_forward.3} parent=31 // pred_fallthru
          _
        // Predicated region
        $region53: #{dsmil_forward.3} parent=31 // pred_check
          %p842 = pneg %p152
        $region54: #{dsmil_forward.3} parent=31 // pred_check_branch
          %844 = sbr.rel (%p842) target = $region56
        $region55: #{dsmil_forward.3} parent=31 // pred_region
          _
        $region56: #{dsmil_forward.3} parent=31 // pred_fallthru
          _
        // Predicated region
        $region57: #{dsmil_forward.3} parent=31 // pred_check
          %p845 = pneg %p152
        $region58: #{dsmil_forward.3} parent=31 // pred_check_branch
          %847 = sbr.rel (%p845) target = $region60
        $region59: #{dsmil_forward.3} parent=31 // pred_region
          _
        $region60: #{dsmil_forward.3} parent=31 // pred_fallthru
          _
      $region32: #{dsmil_forward.3} parent=5 // pred_fallthru
        _
      %p848 = scmp.le.s32.totalorder 2, %s14
      // Predicated region
      $region61: #{dsmil_forward.3} parent=5 // pred_check
        %p849 = pneg %p848
      $region62: #{dsmil_forward.3} parent=5 // pred_check_branch
        %851 = sbr.rel (%p849) target = $region64
      $region63: #{dsmil_forward.3} parent=5 // pred_region
        %s852 = ssub.s32 %s14, 2
        // Predicated region
        $region65: #{dsmil_forward.3} parent=63 // pred_check
          %p853 = pneg %p111
        $region66: #{dsmil_forward.3} parent=63 // pred_check_branch
          %855 = sbr.rel (%p853) target = $region68
        $region67: #{dsmil_forward.3} parent=63 // pred_region
          %s856 = smul.u32 2, %s20
          %p857 = scmp.lt.s32.totalorder %s856, 5
          %s858 = scalar_select %p857, %s856, 5
          %s859 = smul.addr %s858, 8
          %s860 = scalar_lea.vmem %s3, %s859
        $region68: #{dsmil_forward.3} parent=63 // pred_fallthru
          _
        // Predicated region
        $region69: #{dsmil_forward.3} parent=63 // pred_check
          %p861 = pneg %p137
        $region70: #{dsmil_forward.3} parent=63 // pred_check_branch
          %863 = sbr.rel (%p861) target = $region72
        $region71: #{dsmil_forward.3} parent=63 // pred_region
          %s864 = smul.u32 2, %s20
          %p865 = scmp.lt.s32.totalorder %s864, 5
          %s866 = scalar_select %p865, %s864, 5
          %s867 = smul.addr %s866, 4
          %s868 = scalar_lea.vmem %s4, %s867
        $region72: #{dsmil_forward.3} parent=63 // pred_fallthru
          _
      $region64: #{dsmil_forward.3} parent=5 // pred_fallthru
        _
    $region6: #{dsmil_forward.3} parent=1 // loop_footer
      %s18 = sadd.s32 1, %s14
    $region7: #{dsmil_forward.3} parent=1 // loop_footer_branch
      %13 = sbr.rel target = $region3
    $region8: #{dsmil_forward.3} parent=1 // loop_exit
      _
    %869 = vsyncpa [#allocation4], 1
    %s870 = scalar_lea.sflag [#allocation4], 1
    %871 = vsyncpa %s870, 1
    %872 = vsyncpa [#allocation6], 1

// kernel: dsmil_forward.4
$region0: #{dsmil_forward.4}
  #allocation0 [shape = 'u32[]', space=smem, size = 0x4, offset = 0x4, fixed_abs, tag = 'smem constant byte address 0x4 - core index']
  #allocation1 [shape = 'u32[144,128]{1,0:T(1,128)}', space=vmem, size = 0x12000, scoped, tag = 'internal scratch']
  %s0 = inlined_call_operand.vmem [shape: bf16[48,128], index: 0, kind: input, shape index: {}]
  %s1 = inlined_call_operand.vmem [shape: bf16[48,128], index: 1, kind: input, shape index: {}]
  %s2 = inlined_call_operand.vmem [shape: f32[128,128], index: 2, kind: input, shape index: {}]
  %s3 = inlined_call_operand.vmem [shape: bf16[4,128,128], index: 3, kind: input, shape index: {}]
  %s4 = inlined_call_operand.vmem [shape: f32[1,128], index: 4, kind: input, shape index: {}]
  %s5 = inlined_call_operand.hbm [shape: f32[1,128], index: 5, kind: output, shape index: {0}]
  %s6 = inlined_call_operand.vmem [shape: f32[128,128], index: 6, kind: output, shape index: {1}]
  %s7 = inlined_call_operand.vmem [shape: f32[128,1], index: 7, kind: output, shape index: {2}]
  %s8 = inlined_call_operand.vmem [shape: f32[128,1], index: 8, kind: output, shape index: {3}]
  %9 = xla_tuple %s5, %s6, %s7, %s8
  %s10 = sld [smem:[#allocation0]]
  $region85: #{dsmil_forward.4} parent=0
    _
  %s12 = ssub.s32 1, %s10
  %s13 = scalar_select 0, %s12, %s10
  $region1: #{dsmil_forward.4} parent=0
    #allocation2 [shape = 'u8[512]{0}', space=vmem, size = 0x400, scoped, tag = 'output window, operand 0, single buffered']
    #allocation3 [shape = 's32[2]{0}', space=sflag, size = 0x8, scoped, tag = 'scoped memory for dsmil_forward.4']
    %14 = vsyncpa [#allocation3], 0
    loop: start=0, step=1, limit=5
    $region2: #{dsmil_forward.4} parent=1 // loop_pre_header
      _
    $region3: #{dsmil_forward.4} parent=1 // loop_header
      %s16 = sphi 0, %s20
      %p17 = scmp.ge.s32.totalorder %s16, 5
      %s26 = sphi 0, %s28
      %s29 = sphi 0, %s26
      %s30 = sphi 0, %s29
      %s46 = sphi 0, %s30
      %s52 = sphi 0, %s54
      %s55 = sphi 0, %s52
      %s56 = sphi 0, %s55
      %s72 = sphi 0, %s56
      %s76 = sphi 0, %s76
      %s78 = sphi 0, %s76
      %s79 = sphi 0, %s78
      %s93 = sphi 0, %s79
      %s97 = sphi 0, %s97
      %s99 = sphi 0, %s97
      %s100 = sphi 0, %s99
      %s114 = sphi 0, %s100
      %s118 = sphi 0, %s118
      %s120 = sphi 0, %s118
      %s121 = sphi 0, %s120
      %s135 = sphi 0, %s121
      %s139 = sphi 0, %s139
      %s141 = sphi 0, %s139
      %s142 = sphi 0, %s141
      %s156 = sphi 0, %s142
      %s160 = sphi 0, %s160
      %s162 = sphi 0, %s160
      %s163 = sphi 0, %s162
      %s177 = sphi 0, %s163
      %s181 = sphi 0, %s181
      %s183 = sphi 0, %s181
      %s184 = sphi 0, %s183
      %s198 = sphi 0, %s184
      %s202 = sphi 0, %s202
      %s204 = sphi 0, %s202
      %s205 = sphi 0, %s204
      %s219 = sphi 0, %s205
    $region4: #{dsmil_forward.4} parent=1 // loop_header_branch
      %19 = sbr.rel (%p17) target = $region8
    $region5: #{dsmil_forward.4} parent=1 // loop_body
      %s21 = ssub.s32 %s16, 1
      %s22 = ssub.s32 %s16, 2
      %s23 = sadd.s32 %s16, 1
      %s24 = ssub.s32 %s16, %s23
      %p25 = scmp.eq.s32.totalorder %s24, 0
      %s27 = sadd.s32 %s26, 1
      %s28 = scalar_select %p25, %s26, %s27
      %p31 = pneg %p25
      %p32 = scmp.eq.s32.totalorder %s16, 2
      %p33 = por %p31, %p32
      %p34 = scmp.ne.s32.totalorder %s26, %s29
      %p35 = scmp.eq.s32.totalorder %s16, 0
      %p36 = por %p34, %p35
      %p37 = scmp.ne.s32.totalorder %s26, %s29
      %p38 = scmp.eq.s32.totalorder %s21, 2
      %p39 = por %p37, %p38
      %p40 = scmp.ne.s32.totalorder %s29, %s30
      %p41 = scmp.eq.s32.totalorder %s21, 0
      %p42 = por %p40, %p41
      %p43 = scmp.ne.s32.totalorder %s29, %s30
      %p44 = scmp.eq.s32.totalorder %s22, 2
      %p45 = por %p43, %p44
      %p47 = scmp.ne.s32.totalorder %s30, %s46
      %p48 = scmp.eq.s32.totalorder %s22, 0
      %p49 = por %p47, %p48
      %s50 = ssub.s32 %s16, %s23
      %p51 = scmp.eq.s32.totalorder %s50, 0
      %s53 = sadd.s32 %s52, 1
      %s54 = scalar_select %p51, %s52, %s53
      %p57 = pneg %p51
      %p58 = scmp.eq.s32.totalorder %s16, 2
      %p59 = por %p57, %p58
      %p60 = scmp.ne.s32.totalorder %s52, %s55
      %p61 = scmp.eq.s32.totalorder %s16, 0
      %p62 = por %p60, %p61
      %p63 = scmp.ne.s32.totalorder %s52, %s55
      %p64 = scmp.eq.s32.totalorder %s21, 2
      %p65 = por %p63, %p64
      %p66 = scmp.ne.s32.totalorder %s55, %s56
      %p67 = scmp.eq.s32.totalorder %s21, 0
      %p68 = por %p66, %p67
      %p69 = scmp.ne.s32.totalorder %s55, %s56
      %p70 = scmp.eq.s32.totalorder %s22, 2
      %p71 = por %p69, %p70
      %p73 = scmp.ne.s32.totalorder %s56, %s72
      %p74 = scmp.eq.s32.totalorder %s22, 0
      %p75 = por %p73, %p74
      %s77 = sadd.s32 %s76, 1
      %p80 = scmp.eq.s32.totalorder %s16, 2
      %p81 = scmp.ne.s32.totalorder %s76, %s78
      %p82 = scmp.eq.s32.totalorder %s16, 0
      %p83 = por %p81, %p82
      %p84 = scmp.ne.s32.totalorder %s76, %s78
      %p85 = scmp.eq.s32.totalorder %s21, 2
      %p86 = por %p84, %p85
      %p87 = scmp.ne.s32.totalorder %s78, %s79
      %p88 = scmp.eq.s32.totalorder %s21, 0
      %p89 = por %p87, %p88
      %p90 = scmp.ne.s32.totalorder %s78, %s79
      %p91 = scmp.eq.s32.totalorder %s22, 2
      %p92 = por %p90, %p91
      %p94 = scmp.ne.s32.totalorder %s79, %s93
      %p95 = scmp.eq.s32.totalorder %s22, 0
      %p96 = por %p94, %p95
      %s98 = sadd.s32 %s97, 1
      %p101 = scmp.eq.s32.totalorder %s16, 2
      %p102 = scmp.ne.s32.totalorder %s97, %s99
      %p103 = scmp.eq.s32.totalorder %s16, 0
      %p104 = por %p102, %p103
      %p105 = scmp.ne.s32.totalorder %s97, %s99
      %p106 = scmp.eq.s32.totalorder %s21, 2
      %p107 = por %p105, %p106
      %p108 = scmp.ne.s32.totalorder %s99, %s100
      %p109 = scmp.eq.s32.totalorder %s21, 0
      %p110 = por %p108, %p109
      %p111 = scmp.ne.s32.totalorder %s99, %s100
      %p112 = scmp.eq.s32.totalorder %s22, 2
      %p113 = por %p111, %p112
      %p115 = scmp.ne.s32.totalorder %s100, %s114
      %p116 = scmp.eq.s32.totalorder %s22, 0
      %p117 = por %p115, %p116
      %s119 = sadd.s32 %s118, 1
      %p122 = scmp.eq.s32.totalorder %s16, 2
      %p123 = scmp.ne.s32.totalorder %s118, %s120
      %p124 = scmp.eq.s32.totalorder %s16, 0
      %p125 = por %p123, %p124
      %p126 = scmp.ne.s32.totalorder %s118, %s120
      %p127 = scmp.eq.s32.totalorder %s21, 2
      %p128 = por %p126, %p127
      %p129 = scmp.ne.s32.totalorder %s120, %s121
      %p130 = scmp.eq.s32.totalorder %s21, 0
      %p131 = por %p129, %p130
      %p132 = scmp.ne.s32.totalorder %s120, %s121
      %p133 = scmp.eq.s32.totalorder %s22, 2
      %p134 = por %p132, %p133
      %p136 = scmp.ne.s32.totalorder %s121, %s135
      %p137 = scmp.eq.s32.totalorder %s22, 0
      %p138 = por %p136, %p137
      %s140 = sadd.s32 %s139, 1
      %p143 = scmp.eq.s32.totalorder %s16, 2
      %p144 = scmp.ne.s32.totalorder %s139, %s141
      %p145 = scmp.eq.s32.totalorder %s16, 0
      %p146 = por %p144, %p145
      %p147 = scmp.ne.s32.totalorder %s139, %s141
      %p148 = scmp.eq.s32.totalorder %s21, 2
      %p149 = por %p147, %p148
      %p150 = scmp.ne.s32.totalorder %s141, %s142
      %p151 = scmp.eq.s32.totalorder %s21, 0
      %p152 = por %p150, %p151
      %p153 = scmp.ne.s32.totalorder %s141, %s142
      %p154 = scmp.eq.s32.totalorder %s22, 2
      %p155 = por %p153, %p154
      %p157 = scmp.ne.s32.totalorder %s142, %s156
      %p158 = scmp.eq.s32.totalorder %s22, 0
      %p159 = por %p157, %p158
      %s161 = sadd.s32 %s160, 1
      %p164 = scmp.eq.s32.totalorder %s16, 2
      %p165 = scmp.ne.s32.totalorder %s160, %s162
      %p166 = scmp.eq.s32.totalorder %s16, 0
      %p167 = por %p165, %p166
      %p168 = scmp.ne.s32.totalorder %s160, %s162
      %p169 = scmp.eq.s32.totalorder %s21, 2
      %p170 = por %p168, %p169
      %p171 = scmp.ne.s32.totalorder %s162, %s163
      %p172 = scmp.eq.s32.totalorder %s21, 0
      %p173 = por %p171, %p172
      %p174 = scmp.ne.s32.totalorder %s162, %s163
      %p175 = scmp.eq.s32.totalorder %s22, 2
      %p176 = por %p174, %p175
      %p178 = scmp.ne.s32.totalorder %s163, %s177
      %p179 = scmp.eq.s32.totalorder %s22, 0
      %p180 = por %p178, %p179
      %s182 = sadd.s32 %s181, 1
      %p185 = scmp.eq.s32.totalorder %s16, 2
      %p186 = scmp.ne.s32.totalorder %s181, %s183
      %p187 = scmp.eq.s32.totalorder %s16, 0
      %p188 = por %p186, %p187
      %p189 = scmp.ne.s32.totalorder %s181, %s183
      %p190 = scmp.eq.s32.totalorder %s21, 2
      %p191 = por %p189, %p190
      %p192 = scmp.ne.s32.totalorder %s183, %s184
      %p193 = scmp.eq.s32.totalorder %s21, 0
      %p194 = por %p192, %p193
      %p195 = scmp.ne.s32.totalorder %s183, %s184
      %p196 = scmp.eq.s32.totalorder %s22, 2
      %p197 = por %p195, %p196
      %p199 = scmp.ne.s32.totalorder %s184, %s198
      %p200 = scmp.eq.s32.totalorder %s22, 0
      %p201 = por %p199, %p200
      %s203 = sadd.s32 %s202, 1
      %p206 = scmp.eq.s32.totalorder %s16, 2
      %p207 = scmp.ne.s32.totalorder %s202, %s204
      %p208 = scmp.eq.s32.totalorder %s16, 0
      %p209 = por %p207, %p208
      %p210 = scmp.ne.s32.totalorder %s202, %s204
      %p211 = scmp.eq.s32.totalorder %s21, 2
      %p212 = por %p210, %p211
      %p213 = scmp.ne.s32.totalorder %s204, %s205
      %p214 = scmp.eq.s32.totalorder %s21, 0
      %p215 = por %p213, %p214
      %p216 = scmp.ne.s32.totalorder %s204, %s205
      %p217 = scmp.eq.s32.totalorder %s22, 2
      %p218 = por %p216, %p217
      %p220 = scmp.ne.s32.totalorder %s205, %s219
      %p221 = scmp.eq.s32.totalorder %s22, 0
      %p222 = por %p220, %p221
      %p223 = scmp.le.s32.totalorder 1, %s16
      %p224 = scmp.lt.s32.totalorder %s16, 4
      %p225 = pnand %p223, %p224
      %p226 = pneg %p225
      // Predicated region
      $region9: #{dsmil_forward.4} parent=5 // pred_check
        _
      $region10: #{dsmil_forward.4} parent=5 // pred_check_branch
        %228 = sbr.rel (%p225) target = $region12
      $region11: #{dsmil_forward.4} parent=5 // pred_region
        %s229 = ssub.s32 %s16, 1
        // Predicated region
        $region13: #{dsmil_forward.4} parent=11 // pred_check
          %p230 = pneg %p89
        $region14: #{dsmil_forward.4} parent=11 // pred_check_branch
          %232 = sbr.rel (%p230) target = $region16
        $region15: #{dsmil_forward.4} parent=11 // pred_region
          _
        $region16: #{dsmil_forward.4} parent=11 // pred_fallthru
          _
        // Predicated region
        $region17: #{dsmil_forward.4} parent=11 // pred_check
          %p233 = pneg %p110
        $region18: #{dsmil_forward.4} parent=11 // pred_check_branch
          %235 = sbr.rel (%p233) target = $region20
        $region19: #{dsmil_forward.4} parent=11 // pred_region
          _
        $region20: #{dsmil_forward.4} parent=11 // pred_fallthru
          _
        // Predicated region
        $region21: #{dsmil_forward.4} parent=11 // pred_check
          %p236 = pneg %p131
        $region22: #{dsmil_forward.4} parent=11 // pred_check_branch
          %238 = sbr.rel (%p236) target = $region24
        $region23: #{dsmil_forward.4} parent=11 // pred_region
          _
        $region24: #{dsmil_forward.4} parent=11 // pred_fallthru
          _
      $region12: #{dsmil_forward.4} parent=5 // pred_fallthru
        _
      %p239 = scmp.lt.s32.totalorder %s16, 3
      // Predicated region
      $region25: #{dsmil_forward.4} parent=5 // pred_check
        %p240 = pneg %p239
      $region26: #{dsmil_forward.4} parent=5 // pred_check_branch
        %242 = sbr.rel (%p240) target = $region28
      $region27: #{dsmil_forward.4} parent=5 // pred_region
        // Predicated region
        $region29: #{dsmil_forward.4} parent=27 // pred_check
          %p243 = pneg %p36
        $region30: #{dsmil_forward.4} parent=27 // pred_check_branch
          %245 = sbr.rel (%p243) target = $region32
        $region31: #{dsmil_forward.4} parent=27 // pred_region
          %s246 = smul.u32 2, %s16
          %p247 = scmp.lt.s32.totalorder %s246, 5
          %s248 = scalar_select %p247, %s246, 5
          %s249 = smul.addr %s248, 4
          %s250 = scalar_lea.vmem %s0, %s249
          %s251 = smul.u32 2, %s16
        $region32: #{dsmil_forward.4} parent=27 // pred_fallthru
          _
        // Predicated region
        $region33: #{dsmil_forward.4} parent=27 // pred_check
          %p252 = pneg %p62
        $region34: #{dsmil_forward.4} parent=27 // pred_check_branch
          %254 = sbr.rel (%p252) target = $region36
        $region35: #{dsmil_forward.4} parent=27 // pred_region
          %s255 = smul.u32 2, %s16
          %p256 = scmp.lt.s32.totalorder %s255, 5
          %s257 = scalar_select %p256, %s255, 5
          %s258 = smul.addr %s257, 4
          %s259 = scalar_lea.vmem %s1, %s258
          %s260 = smul.u32 2, %s16
        $region36: #{dsmil_forward.4} parent=27 // pred_fallthru
          _
      $region28: #{dsmil_forward.4} parent=5 // pred_fallthru
        _
      %p261 = scmp.le.s32.totalorder 1, %s16
      %p262 = scmp.lt.s32.totalorder %s16, 4
      %p263 = pnand %p261, %p262
      %p264 = pneg %p263
      // Predicated region
      $region37: #{dsmil_forward.4} parent=5 // pred_check
        _
      $region38: #{dsmil_forward.4} parent=5 // pred_check_branch
        %266 = sbr.rel (%p263) target = $region40
      $region39: #{dsmil_forward.4} parent=5 // pred_region
        %s267 = ssub.s32 %s16, 1
        %s268 = smul.u32 2, %s21
        %p269 = scmp.lt.s32.totalorder %s268, 5
        %s270 = scalar_select %p269, %s268, 5
        %s271 = smul.addr %s270, 4
        %s272 = scalar_lea.vmem %s0, %s271
        %p273 = pneg %p42
        %p274 = pneg %p39
        %s275 = smul.u32 2, %s21
        %p276 = scmp.lt.s32.totalorder %s275, 5
        %s277 = scalar_select %p276, %s275, 5
        %s278 = smul.addr %s277, 4
        %s279 = scalar_lea.vmem %s1, %s278
        %p280 = pneg %p68
        %p281 = pneg %p65
        %p282 = pneg %p89
        %p283 = pneg %p86
        %p284 = pneg %p110
        %p285 = pneg %p107
        %p286 = pneg %p131
        %p287 = pneg %p128
        %p288 = pneg %p152
        %p289 = pneg %p149
        %p290 = pneg %p173
        %p291 = pneg %p170
        %p292 = pneg %p194
        %p293 = pneg %p191
        %p294 = pneg %p215
        %p295 = pneg %p212
        %s296 = smul.u32 2, %s21
        %p297 = scmp.lt.s32.totalorder %s296, 5
        %s298 = scalar_select %p297, %s296, 5
        %s299 = smul.addr %s298, 4
        %s300 = scalar_lea.vmem %s0, %s299
        %s301 = smul.u32 2, %s21
        %s302 = smul.u32 2, %s21
        %p303 = scmp.lt.s32.totalorder %s302, 5
        %s304 = scalar_select %p303, %s302, 5
        %s305 = smul.addr %s304, 4
        %s306 = scalar_lea.vmem %s1, %s305
        %s307 = smul.u32 2, %s21
        %p309 = scmp.eq.s32.totalorder %s21, 0
        // Predicated region
        $region41: #{dsmil_forward.4} parent=39 // pred_check
          %p310 = pneg %p309
        $region42: #{dsmil_forward.4} parent=39 // pred_check_branch
          %312 = sbr.rel (%p310) target = $region44
        $region43: #{dsmil_forward.4} parent=39 // pred_region
          %vm313 = vcmask 7168
          %314 = vst.msk [vmem:[%s7] sm:$0xff] %vm313, -inf
          %315 = vst.msk [vmem:[%s7 + $0x8] sm:$0xff] %vm313, -inf
          %316 = vst.msk [vmem:[%s7 + $0x10] sm:$0xff] %vm313, -inf
          %317 = vst.msk [vmem:[%s7 + $0x18] sm:$0xff] %vm313, -inf
          %318 = vst.msk [vmem:[%s7 + $0x20] sm:$0xff] %vm313, -inf
          %319 = vst.msk [vmem:[%s7 + $0x28] sm:$0xff] %vm313, -inf
          %320 = vst.msk [vmem:[%s7 + $0x30] sm:$0xff] %vm313, -inf
          %321 = vst.msk [vmem:[%s7 + $0x38] sm:$0xff] %vm313, -inf
          %322 = vst.msk [vmem:[%s7 + $0x40] sm:$0xff] %vm313, -inf
          %323 = vst.msk [vmem:[%s7 + $0x48] sm:$0xff] %vm313, -inf
          %324 = vst.msk [vmem:[%s7 + $0x50] sm:$0xff] %vm313, -inf
          %325 = vst.msk [vmem:[%s7 + $0x58] sm:$0xff] %vm313, -inf
          %326 = vst.msk [vmem:[%s7 + $0x60] sm:$0xff] %vm313, -inf
          %327 = vst.msk [vmem:[%s7 + $0x68] sm:$0xff] %vm313, -inf
          %328 = vst.msk [vmem:[%s7 + $0x70] sm:$0xff] %vm313, -inf
          %329 = vst.msk [vmem:[%s7 + $0x78] sm:$0xff] %vm313, -inf
          %330 = vst.msk [vmem:[%s8] sm:$0xff] %vm313, 0.0
          %331 = vst.msk [vmem:[%s8 + $0x8] sm:$0xff] %vm313, 0.0
          %332 = vst.msk [vmem:[%s8 + $0x10] sm:$0xff] %vm313, 0.0
          %333 = vst.msk [vmem:[%s8 + $0x18] sm:$0xff] %vm313, 0.0
          %334 = vst.msk [vmem:[%s8 + $0x20] sm:$0xff] %vm313, 0.0
          %335 = vst.msk [vmem:[%s8 + $0x28] sm:$0xff] %vm313, 0.0
          %336 = vst.msk [vmem:[%s8 + $0x30] sm:$0xff] %vm313, 0.0
          %337 = vst.msk [vmem:[%s8 + $0x38] sm:$0xff] %vm313, 0.0
          %338 = vst.msk [vmem:[%s8 + $0x40] sm:$0xff] %vm313, 0.0
          %339 = vst.msk [vmem:[%s8 + $0x48] sm:$0xff] %vm313, 0.0
          %340 = vst.msk [vmem:[%s8 + $0x50] sm:$0xff] %vm313, 0.0
          %341 = vst.msk [vmem:[%s8 + $0x58] sm:$0xff] %vm313, 0.0
          %342 = vst.msk [vmem:[%s8 + $0x60] sm:$0xff] %vm313, 0.0
          %343 = vst.msk [vmem:[%s8 + $0x68] sm:$0xff] %vm313, 0.0
          %344 = vst.msk [vmem:[%s8 + $0x70] sm:$0xff] %vm313, 0.0
          %345 = vst.msk [vmem:[%s8 + $0x78] sm:$0xff] %vm313, 0.0
          %346 = vst [vmem:[%s6] sm:$0xff] 0.0
          %347 = vst [vmem:[%s6 + $0x8] sm:$0xff] 0.0
          %348 = vst [vmem:[%s6 + $0x10] sm:$0xff] 0.0
          %349 = vst [vmem:[%s6 + $0x18] sm:$0xff] 0.0
          %350 = vst [vmem:[%s6 + $0x20] sm:$0xff] 0.0
          %351 = vst [vmem:[%s6 + $0x28] sm:$0xff] 0.0
          %352 = vst [vmem:[%s6 + $0x30] sm:$0xff] 0.0
          %353 = vst [vmem:[%s6 + $0x38] sm:$0xff] 0.0
          %354 = vst [vmem:[%s6 + $0x40] sm:$0xff] 0.0
          %355 = vst [vmem:[%s6 + $0x48] sm:$0xff] 0.0
          %356 = vst [vmem:[%s6 + $0x50] sm:$0xff] 0.0
          %357 = vst [vmem:[%s6 + $0x58] sm:$0xff] 0.0
          %358 = vst [vmem:[%s6 + $0x60] sm:$0xff] 0.0
          %359 = vst [vmem:[%s6 + $0x68] sm:$0xff] 0.0
          %360 = vst [vmem:[%s6 + $0x70] sm:$0xff] 0.0
          %361 = vst [vmem:[%s6 + $0x78] sm:$0xff] 0.0
        $region44: #{dsmil_forward.4} parent=39 // pred_fallthru
          _
        %v362 = vld [vmem:[%s300] sm:$0xf]
        %v363 = vld [vmem:[%s300 + $0x4] sm:$0xf]
        %v364 = vld [vmem:[%s2] sm:$0xff]
        %v365 = vld [vmem:[%s2 + $0x8] sm:$0xff]
        %v366 = vld [vmem:[%s2 + $0x10] sm:$0xff]
        %v367 = vld [vmem:[%s2 + $0x18] sm:$0xff]
        %v368 = vld [vmem:[%s2 + $0x20] sm:$0xff]
        %v369 = vld [vmem:[%s2 + $0x28] sm:$0xff]
        %v370 = vld [vmem:[%s2 + $0x30] sm:$0xff]
        %v371 = vld [vmem:[%s2 + $0x38] sm:$0xff]
        %v372 = vld [vmem:[%s2 + $0x40] sm:$0xff]
        %v373 = vld [vmem:[%s2 + $0x48] sm:$0xff]
        %v374 = vld [vmem:[%s2 + $0x50] sm:$0xff]
        %v375 = vld [vmem:[%s2 + $0x58] sm:$0xff]
        %v376 = vld [vmem:[%s2 + $0x60] sm:$0xff]
        %v377 = vld [vmem:[%s2 + $0x68] sm:$0xff]
        %v378 = vld [vmem:[%s2 + $0x70] sm:$0xff]
        %v379 = vld [vmem:[%s2 + $0x78] sm:$0xff]
        %v380 = vpack.c.bf16 %v365, %v364
        %v381 = vpack.c.bf16 %v367, %v366
        %v382 = vpack.c.bf16 %v369, %v368
        %v383 = vpack.c.bf16 %v371, %v370
        %v384 = vpack.c.bf16 %v373, %v372
        %v385 = vpack.c.bf16 %v375, %v374
        %v386 = vpack.c.bf16 %v377, %v376
        %v387 = vpack.c.bf16 %v379, %v378
        %v390 = vunpack.c.l.b16 %v362
        %v391 = vunpack.c.l.b16 %v363
        %v392 = vpack.c.b16 %v391, %v390
        %394 = vmatprep.subr.bf16.mxu0 0
        %395 = vmatpush1.bf16.xpose.msra.mxu0 %v392
        %396 = vmatprep.subr.bf16.mxu0 0
        %397 = vmatpush1.bf16.xpose.msra.mxu0 0
        %398 = vmatprep.subr.bf16.mxu0 0
        %399 = vmatpush1.bf16.xpose.msra.mxu0 0
        %400 = vmatprep.subr.bf16.mxu0 0
        %401 = vmatpush1.bf16.xpose.msra.mxu0 0
        %402 = vmatprep.subr.bf16.mxu0 0
        %403 = vmatpush1.bf16.xpose.msra.mxu0 0
        %404 = vmatprep.subr.bf16.mxu0 0
        %405 = vmatpush1.bf16.xpose.msra.mxu0 0
        %406 = vmatprep.subr.bf16.mxu0 0
        %407 = vmatpush1.bf16.xpose.msra.mxu0 0
        %408 = vmatprep.subr.bf16.mxu0 0
        %409 = vmatpush1.bf16.xpose.msra.mxu0 0
        %410 = vmatprep.subr.bf16.mxu0 0
        %411 = vmatpush1.bf16.xpose.msra.mxu0 0
        %412 = vmatprep.subr.bf16.mxu0 0
        %413 = vmatpush1.bf16.xpose.msra.mxu0 0
        %414 = vmatprep.subr.bf16.mxu0 0
        %415 = vmatpush1.bf16.xpose.msra.mxu0 0
        %416 = vmatprep.subr.bf16.mxu0 0
        %417 = vmatpush1.bf16.xpose.msra.mxu0 0
        %418 = vmatprep.subr.bf16.mxu0 0
        %419 = vmatpush1.bf16.xpose.msra.mxu0 0
        %420 = vmatprep.subr.bf16.mxu0 0
        %421 = vmatpush1.bf16.xpose.msra.mxu0 0
        %422 = vmatprep.subr.bf16.mxu0 0
        %423 = vmatpush1.bf16.xpose.msra.mxu0 0
        %424 = vmatprep.subr.bf16.mxu0 0
        %425 = vmatpush1.bf16.xpose.msra.mxu0 0
        %426 = vmatprep.mubr.bf16.mxu0 0
        %427 = vmatmul.mubr.bf16.gmra.mrb[0].mxu0 %v380
        %v428 = vpop.f32.mrb[0].mxu0
        %v429 = vadd.f32 0.0, %v428
        %v430 = vpop.f32.mrb[0].mxu0
        %v431 = vpop.f32.mrb[0].mxu0
        %v432 = vadd.f32 0.0, %v431
        %v433 = vpop.f32.mrb[0].mxu0
        %434 = vmatprep.mubr.bf16.mxu0 0
        %435 = vmatmul.mubr.bf16.gmra.mrb[0].mxu0 %v381
        %v436 = vpop.f32.mrb[0].mxu0
        %v437 = vadd.f32 0.0, %v436
        %v438 = vpop.f32.mrb[0].mxu0
        %v439 = vpop.f32.mrb[0].mxu0
        %v440 = vadd.f32 0.0, %v439
        %v441 = vpop.f32.mrb[0].mxu0
        %442 = vmatprep.mubr.bf16.mxu0 0
        %443 = vmatmul.mubr.bf16.gmra.mrb[0].mxu0 %v382
        %v444 = vpop.f32.mrb[0].mxu0
        %v445 = vadd.f32 0.0, %v444
        %v446 = vpop.f32.mrb[0].mxu0
        %v447 = vpop.f32.mrb[0].mxu0
        %v448 = vadd.f32 0.0, %v447
        %v449 = vpop.f32.mrb[0].mxu0
        %450 = vmatprep.mubr.bf16.mxu0 0
        %451 = vmatmul.mubr.bf16.gmra.mrb[0].mxu0 %v383
        %v452 = vpop.f32.mrb[0].mxu0
        %v453 = vadd.f32 0.0, %v452
        %v454 = vpop.f32.mrb[0].mxu0
        %v455 = vpop.f32.mrb[0].mxu0
        %v456 = vadd.f32 0.0, %v455
        %v457 = vpop.f32.mrb[0].mxu0
        %458 = vmatprep.mubr.bf16.mxu0 0
        %459 = vmatmul.mubr.bf16.gmra.mrb[0].mxu0 %v384
        %v460 = vpop.f32.mrb[0].mxu0
        %v461 = vadd.f32 0.0, %v460
        %v462 = vpop.f32.mrb[0].mxu0
        %v463 = vpop.f32.mrb[0].mxu0
        %v464 = vadd.f32 0.0, %v463
        %v465 = vpop.f32.mrb[0].mxu0
        %466 = vmatprep.mubr.bf16.mxu0 0
        %467 = vmatmul.mubr.bf16.gmra.mrb[0].mxu0 %v385
        %v468 = vpop.f32.mrb[0].mxu0
        %v469 = vadd.f32 0.0, %v468
        %v470 = vpop.f32.mrb[0].mxu0
        %v471 = vpop.f32.mrb[0].mxu0
        %v472 = vadd.f32 0.0, %v471
        %v473 = vpop.f32.mrb[0].mxu0
        %474 = vmatprep.mubr.bf16.mxu0 0
        %475 = vmatmul.mubr.bf16.gmra.mrb[0].mxu0 %v386
        %v476 = vpop.f32.mrb[0].mxu0
        %v477 = vadd.f32 0.0, %v476
        %v478 = vpop.f32.mrb[0].mxu0
        %v479 = vpop.f32.mrb[0].mxu0
        %v480 = vadd.f32 0.0, %v479
        %v481 = vpop.f32.mrb[0].mxu0
        %482 = vmatprep.mubr.bf16.mxu0 0
        %483 = vmatmul.mubr.bf16.gmra.mrb[0].mxu0 %v387
        %v484 = vpop.f32.mrb[0].mxu0
        %v485 = vadd.f32 0.0, %v484
        %v486 = vpop.f32.mrb[0].mxu0
        %v487 = vpop.f32.mrb[0].mxu0
        %v488 = vadd.f32 0.0, %v487
        %v489 = vpop.f32.mrb[0].mxu0
        %490 = vdwg.mxu0
        %v491 = vmul.f32 %v429, 0.20412415
        %v492 = vmul.f32 %v432, 0.20412415
        %v493 = vmul.f32 %v437, 0.20412415
        %v494 = vmul.f32 %v440, 0.20412415
        %v495 = vmul.f32 %v445, 0.20412415
        %v496 = vmul.f32 %v448, 0.20412415
        %v497 = vmul.f32 %v453, 0.20412415
        %v498 = vmul.f32 %v456, 0.20412415
        %v499 = vmul.f32 %v461, 0.20412415
        %v500 = vmul.f32 %v464, 0.20412415
        %v501 = vmul.f32 %v469, 0.20412415
        %v502 = vmul.f32 %v472, 0.20412415
        %v503 = vmul.f32 %v477, 0.20412415
        %v504 = vmul.f32 %v480, 0.20412415
        %v505 = vmul.f32 %v485, 0.20412415
        %v506 = vmul.f32 %v488, 0.20412415
        %v507 = vlaneseq
        %v508 = vand.u32 %v507, 127
        %s509 = smul.u32 %s21, 16
        %v510 = vstv %s509
        %v511 = vadd.s32 %v510, %v508
        %vm512 = vcmp.lt.s32.totalorder %v511, 40
        %v513 = vsel %vm512, %v491, -inf
        %v514 = vsel %vm512, %v492, -inf
        %v515 = vsel %vm512, %v493, -inf
        %v516 = vsel %vm512, %v494, -inf
        %v517 = vsel %vm512, %v495, -inf
        %v518 = vsel %vm512, %v496, -inf
        %v519 = vsel %vm512, %v497, -inf
        %v520 = vsel %vm512, %v498, -inf
        %v521 = vsel %vm512, %v499, -inf
        %v522 = vsel %vm512, %v500, -inf
        %v523 = vsel %vm512, %v501, -inf
        %v524 = vsel %vm512, %v502, -inf
        %v525 = vsel %vm512, %v503, -inf
        %v526 = vsel %vm512, %v504, -inf
        %v527 = vsel %vm512, %v505, -inf
        %v528 = vsel %vm512, %v506, -inf
        %v529 = vld [vmem:[%s7] sm:$0xff]
        %v530 = vld [vmem:[%s7 + $0x8] sm:$0xff]
        %v531 = vld [vmem:[%s7 + $0x10] sm:$0xff]
        %v532 = vld [vmem:[%s7 + $0x18] sm:$0xff]
        %v533 = vld [vmem:[%s7 + $0x20] sm:$0xff]
        %v534 = vld [vmem:[%s7 + $0x28] sm:$0xff]
        %v535 = vld [vmem:[%s7 + $0x30] sm:$0xff]
        %v536 = vld [vmem:[%s7 + $0x38] sm:$0xff]
        %v537 = vld [vmem:[%s7 + $0x40] sm:$0xff]
        %v538 = vld [vmem:[%s7 + $0x48] sm:$0xff]
        %v539 = vld [vmem:[%s7 + $0x50] sm:$0xff]
        %v540 = vld [vmem:[%s7 + $0x58] sm:$0xff]
        %v541 = vld [vmem:[%s7 + $0x60] sm:$0xff]
        %v542 = vld [vmem:[%s7 + $0x68] sm:$0xff]
        %v543 = vld [vmem:[%s7 + $0x70] sm:$0xff]
        %v544 = vld [vmem:[%s7 + $0x78] sm:$0xff]
        %vm545 = vcmask 130048
        %v546 = vsel %vm545, %v513, -inf
        %547 = vmax.xlane.f32.xlu0 %v546
        %v548 = vpop.xlane.xlu0 %547
        %v549 = vsel %vm545, %v514, -inf
        %550 = vmax.xlane.f32.xlu0 %v549
        %v551 = vpop.xlane.xlu0 %550
        %v552 = vsel %vm545, %v515, -inf
        %553 = vmax.xlane.f32.xlu0 %v552
        %v554 = vpop.xlane.xlu0 %553
        %v555 = vsel %vm545, %v516, -inf
        %556 = vmax.xlane.f32.xlu0 %v555
        %v557 = vpop.xlane.xlu0 %556
        %v558 = vsel %vm545, %v517, -inf
        %559 = vmax.xlane.f32.xlu0 %v558
        %v560 = vpop.xlane.xlu0 %559
        %v561 = vsel %vm545, %v518, -inf
        %562 = vmax.xlane.f32.xlu0 %v561
        %v563 = vpop.xlane.xlu0 %562
        %v564 = vsel %vm545, %v519, -inf
        %565 = vmax.xlane.f32.xlu0 %v564
        %v566 = vpop.xlane.xlu0 %565
        %v567 = vsel %vm545, %v520, -inf
        %568 = vmax.xlane.f32.xlu0 %v567
        %v569 = vpop.xlane.xlu0 %568
        %v570 = vsel %vm545, %v521, -inf
        %571 = vmax.xlane.f32.xlu0 %v570
        %v572 = vpop.xlane.xlu0 %571
        %v573 = vsel %vm545, %v522, -inf
        %574 = vmax.xlane.f32.xlu0 %v573
        %v575 = vpop.xlane.xlu0 %574
        %v576 = vsel %vm545, %v523, -inf
        %577 = vmax.xlane.f32.xlu0 %v576
        %v578 = vpop.xlane.xlu0 %577
        %v579 = vsel %vm545, %v524, -inf
        %580 = vmax.xlane.f32.xlu0 %v579
        %v581 = vpop.xlane.xlu0 %580
        %v582 = vsel %vm545, %v525, -inf
        %583 = vmax.xlane.f32.xlu0 %v582
        %v584 = vpop.xlane.xlu0 %583
        %v585 = vsel %vm545, %v526, -inf
        %586 = vmax.xlane.f32.xlu0 %v585
        %v587 = vpop.xlane.xlu0 %586
        %v588 = vsel %vm545, %v527, -inf
        %589 = vmax.xlane.f32.xlu0 %v588
        %v590 = vpop.xlane.xlu0 %589
        %v591 = vsel %vm545, %v528, -inf
        %592 = vmax.xlane.f32.xlu0 %v591
        %v593 = vpop.xlane.xlu0 %592
        %v594 = vmax.f32 %v529, %v548
        %v595 = vmax.f32 %v530, %v551
        %v596 = vmax.f32 %v531, %v554
        %v597 = vmax.f32 %v532, %v557
        %v598 = vmax.f32 %v533, %v560
        %v599 = vmax.f32 %v534, %v563
        %v600 = vmax.f32 %v535, %v566
        %v601 = vmax.f32 %v536, %v569
        %v602 = vmax.f32 %v537, %v572
        %v603 = vmax.f32 %v538, %v575
        %v604 = vmax.f32 %v539, %v578
        %v605 = vmax.f32 %v540, %v581
        %v606 = vmax.f32 %v541, %v584
        %v607 = vmax.f32 %v542, %v587
        %v608 = vmax.f32 %v543, %v590
        %v609 = vmax.f32 %v544, %v593
        %v610 = vsub.f32 %v529, %v594
        %v611 = vsub.f32 %v530, %v595
        %v612 = vsub.f32 %v531, %v596
        %v613 = vsub.f32 %v532, %v597
        %v614 = vsub.f32 %v533, %v598
        %v615 = vsub.f32 %v534, %v599
        %v616 = vsub.f32 %v535, %v600
        %v617 = vsub.f32 %v536, %v601
        %v618 = vsub.f32 %v537, %v602
        %v619 = vsub.f32 %v538, %v603
        %v620 = vsub.f32 %v539, %v604
        %v621 = vsub.f32 %v540, %v605
        %v622 = vsub.f32 %v541, %v606
        %v623 = vsub.f32 %v542, %v607
        %v624 = vsub.f32 %v543, %v608
        %v625 = vsub.f32 %v544, %v609
        %v626 = vmul.f32 %v610, 1.442695
        %v627 = vpow.pop %v626
        %v628 = vmul.f32 %v611, 1.442695
        %v629 = vpow.pop %v628
        %v630 = vmul.f32 %v612, 1.442695
        %v631 = vpow.pop %v630
        %v632 = vmul.f32 %v613, 1.442695
        %v633 = vpow.pop %v632
        %v634 = vmul.f32 %v614, 1.442695
        %v635 = vpow.pop %v634
        %v636 = vmul.f32 %v615, 1.442695
        %v637 = vpow.pop %v636
        %v638 = vmul.f32 %v616, 1.442695
        %v639 = vpow.pop %v638
        %v640 = vmul.f32 %v617, 1.442695
        %v641 = vpow.pop %v640
        %v642 = vmul.f32 %v618, 1.442695
        %v643 = vpow.pop %v642
        %v644 = vmul.f32 %v619, 1.442695
        %v645 = vpow.pop %v644
        %v646 = vmul.f32 %v620, 1.442695
        %v647 = vpow.pop %v646
        %v648 = vmul.f32 %v621, 1.442695
        %v649 = vpow.pop %v648
        %v650 = vmul.f32 %v622, 1.442695
        %v651 = vpow.pop %v650
        %v652 = vmul.f32 %v623, 1.442695
        %v653 = vpow.pop %v652
        %v654 = vmul.f32 %v624, 1.442695
        %v655 = vpow.pop %v654
        %v656 = vmul.f32 %v625, 1.442695
        %v657 = vpow.pop %v656
        %659 = vset.pattern.permute.xlu0 0
        %660 = vperm.xlu0 %659, %v594
        %v661 = vpop.permute.xlu0 %660
        %664 = vset.pattern.permute.xlu0 0
        %665 = vperm.xlu0 %664, %v595
        %v666 = vpop.permute.xlu0 %665
        %669 = vset.pattern.permute.xlu0 0
        %670 = vperm.xlu0 %669, %v596
        %v671 = vpop.permute.xlu0 %670
        %674 = vset.pattern.permute.xlu0 0
        %675 = vperm.xlu0 %674, %v597
        %v676 = vpop.permute.xlu0 %675
        %679 = vset.pattern.permute.xlu0 0
        %680 = vperm.xlu0 %679, %v598
        %v681 = vpop.permute.xlu0 %680
        %684 = vset.pattern.permute.xlu0 0
        %685 = vperm.xlu0 %684, %v599
        %v686 = vpop.permute.xlu0 %685
        %689 = vset.pattern.permute.xlu0 0
        %690 = vperm.xlu0 %689, %v600
        %v691 = vpop.permute.xlu0 %690
        %694 = vset.pattern.permute.xlu0 0
        %695 = vperm.xlu0 %694, %v601
        %v696 = vpop.permute.xlu0 %695
        %699 = vset.pattern.permute.xlu0 0
        %700 = vperm.xlu0 %699, %v602
        %v701 = vpop.permute.xlu0 %700
        %704 = vset.pattern.permute.xlu0 0
        %705 = vperm.xlu0 %704, %v603
        %v706 = vpop.permute.xlu0 %705
        %709 = vset.pattern.permute.xlu0 0
        %710 = vperm.xlu0 %709, %v604
        %v711 = vpop.permute.xlu0 %710
        %714 = vset.pattern.permute.xlu0 0
        %715 = vperm.xlu0 %714, %v605
        %v716 = vpop.permute.xlu0 %715
        %719 = vset.pattern.permute.xlu0 0
        %720 = vperm.xlu0 %719, %v606
        %v721 = vpop.permute.xlu0 %720
        %724 = vset.pattern.permute.xlu0 0
        %725 = vperm.xlu0 %724, %v607
        %v726 = vpop.permute.xlu0 %725
        %729 = vset.pattern.permute.xlu0 0
        %730 = vperm.xlu0 %729, %v608
        %v731 = vpop.permute.xlu0 %730
        %734 = vset.pattern.permute.xlu0 0
        %735 = vperm.xlu0 %734, %v609
        %v736 = vpop.permute.xlu0 %735
        %v738 = vsub.f32 %v513, %v661
        %v739 = vsub.f32 %v514, %v666
        %v740 = vsub.f32 %v515, %v671
        %v741 = vsub.f32 %v516, %v676
        %v742 = vsub.f32 %v517, %v681
        %v743 = vsub.f32 %v518, %v686
        %v744 = vsub.f32 %v519, %v691
        %v745 = vsub.f32 %v520, %v696
        %v746 = vsub.f32 %v521, %v701
        %v747 = vsub.f32 %v522, %v706
        %v748 = vsub.f32 %v523, %v711
        %v749 = vsub.f32 %v524, %v716
        %v750 = vsub.f32 %v525, %v721
        %v751 = vsub.f32 %v526, %v726
        %v752 = vsub.f32 %v527, %v731
        %v753 = vsub.f32 %v528, %v736
        %v754 = vmul.f32 %v738, 1.442695
        %v755 = vpow.pop %v754
        %v756 = vmul.f32 %v739, 1.442695
        %v757 = vpow.pop %v756
        %v758 = vmul.f32 %v740, 1.442695
        %v759 = vpow.pop %v758
        %v760 = vmul.f32 %v741, 1.442695
        %v761 = vpow.pop %v760
        %v762 = vmul.f32 %v742, 1.442695
        %v763 = vpow.pop %v762
        %v764 = vmul.f32 %v743, 1.442695
        %v765 = vpow.pop %v764
        %v766 = vmul.f32 %v744, 1.442695
        %v767 = vpow.pop %v766
        %v768 = vmul.f32 %v745, 1.442695
        %v769 = vpow.pop %v768
        %v770 = vmul.f32 %v746, 1.442695
        %v771 = vpow.pop %v770
        %v772 = vmul.f32 %v747, 1.442695
        %v773 = vpow.pop %v772
        %v774 = vmul.f32 %v748, 1.442695
        %v775 = vpow.pop %v774
        %v776 = vmul.f32 %v749, 1.442695
        %v777 = vpow.pop %v776
        %v778 = vmul.f32 %v750, 1.442695
        %v779 = vpow.pop %v778
        %v780 = vmul.f32 %v751, 1.442695
        %v781 = vpow.pop %v780
        %v782 = vmul.f32 %v752, 1.442695
        %v783 = vpow.pop %v782
        %v784 = vmul.f32 %v753, 1.442695
        %v785 = vpow.pop %v784
        %v786 = vld [vmem:[%s8] sm:$0xff]
        %v787 = vld [vmem:[%s8 + $0x8] sm:$0xff]
        %v788 = vld [vmem:[%s8 + $0x10] sm:$0xff]
        %v789 = vld [vmem:[%s8 + $0x18] sm:$0xff]
        %v790 = vld [vmem:[%s8 + $0x20] sm:$0xff]
        %v791 = vld [vmem:[%s8 + $0x28] sm:$0xff]
        %v792 = vld [vmem:[%s8 + $0x30] sm:$0xff]
        %v793 = vld [vmem:[%s8 + $0x38] sm:$0xff]
        %v794 = vld [vmem:[%s8 + $0x40] sm:$0xff]
        %v795 = vld [vmem:[%s8 + $0x48] sm:$0xff]
        %v796 = vld [vmem:[%s8 + $0x50] sm:$0xff]
        %v797 = vld [vmem:[%s8 + $0x58] sm:$0xff]
        %v798 = vld [vmem:[%s8 + $0x60] sm:$0xff]
        %v799 = vld [vmem:[%s8 + $0x68] sm:$0xff]
        %v800 = vld [vmem:[%s8 + $0x70] sm:$0xff]
        %v801 = vld [vmem:[%s8 + $0x78] sm:$0xff]
        %v802 = vmul.f32 %v627, %v786
        %v803 = vmul.f32 %v629, %v787
        %v804 = vmul.f32 %v631, %v788
        %v805 = vmul.f32 %v633, %v789
        %v806 = vmul.f32 %v635, %v790
        %v807 = vmul.f32 %v637, %v791
        %v808 = vmul.f32 %v639, %v792
        %v809 = vmul.f32 %v641, %v793
        %v810 = vmul.f32 %v643, %v794
        %v811 = vmul.f32 %v645, %v795
        %v812 = vmul.f32 %v647, %v796
        %v813 = vmul.f32 %v649, %v797
        %v814 = vmul.f32 %v651, %v798
        %v815 = vmul.f32 %v653, %v799
        %v816 = vmul.f32 %v655, %v800
        %v817 = vmul.f32 %v657, %v801
        %v818 = vsel %vm545, %v755, 0.0
        %819 = vadd.xlane.f32.xlu0 %v818
        %v820 = vpop.xlane.xlu0 %819
        %v821 = vsel %vm545, %v757, 0.0
        %822 = vadd.xlane.f32.xlu0 %v821
        %v823 = vpop.xlane.xlu0 %822
        %v824 = vsel %vm545, %v759, 0.0
        %825 = vadd.xlane.f32.xlu0 %v824
        %v826 = vpop.xlane.xlu0 %825
        %v827 = vsel %vm545, %v761, 0.0
        %828 = vadd.xlane.f32.xlu0 %v827
        %v829 = vpop.xlane.xlu0 %828
        %v830 = vsel %vm545, %v763, 0.0
        %831 = vadd.xlane.f32.xlu0 %v830
        %v832 = vpop.xlane.xlu0 %831
        %v833 = vsel %vm545, %v765, 0.0
        %834 = vadd.xlane.f32.xlu0 %v833
        %v835 = vpop.xlane.xlu0 %834
        %v836 = vsel %vm545, %v767, 0.0
        %837 = vadd.xlane.f32.xlu0 %v836
        %v838 = vpop.xlane.xlu0 %837
        %v839 = vsel %vm545, %v769, 0.0
        %840 = vadd.xlane.f32.xlu0 %v839
        %v841 = vpop.xlane.xlu0 %840
        %v842 = vsel %vm545, %v771, 0.0
        %843 = vadd.xlane.f32.xlu0 %v842
        %v844 = vpop.xlane.xlu0 %843
        %v845 = vsel %vm545, %v773, 0.0
        %846 = vadd.xlane.f32.xlu0 %v845
        %v847 = vpop.xlane.xlu0 %846
        %v848 = vsel %vm545, %v775, 0.0
        %849 = vadd.xlane.f32.xlu0 %v848
        %v850 = vpop.xlane.xlu0 %849
        %v851 = vsel %vm545, %v777, 0.0
        %852 = vadd.xlane.f32.xlu0 %v851
        %v853 = vpop.xlane.xlu0 %852
        %v854 = vsel %vm545, %v779, 0.0
        %855 = vadd.xlane.f32.xlu0 %v854
        %v856 = vpop.xlane.xlu0 %855
        %v857 = vsel %vm545, %v781, 0.0
        %858 = vadd.xlane.f32.xlu0 %v857
        %v859 = vpop.xlane.xlu0 %858
        %v860 = vsel %vm545, %v783, 0.0
        %861 = vadd.xlane.f32.xlu0 %v860
        %v862 = vpop.xlane.xlu0 %861
        %v863 = vsel %vm545, %v785, 0.0
        %864 = vadd.xlane.f32.xlu0 %v863
        %v865 = vpop.xlane.xlu0 %864
        %v866 = vadd.f32 %v802, %v820
        %v867 = vadd.f32 %v803, %v823
        %v868 = vadd.f32 %v804, %v826
        %v869 = vadd.f32 %v805, %v829
        %v870 = vadd.f32 %v806, %v832
        %v871 = vadd.f32 %v807, %v835
        %v872 = vadd.f32 %v808, %v838
        %v873 = vadd.f32 %v809, %v841
        %v874 = vadd.f32 %v810, %v844
        %v875 = vadd.f32 %v811, %v847
        %v876 = vadd.f32 %v812, %v850
        %v877 = vadd.f32 %v813, %v853
        %v878 = vadd.f32 %v814, %v856
        %v879 = vadd.f32 %v815, %v859
        %v880 = vadd.f32 %v816, %v862
        %v881 = vadd.f32 %v817, %v865
        %vm882 = vcmask 7168
        %883 = vst.msk [vmem:[%s8] sm:$0xff] %vm882, %v866
        %884 = vst.msk [vmem:[%s8 + $0x8] sm:$0xff] %vm882, %v867
        %885 = vst.msk [vmem:[%s8 + $0x10] sm:$0xff] %vm882, %v868
        %886 = vst.msk [vmem:[%s8 + $0x18] sm:$0xff] %vm882, %v869
        %887 = vst.msk [vmem:[%s8 + $0x20] sm:$0xff] %vm882, %v870
        %888 = vst.msk [vmem:[%s8 + $0x28] sm:$0xff] %vm882, %v871
        %889 = vst.msk [vmem:[%s8 + $0x30] sm:$0xff] %vm882, %v872
        %890 = vst.msk [vmem:[%s8 + $0x38] sm:$0xff] %vm882, %v873
        %891 = vst.msk [vmem:[%s8 + $0x40] sm:$0xff] %vm882, %v874
        %892 = vst.msk [vmem:[%s8 + $0x48] sm:$0xff] %vm882, %v875
        %893 = vst.msk [vmem:[%s8 + $0x50] sm:$0xff] %vm882, %v876
        %894 = vst.msk [vmem:[%s8 + $0x58] sm:$0xff] %vm882, %v877
        %895 = vst.msk [vmem:[%s8 + $0x60] sm:$0xff] %vm882, %v878
        %896 = vst.msk [vmem:[%s8 + $0x68] sm:$0xff] %vm882, %v879
        %897 = vst.msk [vmem:[%s8 + $0x70] sm:$0xff] %vm882, %v880
        %898 = vst.msk [vmem:[%s8 + $0x78] sm:$0xff] %vm882, %v881
        %v899 = vld [vmem:[%s6] sm:$0xff]
        %v900 = vld [vmem:[%s6 + $0x8] sm:$0xff]
        %v901 = vld [vmem:[%s6 + $0x10] sm:$0xff]
        %v902 = vld [vmem:[%s6 + $0x18] sm:$0xff]
        %v903 = vld [vmem:[%s6 + $0x20] sm:$0xff]
        %v904 = vld [vmem:[%s6 + $0x28] sm:$0xff]
        %v905 = vld [vmem:[%s6 + $0x30] sm:$0xff]
        %v906 = vld [vmem:[%s6 + $0x38] sm:$0xff]
        %v907 = vld [vmem:[%s6 + $0x40] sm:$0xff]
        %v908 = vld [vmem:[%s6 + $0x48] sm:$0xff]
        %v909 = vld [vmem:[%s6 + $0x50] sm:$0xff]
        %v910 = vld [vmem:[%s6 + $0x58] sm:$0xff]
        %v911 = vld [vmem:[%s6 + $0x60] sm:$0xff]
        %v912 = vld [vmem:[%s6 + $0x68] sm:$0xff]
        %v913 = vld [vmem:[%s6 + $0x70] sm:$0xff]
        %v914 = vld [vmem:[%s6 + $0x78] sm:$0xff]
        %916 = vset.pattern.permute.xlu0 0
        %917 = vperm.xlu0 %916, %v627
        %v918 = vpop.permute.xlu0 %917
        %921 = vset.pattern.permute.xlu0 0
        %922 = vperm.xlu0 %921, %v629
        %v923 = vpop.permute.xlu0 %922
        %926 = vset.pattern.permute.xlu0 0
        %927 = vperm.xlu0 %926, %v631
        %v928 = vpop.permute.xlu0 %927
        %931 = vset.pattern.permute.xlu0 0
        %932 = vperm.xlu0 %931, %v633
        %v933 = vpop.permute.xlu0 %932
        %936 = vset.pattern.permute.xlu0 0
        %937 = vperm.xlu0 %936, %v635
        %v938 = vpop.permute.xlu0 %937
        %941 = vset.pattern.permute.xlu0 0
        %942 = vperm.xlu0 %941, %v637
        %v943 = vpop.permute.xlu0 %942
        %946 = vset.pattern.permute.xlu0 0
        %947 = vperm.xlu0 %946, %v639
        %v948 = vpop.permute.xlu0 %947
        %951 = vset.pattern.permute.xlu0 0
        %952 = vperm.xlu0 %951, %v641
        %v953 = vpop.permute.xlu0 %952
        %956 = vset.pattern.permute.xlu0 0
        %957 = vperm.xlu0 %956, %v643
        %v958 = vpop.permute.xlu0 %957
        %961 = vset.pattern.permute.xlu0 0
        %962 = vperm.xlu0 %961, %v645
        %v963 = vpop.permute.xlu0 %962
        %966 = vset.pattern.permute.xlu0 0
        %967 = vperm.xlu0 %966, %v647
        %v968 = vpop.permute.xlu0 %967
        %971 = vset.pattern.permute.xlu0 0
        %972 = vperm.xlu0 %971, %v649
        %v973 = vpop.permute.xlu0 %972
        %976 = vset.pattern.permute.xlu0 0
        %977 = vperm.xlu0 %976, %v651
        %v978 = vpop.permute.xlu0 %977
        %981 = vset.pattern.permute.xlu0 0
        %982 = vperm.xlu0 %981, %v653
        %v983 = vpop.permute.xlu0 %982
        %986 = vset.pattern.permute.xlu0 0
        %987 = vperm.xlu0 %986, %v655
        %v988 = vpop.permute.xlu0 %987
        %991 = vset.pattern.permute.xlu0 0
        %992 = vperm.xlu0 %991, %v657
        %v993 = vpop.permute.xlu0 %992
        %v995 = vmul.f32 %v918, %v899
        %v996 = vmul.f32 %v923, %v900
        %v997 = vmul.f32 %v928, %v901
        %v998 = vmul.f32 %v933, %v902
        %v999 = vmul.f32 %v938, %v903
        %v1000 = vmul.f32 %v943, %v904
        %v1001 = vmul.f32 %v948, %v905
        %v1002 = vmul.f32 %v953, %v906
        %v1003 = vmul.f32 %v958, %v907
        %v1004 = vmul.f32 %v963, %v908
        %v1005 = vmul.f32 %v968, %v909
        %v1006 = vmul.f32 %v973, %v910
        %v1007 = vmul.f32 %v978, %v911
        %v1008 = vmul.f32 %v983, %v912
        %v1009 = vmul.f32 %v988, %v913
        %v1010 = vmul.f32 %v993, %v914
        %v1011 = vpack.c.bf16 %v757, %v755
        %v1012 = vpack.c.bf16 %v761, %v759
        %v1013 = vpack.c.bf16 %v765, %v763
        %v1014 = vpack.c.bf16 %v769, %v767
        %v1015 = vpack.c.bf16 %v773, %v771
        %v1016 = vpack.c.bf16 %v777, %v775
        %v1017 = vpack.c.bf16 %v781, %v779
        %v1018 = vpack.c.bf16 %v785, %v783
        %v1019 = vld [vmem:[%s306] sm:$0xf]
        %v1020 = vld [vmem:[%s306 + $0x4] sm:$0xf]
        %v1023 = vunpack.c.l.b16 %v1019
        %v1024 = vunpack.c.l.b16 %v1020
        %v1025 = vpack.c.b16 %v1024, %v1023
        %v1028 = vsel %vm545, %v1011, 0
        %v1031 = vsel %vm545, %v1012, 0
        %v1034 = vsel %vm545, %v1013, 0
        %v1037 = vsel %vm545, %v1014, 0
        %v1040 = vsel %vm545, %v1015, 0
        %v1043 = vsel %vm545, %v1016, 0
        %v1046 = vsel %vm545, %v1017, 0
        %v1049 = vsel %vm545, %v1018, 0
        %1051 = vmatprep.subr.bf16.mxu0 0
        %1052 = vmatpush1.bf16.msra.mxu0 %v1025
        %1053 = vmatprep.subr.bf16.mxu0 0
        %1054 = vmatpush1.bf16.msra.mxu0 0
        %1055 = vmatprep.subr.bf16.mxu0 0
        %1056 = vmatpush1.bf16.msra.mxu0 0
        %1057 = vmatprep.subr.bf16.mxu0 0
        %1058 = vmatpush1.bf16.msra.mxu0 0
        %1059 = vmatprep.subr.bf16.mxu0 0
        %1060 = vmatpush1.bf16.msra.mxu0 0
        %1061 = vmatprep.subr.bf16.mxu0 0
        %1062 = vmatpush1.bf16.msra.mxu0 0
        %1063 = vmatprep.subr.bf16.mxu0 0
        %1064 = vmatpush1.bf16.msra.mxu0 0
        %1065 = vmatprep.subr.bf16.mxu0 0
        %1066 = vmatpush1.bf16.msra.mxu0 0
        %1067 = vmatprep.subr.bf16.mxu0 0
        %1068 = vmatpush1.bf16.msra.mxu0 0
        %1069 = vmatprep.subr.bf16.mxu0 0
        %1070 = vmatpush1.bf16.msra.mxu0 0
        %1071 = vmatprep.subr.bf16.mxu0 0
        %1072 = vmatpush1.bf16.msra.mxu0 0
        %1073 = vmatprep.subr.bf16.mxu0 0
        %1074 = vmatpush1.bf16.msra.mxu0 0
        %1075 = vmatprep.subr.bf16.mxu0 0
        %1076 = vmatpush1.bf16.msra.mxu0 0
        %1077 = vmatprep.subr.bf16.mxu0 0
        %1078 = vmatpush1.bf16.msra.mxu0 0
        %1079 = vmatprep.subr.bf16.mxu0 0
        %1080 = vmatpush1.bf16.msra.mxu0 0
        %1081 = vmatprep.subr.bf16.mxu0 0
        %1082 = vmatpush1.bf16.msra.mxu0 0
        %1083 = vmatprep.mubr.bf16.mxu0 0
        %1084 = vmatmul.mubr.bf16.gmra.mrb[0].mxu0 %v1028
        %v1085 = vpop.f32.mrb[0].mxu0
        %v1086 = vadd.f32 0.0, %v1085
        %v1087 = vpop.f32.mrb[0].mxu0
        %v1088 = vpop.f32.mrb[0].mxu0
        %v1089 = vadd.f32 0.0, %v1088
        %v1090 = vpop.f32.mrb[0].mxu0
        %1091 = vmatprep.mubr.bf16.mxu0 0
        %1092 = vmatmul.mubr.bf16.gmra.mrb[0].mxu0 %v1031
        %v1093 = vpop.f32.mrb[0].mxu0
        %v1094 = vadd.f32 0.0, %v1093
        %v1095 = vpop.f32.mrb[0].mxu0
        %v1096 = vpop.f32.mrb[0].mxu0
        %v1097 = vadd.f32 0.0, %v1096
        %v1098 = vpop.f32.mrb[0].mxu0
        %1099 = vmatprep.mubr.bf16.mxu0 0
        %1100 = vmatmul.mubr.bf16.gmra.mrb[0].mxu0 %v1034
        %v1101 = vpop.f32.mrb[0].mxu0
        %v1102 = vadd.f32 0.0, %v1101
        %v1103 = vpop.f32.mrb[0].mxu0
        %v1104 = vpop.f32.mrb[0].mxu0
        %v1105 = vadd.f32 0.0, %v1104
        %v1106 = vpop.f32.mrb[0].mxu0
        %1107 = vmatprep.mubr.bf16.mxu0 0
        %1108 = vmatmul.mubr.bf16.gmra.mrb[0].mxu0 %v1037
        %v1109 = vpop.f32.mrb[0].mxu0
        %v1110 = vadd.f32 0.0, %v1109
        %v1111 = vpop.f32.mrb[0].mxu0
        %v1112 = vpop.f32.mrb[0].mxu0
        %v1113 = vadd.f32 0.0, %v1112
        %v1114 = vpop.f32.mrb[0].mxu0
        %1115 = vmatprep.mubr.bf16.mxu0 0
        %1116 = vmatmul.mubr.bf16.gmra.mrb[0].mxu0 %v1040
        %v1117 = vpop.f32.mrb[0].mxu0
        %v1118 = vadd.f32 0.0, %v1117
        %v1119 = vpop.f32.mrb[0].mxu0
        %v1120 = vpop.f32.mrb[0].mxu0
        %v1121 = vadd.f32 0.0, %v1120
        %v1122 = vpop.f32.mrb[0].mxu0
        %1123 = vmatprep.mubr.bf16.mxu0 0
        %1124 = vmatmul.mubr.bf16.gmra.mrb[0].mxu0 %v1043
        %v1125 = vpop.f32.mrb[0].mxu0
        %v1126 = vadd.f32 0.0, %v1125
        %v1127 = vpop.f32.mrb[0].mxu0
        %v1128 = vpop.f32.mrb[0].mxu0
        %v1129 = vadd.f32 0.0, %v1128
        %v1130 = vpop.f32.mrb[0].mxu0
        %1131 = vmatprep.mubr.bf16.mxu0 0
        %1132 = vmatmul.mubr.bf16.gmra.mrb[0].mxu0 %v1046
        %v1133 = vpop.f32.mrb[0].mxu0
        %v1134 = vadd.f32 0.0, %v1133
        %v1135 = vpop.f32.mrb[0].mxu0
        %v1136 = vpop.f32.mrb[0].mxu0
        %v1137 = vadd.f32 0.0, %v1136
        %v1138 = vpop.f32.mrb[0].mxu0
        %1139 = vmatprep.mubr.bf16.mxu0 0
        %1140 = vmatmul.mubr.bf16.gmra.mrb[0].mxu0 %v1049
        %v1141 = vpop.f32.mrb[0].mxu0
        %v1142 = vadd.f32 0.0, %v1141
        %v1143 = vpop.f32.mrb[0].mxu0
        %v1144 = vpop.f32.mrb[0].mxu0
        %v1145 = vadd.f32 0.0, %v1144
        %v1146 = vpop.f32.mrb[0].mxu0
        %1147 = vdwg.mxu0
        %v1148 = vadd.f32 %v995, %v1086
        %v1149 = vadd.f32 %v996, %v1089
        %v1150 = vadd.f32 %v997, %v1094
        %v1151 = vadd.f32 %v998, %v1097
        %v1152 = vadd.f32 %v999, %v1102
        %v1153 = vadd.f32 %v1000, %v1105
        %v1154 = vadd.f32 %v1001, %v1110
        %v1155 = vadd.f32 %v1002, %v1113
        %v1156 = vadd.f32 %v1003, %v1118
        %v1157 = vadd.f32 %v1004, %v1121
        %v1158 = vadd.f32 %v1005, %v1126
        %v1159 = vadd.f32 %v1006, %v1129
        %v1160 = vadd.f32 %v1007, %v1134
        %v1161 = vadd.f32 %v1008, %v1137
        %v1162 = vadd.f32 %v1009, %v1142
        %v1163 = vadd.f32 %v1010, %v1145
        %1164 = vst [vmem:[%s6] sm:$0xff] %v1148
        %1165 = vst [vmem:[%s6 + $0x8] sm:$0xff] %v1149
        %1166 = vst [vmem:[%s6 + $0x10] sm:$0xff] %v1150
        %1167 = vst [vmem:[%s6 + $0x18] sm:$0xff] %v1151
        %1168 = vst [vmem:[%s6 + $0x20] sm:$0xff] %v1152
        %1169 = vst [vmem:[%s6 + $0x28] sm:$0xff] %v1153
        %1170 = vst [vmem:[%s6 + $0x30] sm:$0xff] %v1154
        %1171 = vst [vmem:[%s6 + $0x38] sm:$0xff] %v1155
        %1172 = vst [vmem:[%s6 + $0x40] sm:$0xff] %v1156
        %1173 = vst [vmem:[%s6 + $0x48] sm:$0xff] %v1157
        %1174 = vst [vmem:[%s6 + $0x50] sm:$0xff] %v1158
        %1175 = vst [vmem:[%s6 + $0x58] sm:$0xff] %v1159
        %1176 = vst [vmem:[%s6 + $0x60] sm:$0xff] %v1160
        %1177 = vst [vmem:[%s6 + $0x68] sm:$0xff] %v1161
        %1178 = vst [vmem:[%s6 + $0x70] sm:$0xff] %v1162
        %1179 = vst [vmem:[%s6 + $0x78] sm:$0xff] %v1163
        %1180 = vst.msk [vmem:[%s7] sm:$0xff] %vm882, %v594
        %1181 = vst.msk [vmem:[%s7 + $0x8] sm:$0xff] %vm882, %v595
        %1182 = vst.msk [vmem:[%s7 + $0x10] sm:$0xff] %vm882, %v596
        %1183 = vst.msk [vmem:[%s7 + $0x18] sm:$0xff] %vm882, %v597
        %1184 = vst.msk [vmem:[%s7 + $0x20] sm:$0xff] %vm882, %v598
        %1185 = vst.msk [vmem:[%s7 + $0x28] sm:$0xff] %vm882, %v599
        %1186 = vst.msk [vmem:[%s7 + $0x30] sm:$0xff] %vm882, %v600
        %1187 = vst.msk [vmem:[%s7 + $0x38] sm:$0xff] %vm882, %v601
        %1188 = vst.msk [vmem:[%s7 + $0x40] sm:$0xff] %vm882, %v602
        %1189 = vst.msk [vmem:[%s7 + $0x48] sm:$0xff] %vm882, %v603
        %1190 = vst.msk [vmem:[%s7 + $0x50] sm:$0xff] %vm882, %v604
        %1191 = vst.msk [vmem:[%s7 + $0x58] sm:$0xff] %vm882, %v605
        %1192 = vst.msk [vmem:[%s7 + $0x60] sm:$0xff] %vm882, %v606
        %1193 = vst.msk [vmem:[%s7 + $0x68] sm:$0xff] %vm882, %v607
        %1194 = vst.msk [vmem:[%s7 + $0x70] sm:$0xff] %vm882, %v608
        %1195 = vst.msk [vmem:[%s7 + $0x78] sm:$0xff] %vm882, %v609
        %p1196 = scmp.eq.s32.totalorder %s21, 2
        // Predicated region
        $region45: #{dsmil_forward.4} parent=39 // pred_check
          %p1197 = pneg %p1196
        $region46: #{dsmil_forward.4} parent=39 // pred_check_branch
          %1199 = sbr.rel (%p1197) target = $region48
        $region47: #{dsmil_forward.4} parent=39 // pred_region
          %v1200 = vld [vmem:[%s8] sm:$0xff]
          %v1201 = vld [vmem:[%s8 + $0x8] sm:$0xff]
          %v1202 = vld [vmem:[%s8 + $0x10] sm:$0xff]
          %v1203 = vld [vmem:[%s8 + $0x18] sm:$0xff]
          %v1204 = vld [vmem:[%s8 + $0x20] sm:$0xff]
          %v1205 = vld [vmem:[%s8 + $0x28] sm:$0xff]
          %v1206 = vld [vmem:[%s8 + $0x30] sm:$0xff]
          %v1207 = vld [vmem:[%s8 + $0x38] sm:$0xff]
          %v1208 = vld [vmem:[%s8 + $0x40] sm:$0xff]
          %v1209 = vld [vmem:[%s8 + $0x48] sm:$0xff]
          %v1210 = vld [vmem:[%s8 + $0x50] sm:$0xff]
          %v1211 = vld [vmem:[%s8 + $0x58] sm:$0xff]
          %v1212 = vld [vmem:[%s8 + $0x60] sm:$0xff]
          %v1213 = vld [vmem:[%s8 + $0x68] sm:$0xff]
          %v1214 = vld [vmem:[%s8 + $0x70] sm:$0xff]
          %v1215 = vld [vmem:[%s8 + $0x78] sm:$0xff]
          %v1216 = vrcp.pop %v1200
          %v1217 = vmul.f32 1.0, %v1216
          %v1218 = vrcp.pop %v1201
          %v1219 = vmul.f32 1.0, %v1218
          %v1220 = vrcp.pop %v1202
          %v1221 = vmul.f32 1.0, %v1220
          %v1222 = vrcp.pop %v1203
          %v1223 = vmul.f32 1.0, %v1222
          %v1224 = vrcp.pop %v1204
          %v1225 = vmul.f32 1.0, %v1224
          %v1226 = vrcp.pop %v1205
          %v1227 = vmul.f32 1.0, %v1226
          %v1228 = vrcp.pop %v1206
          %v1229 = vmul.f32 1.0, %v1228
          %v1230 = vrcp.pop %v1207
          %v1231 = vmul.f32 1.0, %v1230
          %v1232 = vrcp.pop %v1208
          %v1233 = vmul.f32 1.0, %v1232
          %v1234 = vrcp.pop %v1209
          %v1235 = vmul.f32 1.0, %v1234
          %v1236 = vrcp.pop %v1210
          %v1237 = vmul.f32 1.0, %v1236
          %v1238 = vrcp.pop %v1211
          %v1239 = vmul.f32 1.0, %v1238
          %v1240 = vrcp.pop %v1212
          %v1241 = vmul.f32 1.0, %v1240
          %v1242 = vrcp.pop %v1213
          %v1243 = vmul.f32 1.0, %v1242
          %v1244 = vrcp.pop %v1214
          %v1245 = vmul.f32 1.0, %v1244
          %v1246 = vrcp.pop %v1215
          %v1247 = vmul.f32 1.0, %v1246
          %v1248 = vld [vmem:[%s6] sm:$0xff]
          %v1249 = vld [vmem:[%s6 + $0x8] sm:$0xff]
          %v1250 = vld [vmem:[%s6 + $0x10] sm:$0xff]
          %v1251 = vld [vmem:[%s6 + $0x18] sm:$0xff]
          %v1252 = vld [vmem:[%s6 + $0x20] sm:$0xff]
          %v1253 = vld [vmem:[%s6 + $0x28] sm:$0xff]
          %v1254 = vld [vmem:[%s6 + $0x30] sm:$0xff]
          %v1255 = vld [vmem:[%s6 + $0x38] sm:$0xff]
          %v1256 = vld [vmem:[%s6 + $0x40] sm:$0xff]
          %v1257 = vld [vmem:[%s6 + $0x48] sm:$0xff]
          %v1258 = vld [vmem:[%s6 + $0x50] sm:$0xff]
          %v1259 = vld [vmem:[%s6 + $0x58] sm:$0xff]
          %v1260 = vld [vmem:[%s6 + $0x60] sm:$0xff]
          %v1261 = vld [vmem:[%s6 + $0x68] sm:$0xff]
          %v1262 = vld [vmem:[%s6 + $0x70] sm:$0xff]
          %v1263 = vld [vmem:[%s6 + $0x78] sm:$0xff]
          %1265 = vset.pattern.permute.xlu0 0
          %1266 = vperm.xlu0 %1265, %v1217
          %v1267 = vpop.permute.xlu0 %1266
          %1270 = vset.pattern.permute.xlu0 0
          %1271 = vperm.xlu0 %1270, %v1219
          %v1272 = vpop.permute.xlu0 %1271
          %1275 = vset.pattern.permute.xlu0 0
          %1276 = vperm.xlu0 %1275, %v1221
          %v1277 = vpop.permute.xlu0 %1276
          %1280 = vset.pattern.permute.xlu0 0
          %1281 = vperm.xlu0 %1280, %v1223
          %v1282 = vpop.permute.xlu0 %1281
          %1285 = vset.pattern.permute.xlu0 0
          %1286 = vperm.xlu0 %1285, %v1225
          %v1287 = vpop.permute.xlu0 %1286
          %1290 = vset.pattern.permute.xlu0 0
          %1291 = vperm.xlu0 %1290, %v1227
          %v1292 = vpop.permute.xlu0 %1291
          %1295 = vset.pattern.permute.xlu0 0
          %1296 = vperm.xlu0 %1295, %v1229
          %v1297 = vpop.permute.xlu0 %1296
          %1300 = vset.pattern.permute.xlu0 0
          %1301 = vperm.xlu0 %1300, %v1231
          %v1302 = vpop.permute.xlu0 %1301
          %1305 = vset.pattern.permute.xlu0 0
          %1306 = vperm.xlu0 %1305, %v1233
          %v1307 = vpop.permute.xlu0 %1306
          %1310 = vset.pattern.permute.xlu0 0
          %1311 = vperm.xlu0 %1310, %v1235
          %v1312 = vpop.permute.xlu0 %1311
          %1315 = vset.pattern.permute.xlu0 0
          %1316 = vperm.xlu0 %1315, %v1237
          %v1317 = vpop.permute.xlu0 %1316
          %1320 = vset.pattern.permute.xlu0 0
          %1321 = vperm.xlu0 %1320, %v1239
          %v1322 = vpop.permute.xlu0 %1321
          %1325 = vset.pattern.permute.xlu0 0
          %1326 = vperm.xlu0 %1325, %v1241
          %v1327 = vpop.permute.xlu0 %1326
          %1330 = vset.pattern.permute.xlu0 0
          %1331 = vperm.xlu0 %1330, %v1243
          %v1332 = vpop.permute.xlu0 %1331
          %1335 = vset.pattern.permute.xlu0 0
          %1336 = vperm.xlu0 %1335, %v1245
          %v1337 = vpop.permute.xlu0 %1336
          %1340 = vset.pattern.permute.xlu0 0
          %1341 = vperm.xlu0 %1340, %v1247
          %v1342 = vpop.permute.xlu0 %1341
          %v1344 = vmul.f32 %v1248, %v1267
          %v1345 = vmul.f32 %v1249, %v1272
          %v1346 = vmul.f32 %v1250, %v1277
          %v1347 = vmul.f32 %v1251, %v1282
          %v1348 = vmul.f32 %v1252, %v1287
          %v1349 = vmul.f32 %v1253, %v1292
          %v1350 = vmul.f32 %v1254, %v1297
          %v1351 = vmul.f32 %v1255, %v1302
          %v1352 = vmul.f32 %v1256, %v1307
          %v1353 = vmul.f32 %v1257, %v1312
          %v1354 = vmul.f32 %v1258, %v1317
          %v1355 = vmul.f32 %v1259, %v1322
          %v1356 = vmul.f32 %v1260, %v1327
          %v1357 = vmul.f32 %v1261, %v1332
          %v1358 = vmul.f32 %v1262, %v1337
          %v1359 = vmul.f32 %v1263, %v1342
          %1360 = vst [vmem:[%s6] sm:$0xff] %v1344
          %1361 = vst [vmem:[%s6 + $0x8] sm:$0xff] %v1345
          %1362 = vst [vmem:[%s6 + $0x10] sm:$0xff] %v1346
          %1363 = vst [vmem:[%s6 + $0x18] sm:$0xff] %v1347
          %1364 = vst [vmem:[%s6 + $0x20] sm:$0xff] %v1348
          %1365 = vst [vmem:[%s6 + $0x28] sm:$0xff] %v1349
          %1366 = vst [vmem:[%s6 + $0x30] sm:$0xff] %v1350
          %1367 = vst [vmem:[%s6 + $0x38] sm:$0xff] %v1351
          %1368 = vst [vmem:[%s6 + $0x40] sm:$0xff] %v1352
          %1369 = vst [vmem:[%s6 + $0x48] sm:$0xff] %v1353
          %1370 = vst [vmem:[%s6 + $0x50] sm:$0xff] %v1354
          %1371 = vst [vmem:[%s6 + $0x58] sm:$0xff] %v1355
          %1372 = vst [vmem:[%s6 + $0x60] sm:$0xff] %v1356
          %1373 = vst [vmem:[%s6 + $0x68] sm:$0xff] %v1357
          %1374 = vst [vmem:[%s6 + $0x70] sm:$0xff] %v1358
          %1375 = vst [vmem:[%s6 + $0x78] sm:$0xff] %v1359
          %v1376 = vld [vmem:[%s4] sm:$0x1]
          %v1377 = vpack.c.bf16 %v1344, %v1344
          %v1378 = vld [vmem:[%s3] sm:$0xf]
          %v1379 = vld [vmem:[%s3 + $0x4] sm:$0xf]
          %v1380 = vld [vmem:[%s3 + $0x8] sm:$0xf]
          %v1381 = vld [vmem:[%s3 + $0xc] sm:$0xf]
          %v1382 = vld [vmem:[%s3 + $0x10] sm:$0xf]
          %v1383 = vld [vmem:[%s3 + $0x14] sm:$0xf]
          %v1384 = vld [vmem:[%s3 + $0x18] sm:$0xf]
          %v1385 = vld [vmem:[%s3 + $0x1c] sm:$0xf]
          %v1386 = vld [vmem:[%s3 + $0x20] sm:$0xf]
          %v1387 = vld [vmem:[%s3 + $0x24] sm:$0xf]
          %v1388 = vld [vmem:[%s3 + $0x28] sm:$0xf]
          %v1389 = vld [vmem:[%s3 + $0x2c] sm:$0xf]
          %v1390 = vld [vmem:[%s3 + $0x30] sm:$0xf]
          %v1391 = vld [vmem:[%s3 + $0x34] sm:$0xf]
          %v1392 = vld [vmem:[%s3 + $0x38] sm:$0xf]
          %v1393 = vld [vmem:[%s3 + $0x3c] sm:$0xf]
          %v1410 = vunpack.c.l.b16 %v1378
          %v1411 = vunpack.c.l.b16 %v1379
          %v1412 = vunpack.c.l.b16 %v1380
          %v1413 = vunpack.c.l.b16 %v1381
          %v1414 = vunpack.c.l.b16 %v1382
          %v1415 = vunpack.c.l.b16 %v1383
          %v1416 = vunpack.c.l.b16 %v1384
          %v1417 = vunpack.c.l.b16 %v1385
          %v1418 = vunpack.c.l.b16 %v1386
          %v1419 = vunpack.c.l.b16 %v1387
          %v1420 = vunpack.c.l.b16 %v1388
          %v1421 = vunpack.c.l.b16 %v1389
          %v1422 = vunpack.c.l.b16 %v1390
          %v1423 = vunpack.c.l.b16 %v1391
          %v1424 = vunpack.c.l.b16 %v1392
          %v1425 = vunpack.c.l.b16 %v1393
          %v1426 = vpack.c.b16 %v1411, %v1410
          %v1427 = vpack.c.b16 %v1413, %v1412
          %v1428 = vpack.c.b16 %v1415, %v1414
          %v1429 = vpack.c.b16 %v1417, %v1416
          %v1430 = vpack.c.b16 %v1419, %v1418
          %v1431 = vpack.c.b16 %v1421, %v1420
          %v1432 = vpack.c.b16 %v1423, %v1422
          %v1433 = vpack.c.b16 %v1425, %v1424
          %1442 = vmatprep.subr.bf16.mxu0 0
          %1443 = vmatpush1.bf16.msra.mxu0 %v1426
          %1444 = vmatprep.subr.bf16.mxu0 0
          %1445 = vmatpush1.bf16.msra.mxu0 %v1427
          %1446 = vmatprep.subr.bf16.mxu0 0
          %1447 = vmatpush1.bf16.msra.mxu0 %v1428
          %1448 = vmatprep.subr.bf16.mxu0 0
          %1449 = vmatpush1.bf16.msra.mxu0 %v1429
          %1450 = vmatprep.subr.bf16.mxu0 0
          %1451 = vmatpush1.bf16.msra.mxu0 %v1430
          %1452 = vmatprep.subr.bf16.mxu0 0
          %1453 = vmatpush1.bf16.msra.mxu0 %v1431
          %1454 = vmatprep.subr.bf16.mxu0 0
          %1455 = vmatpush1.bf16.msra.mxu0 %v1432
          %1456 = vmatprep.subr.bf16.mxu0 0
          %1457 = vmatpush1.bf16.msra.mxu0 %v1433
          %1458 = vmatprep.subr.bf16.mxu0 0
          %1459 = vmatpush1.bf16.msra.mxu0 0
          %1460 = vmatprep.subr.bf16.mxu0 0
          %1461 = vmatpush1.bf16.msra.mxu0 0
          %1462 = vmatprep.subr.bf16.mxu0 0
          %1463 = vmatpush1.bf16.msra.mxu0 0
          %1464 = vmatprep.subr.bf16.mxu0 0
          %1465 = vmatpush1.bf16.msra.mxu0 0
          %1466 = vmatprep.subr.bf16.mxu0 0
          %1467 = vmatpush1.bf16.msra.mxu0 0
          %1468 = vmatprep.subr.bf16.mxu0 0
          %1469 = vmatpush1.bf16.msra.mxu0 0
          %1470 = vmatprep.subr.bf16.mxu0 0
          %1471 = vmatpush1.bf16.msra.mxu0 0
          %1472 = vmatprep.subr.bf16.mxu0 0
          %1473 = vmatpush1.bf16.msra.mxu0 0
          %1474 = vmatprep.mubr.bf16.mxu0 0
          %1475 = vmatmul.mubr.bf16.gmra.mrb[0].mxu0 %v1377
          %v1476 = vpop.f32.mrb[0].mxu0
          %v1477 = vadd.f32 0.0, %v1476
          %v1478 = vpop.f32.mrb[0].mxu0
          %v1479 = vpop.f32.mrb[0].mxu0
          %v1480 = vpop.f32.mrb[0].mxu0
          %1481 = vdwg.mxu0
          %v1482 = vadd.f32 %v1376, %v1477
          %s1483 = scalar_lea.vmem %s3, 64
          %v1484 = vld [vmem:[%s1483] sm:$0xf]
          %v1485 = vld [vmem:[%s1483 + $0x4] sm:$0xf]
          %v1486 = vld [vmem:[%s1483 + $0x8] sm:$0xf]
          %v1487 = vld [vmem:[%s1483 + $0xc] sm:$0xf]
          %v1488 = vld [vmem:[%s1483 + $0x10] sm:$0xf]
          %v1489 = vld [vmem:[%s1483 + $0x14] sm:$0xf]
          %v1490 = vld [vmem:[%s1483 + $0x18] sm:$0xf]
          %v1491 = vld [vmem:[%s1483 + $0x1c] sm:$0xf]
          %v1492 = vld [vmem:[%s1483 + $0x20] sm:$0xf]
          %v1493 = vld [vmem:[%s1483 + $0x24] sm:$0xf]
          %v1494 = vld [vmem:[%s1483 + $0x28] sm:$0xf]
          %v1495 = vld [vmem:[%s1483 + $0x2c] sm:$0xf]
          %v1496 = vld [vmem:[%s1483 + $0x30] sm:$0xf]
          %v1497 = vld [vmem:[%s1483 + $0x34] sm:$0xf]
          %v1498 = vld [vmem:[%s1483 + $0x38] sm:$0xf]
          %v1499 = vld [vmem:[%s1483 + $0x3c] sm:$0xf]
          %v1501 = vshrl.u32 %v1377, 16
          %v1520 = vunpack.c.l.b16 %v1484
          %v1521 = vunpack.c.l.b16 %v1485
          %v1522 = vunpack.c.l.b16 %v1486
          %v1523 = vunpack.c.l.b16 %v1487
          %v1524 = vunpack.c.l.b16 %v1488
          %v1525 = vunpack.c.l.b16 %v1489
          %v1526 = vunpack.c.l.b16 %v1490
          %v1527 = vunpack.c.l.b16 %v1491
          %v1528 = vunpack.c.l.b16 %v1492
          %v1529 = vunpack.c.l.b16 %v1493
          %v1530 = vunpack.c.l.b16 %v1494
          %v1531 = vunpack.c.l.b16 %v1495
          %v1532 = vunpack.c.l.b16 %v1496
          %v1533 = vunpack.c.l.b16 %v1497
          %v1534 = vunpack.c.l.b16 %v1498
          %v1535 = vunpack.c.l.b16 %v1499
          %v1536 = vpack.c.b16 %v1521, %v1520
          %v1537 = vpack.c.b16 %v1523, %v1522
          %v1538 = vpack.c.b16 %v1525, %v1524
          %v1539 = vpack.c.b16 %v1527, %v1526
          %v1540 = vpack.c.b16 %v1529, %v1528
          %v1541 = vpack.c.b16 %v1531, %v1530
          %v1542 = vpack.c.b16 %v1533, %v1532
          %v1543 = vpack.c.b16 %v1535, %v1534
          %1552 = vmatprep.subr.bf16.mxu0 0
          %1553 = vmatpush1.bf16.msra.mxu0 %v1536
          %1554 = vmatprep.subr.bf16.mxu0 0
          %1555 = vmatpush1.bf16.msra.mxu0 %v1537
          %1556 = vmatprep.subr.bf16.mxu0 0
          %1557 = vmatpush1.bf16.msra.mxu0 %v1538
          %1558 = vmatprep.subr.bf16.mxu0 0
          %1559 = vmatpush1.bf16.msra.mxu0 %v1539
          %1560 = vmatprep.subr.bf16.mxu0 0
          %1561 = vmatpush1.bf16.msra.mxu0 %v1540
          %1562 = vmatprep.subr.bf16.mxu0 0
          %1563 = vmatpush1.bf16.msra.mxu0 %v1541
          %1564 = vmatprep.subr.bf16.mxu0 0
          %1565 = vmatpush1.bf16.msra.mxu0 %v1542
          %1566 = vmatprep.subr.bf16.mxu0 0
          %1567 = vmatpush1.bf16.msra.mxu0 %v1543
          %1568 = vmatprep.subr.bf16.mxu0 0
          %1569 = vmatpush1.bf16.msra.mxu0 0
          %1570 = vmatprep.subr.bf16.mxu0 0
          %1571 = vmatpush1.bf16.msra.mxu0 0
          %1572 = vmatprep.subr.bf16.mxu0 0
          %1573 = vmatpush1.bf16.msra.mxu0 0
          %1574 = vmatprep.subr.bf16.mxu0 0
          %1575 = vmatpush1.bf16.msra.mxu0 0
          %1576 = vmatprep.subr.bf16.mxu0 0
          %1577 = vmatpush1.bf16.msra.mxu0 0
          %1578 = vmatprep.subr.bf16.mxu0 0
          %1579 = vmatpush1.bf16.msra.mxu0 0
          %1580 = vmatprep.subr.bf16.mxu0 0
          %1581 = vmatpush1.bf16.msra.mxu0 0
          %1582 = vmatprep.subr.bf16.mxu0 0
          %1583 = vmatpush1.bf16.msra.mxu0 0
          %1584 = vmatprep.mubr.bf16.mxu0 0
          %1585 = vmatmul.mubr.bf16.gmra.mrb[0].mxu0 %v1501
          %v1586 = vpop.f32.mrb[0].mxu0
          %v1587 = vadd.f32 0.0, %v1586
          %v1588 = vpop.f32.mrb[0].mxu0
          %v1589 = vpop.f32.mrb[0].mxu0
          %v1590 = vpop.f32.mrb[0].mxu0
          %1591 = vdwg.mxu0
          %v1592 = vadd.f32 %v1482, %v1587
          %s1593 = scalar_lea.vmem %s3, 128
          %v1594 = vld [vmem:[%s1593] sm:$0xf]
          %v1595 = vld [vmem:[%s1593 + $0x4] sm:$0xf]
          %v1596 = vld [vmem:[%s1593 + $0x8] sm:$0xf]
          %v1597 = vld [vmem:[%s1593 + $0xc] sm:$0xf]
          %v1598 = vld [vmem:[%s1593 + $0x10] sm:$0xf]
          %v1599 = vld [vmem:[%s1593 + $0x14] sm:$0xf]
          %v1600 = vld [vmem:[%s1593 + $0x18] sm:$0xf]
          %v1601 = vld [vmem:[%s1593 + $0x1c] sm:$0xf]
          %v1602 = vld [vmem:[%s1593 + $0x20] sm:$0xf]
          %v1603 = vld [vmem:[%s1593 + $0x24] sm:$0xf]
          %v1604 = vld [vmem:[%s1593 + $0x28] sm:$0xf]
          %v1605 = vld [vmem:[%s1593 + $0x2c] sm:$0xf]
          %v1606 = vld [vmem:[%s1593 + $0x30] sm:$0xf]
          %v1607 = vld [vmem:[%s1593 + $0x34] sm:$0xf]
          %v1608 = vld [vmem:[%s1593 + $0x38] sm:$0xf]
          %v1609 = vld [vmem:[%s1593 + $0x3c] sm:$0xf]
          %v1611 = vrot.slane %v1377, 1
          %v1629 = vunpack.c.l.b16 %v1594
          %v1630 = vunpack.c.l.b16 %v1595
          %v1631 = vunpack.c.l.b16 %v1596
          %v1632 = vunpack.c.l.b16 %v1597
          %v1633 = vunpack.c.l.b16 %v1598
          %v1634 = vunpack.c.l.b16 %v1599
          %v1635 = vunpack.c.l.b16 %v1600
          %v1636 = vunpack.c.l.b16 %v1601
          %v1637 = vunpack.c.l.b16 %v1602
          %v1638 = vunpack.c.l.b16 %v1603
          %v1639 = vunpack.c.l.b16 %v1604
          %v1640 = vunpack.c.l.b16 %v1605
          %v1641 = vunpack.c.l.b16 %v1606
          %v1642 = vunpack.c.l.b16 %v1607
          %v1643 = vunpack.c.l.b16 %v1608
          %v1644 = vunpack.c.l.b16 %v1609
          %v1645 = vpack.c.b16 %v1630, %v1629
          %v1646 = vpack.c.b16 %v1632, %v1631
          %v1647 = vpack.c.b16 %v1634, %v1633
          %v1648 = vpack.c.b16 %v1636, %v1635
          %v1649 = vpack.c.b16 %v1638, %v1637
          %v1650 = vpack.c.b16 %v1640, %v1639
          %v1651 = vpack.c.b16 %v1642, %v1641
          %v1652 = vpack.c.b16 %v1644, %v1643
          %1661 = vmatprep.subr.bf16.mxu0 0
          %1662 = vmatpush1.bf16.msra.mxu0 %v1645
          %1663 = vmatprep.subr.bf16.mxu0 0
          %1664 = vmatpush1.bf16.msra.mxu0 %v1646
          %1665 = vmatprep.subr.bf16.mxu0 0
          %1666 = vmatpush1.bf16.msra.mxu0 %v1647
          %1667 = vmatprep.subr.bf16.mxu0 0
          %1668 = vmatpush1.bf16.msra.mxu0 %v1648
          %1669 = vmatprep.subr.bf16.mxu0 0
          %1670 = vmatpush1.bf16.msra.mxu0 %v1649
          %1671 = vmatprep.subr.bf16.mxu0 0
          %1672 = vmatpush1.bf16.msra.mxu0 %v1650
          %1673 = vmatprep.subr.bf16.mxu0 0
          %1674 = vmatpush1.bf16.msra.mxu0 %v1651
          %1675 = vmatprep.subr.bf16.mxu0 0
          %1676 = vmatpush1.bf16.msra.mxu0 %v1652
          %1677 = vmatprep.subr.bf16.mxu0 0
          %1678 = vmatpush1.bf16.msra.mxu0 0
          %1679 = vmatprep.subr.bf16.mxu0 0
          %1680 = vmatpush1.bf16.msra.mxu0 0
          %1681 = vmatprep.subr.bf16.mxu0 0
          %1682 = vmatpush1.bf16.msra.mxu0 0
          %1683 = vmatprep.subr.bf16.mxu0 0
          %1684 = vmatpush1.bf16.msra.mxu0 0
          %1685 = vmatprep.subr.bf16.mxu0 0
          %1686 = vmatpush1.bf16.msra.mxu0 0
          %1687 = vmatprep.subr.bf16.mxu0 0
          %1688 = vmatpush1.bf16.msra.mxu0 0
          %1689 = vmatprep.subr.bf16.mxu0 0
          %1690 = vmatpush1.bf16.msra.mxu0 0
          %1691 = vmatprep.subr.bf16.mxu0 0
          %1692 = vmatpush1.bf16.msra.mxu0 0
          %1693 = vmatprep.mubr.bf16.mxu0 0
          %1694 = vmatmul.mubr.bf16.gmra.mrb[0].mxu0 %v1611
          %v1695 = vpop.f32.mrb[0].mxu0
          %v1696 = vadd.f32 0.0, %v1695
          %v1697 = vpop.f32.mrb[0].mxu0
          %v1698 = vpop.f32.mrb[0].mxu0
          %v1699 = vpop.f32.mrb[0].mxu0
          %1700 = vdwg.mxu0
          %v1701 = vadd.f32 %v1592, %v1696
          %s1702 = scalar_lea.vmem %s3, 192
          %v1703 = vld [vmem:[%s1702] sm:$0xf]
          %v1704 = vld [vmem:[%s1702 + $0x4] sm:$0xf]
          %v1705 = vld [vmem:[%s1702 + $0x8] sm:$0xf]
          %v1706 = vld [vmem:[%s1702 + $0xc] sm:$0xf]
          %v1707 = vld [vmem:[%s1702 + $0x10] sm:$0xf]
          %v1708 = vld [vmem:[%s1702 + $0x14] sm:$0xf]
          %v1709 = vld [vmem:[%s1702 + $0x18] sm:$0xf]
          %v1710 = vld [vmem:[%s1702 + $0x1c] sm:$0xf]
          %v1711 = vld [vmem:[%s1702 + $0x20] sm:$0xf]
          %v1712 = vld [vmem:[%s1702 + $0x24] sm:$0xf]
          %v1713 = vld [vmem:[%s1702 + $0x28] sm:$0xf]
          %v1714 = vld [vmem:[%s1702 + $0x2c] sm:$0xf]
          %v1715 = vld [vmem:[%s1702 + $0x30] sm:$0xf]
          %v1716 = vld [vmem:[%s1702 + $0x34] sm:$0xf]
          %v1717 = vld [vmem:[%s1702 + $0x38] sm:$0xf]
          %v1718 = vld [vmem:[%s1702 + $0x3c] sm:$0xf]
          %v1719 = vrot.slane %v1501, 1
          %v1737 = vunpack.c.l.b16 %v1703
          %v1738 = vunpack.c.l.b16 %v1704
          %v1739 = vunpack.c.l.b16 %v1705
          %v1740 = vunpack.c.l.b16 %v1706
          %v1741 = vunpack.c.l.b16 %v1707
          %v1742 = vunpack.c.l.b16 %v1708
          %v1743 = vunpack.c.l.b16 %v1709
          %v1744 = vunpack.c.l.b16 %v1710
          %v1745 = vunpack.c.l.b16 %v1711
          %v1746 = vunpack.c.l.b16 %v1712
          %v1747 = vunpack.c.l.b16 %v1713
          %v1748 = vunpack.c.l.b16 %v1714
          %v1749 = vunpack.c.l.b16 %v1715
          %v1750 = vunpack.c.l.b16 %v1716
          %v1751 = vunpack.c.l.b16 %v1717
          %v1752 = vunpack.c.l.b16 %v1718
          %v1753 = vpack.c.b16 %v1738, %v1737
          %v1754 = vpack.c.b16 %v1740, %v1739
          %v1755 = vpack.c.b16 %v1742, %v1741
          %v1756 = vpack.c.b16 %v1744, %v1743
          %v1757 = vpack.c.b16 %v1746, %v1745
          %v1758 = vpack.c.b16 %v1748, %v1747
          %v1759 = vpack.c.b16 %v1750, %v1749
          %v1760 = vpack.c.b16 %v1752, %v1751
          %1769 = vmatprep.subr.bf16.mxu0 0
          %1770 = vmatpush1.bf16.msra.mxu0 %v1753
          %1771 = vmatprep.subr.bf16.mxu0 0
          %1772 = vmatpush1.bf16.msra.mxu0 %v1754
          %1773 = vmatprep.subr.bf16.mxu0 0
          %1774 = vmatpush1.bf16.msra.mxu0 %v1755
          %1775 = vmatprep.subr.bf16.mxu0 0
          %1776 = vmatpush1.bf16.msra.mxu0 %v1756
          %1777 = vmatprep.subr.bf16.mxu0 0
          %1778 = vmatpush1.bf16.msra.mxu0 %v1757
          %1779 = vmatprep.subr.bf16.mxu0 0
          %1780 = vmatpush1.bf16.msra.mxu0 %v1758
          %1781 = vmatprep.subr.bf16.mxu0 0
          %1782 = vmatpush1.bf16.msra.mxu0 %v1759
          %1783 = vmatprep.subr.bf16.mxu0 0
          %1784 = vmatpush1.bf16.msra.mxu0 %v1760
          %1785 = vmatprep.subr.bf16.mxu0 0
          %1786 = vmatpush1.bf16.msra.mxu0 0
          %1787 = vmatprep.subr.bf16.mxu0 0
          %1788 = vmatpush1.bf16.msra.mxu0 0
          %1789 = vmatprep.subr.bf16.mxu0 0
          %1790 = vmatpush1.bf16.msra.mxu0 0
          %1791 = vmatprep.subr.bf16.mxu0 0
          %1792 = vmatpush1.bf16.msra.mxu0 0
          %1793 = vmatprep.subr.bf16.mxu0 0
          %1794 = vmatpush1.bf16.msra.mxu0 0
          %1795 = vmatprep.subr.bf16.mxu0 0
          %1796 = vmatpush1.bf16.msra.mxu0 0
          %1797 = vmatprep.subr.bf16.mxu0 0
          %1798 = vmatpush1.bf16.msra.mxu0 0
          %1799 = vmatprep.subr.bf16.mxu0 0
          %1800 = vmatpush1.bf16.msra.mxu0 0
          %1801 = vmatprep.mubr.bf16.mxu0 0
          %1802 = vmatmul.mubr.bf16.gmra.mrb[0].mxu0 %v1719
          %v1803 = vpop.f32.mrb[0].mxu0
          %v1804 = vadd.f32 0.0, %v1803
          %v1805 = vpop.f32.mrb[0].mxu0
          %v1806 = vpop.f32.mrb[0].mxu0
          %v1807 = vpop.f32.mrb[0].mxu0
          %1808 = vdwg.mxu0
          %v1809 = vadd.f32 %v1701, %v1804
          %1810 = vst [vmem:[#allocation2] sm:$0x1] %v1809
        $region48: #{dsmil_forward.4} parent=39 // pred_fallthru
          _
        // Predicated region
        $region49: #{dsmil_forward.4} parent=39 // pred_check
          %p1811 = pneg %p149
        $region50: #{dsmil_forward.4} parent=39 // pred_check_branch
          %1813 = sbr.rel (%p1811) target = $region52
        $region51: #{dsmil_forward.4} parent=39 // pred_region
          %s1815 = ssub.s32 16, 16
          %1816 = vsyncadd [#allocation3], %s1815
          %s1818 = sshll.u32 [#allocation2], 4
          %s1819 = int_to_ptr.vmem [resolvable:$true] %s1818
          %1821 = dma.vmem_to_hbm [thread:$0]  %s1819, 16, %s5, [#allocation3]
        $region52: #{dsmil_forward.4} parent=39 // pred_fallthru
          _
        // Predicated region
        $region53: #{dsmil_forward.4} parent=39 // pred_check
          %p1822 = pneg %p170
        $region54: #{dsmil_forward.4} parent=39 // pred_check_branch
          %1824 = sbr.rel (%p1822) target = $region56
        $region55: #{dsmil_forward.4} parent=39 // pred_region
          _
        $region56: #{dsmil_forward.4} parent=39 // pred_fallthru
          _
        // Predicated region
        $region57: #{dsmil_forward.4} parent=39 // pred_check
          %p1825 = pneg %p191
        $region58: #{dsmil_forward.4} parent=39 // pred_check_branch
          %1827 = sbr.rel (%p1825) target = $region60
        $region59: #{dsmil_forward.4} parent=39 // pred_region
          _
        $region60: #{dsmil_forward.4} parent=39 // pred_fallthru
          _
        // Predicated region
        $region61: #{dsmil_forward.4} parent=39 // pred_check
          %p1828 = pneg %p212
        $region62: #{dsmil_forward.4} parent=39 // pred_check_branch
          %1830 = sbr.rel (%p1828) target = $region64
        $region63: #{dsmil_forward.4} parent=39 // pred_region
          _
        $region64: #{dsmil_forward.4} parent=39 // pred_fallthru
          _
        // Predicated region
        $region65: #{dsmil_forward.4} parent=39 // pred_check
          %p1831 = pneg %p149
        $region66: #{dsmil_forward.4} parent=39 // pred_check_branch
          %1833 = sbr.rel (%p1831) target = $region68
        $region67: #{dsmil_forward.4} parent=39 // pred_region
          %1834 = dma.done [#allocation3], 16
        $region68: #{dsmil_forward.4} parent=39 // pred_fallthru
          _
        // Predicated region
        $region69: #{dsmil_forward.4} parent=39 // pred_check
          %p1835 = pneg %p170
        $region70: #{dsmil_forward.4} parent=39 // pred_check_branch
          %1837 = sbr.rel (%p1835) target = $region72
        $region71: #{dsmil_forward.4} parent=39 // pred_region
          _
        $region72: #{dsmil_forward.4} parent=39 // pred_fallthru
          _
        // Predicated region
        $region73: #{dsmil_forward.4} parent=39 // pred_check
          %p1838 = pneg %p191
        $region74: #{dsmil_forward.4} parent=39 // pred_check_branch
          %1840 = sbr.rel (%p1838) target = $region76
        $region75: #{dsmil_forward.4} parent=39 // pred_region
          _
        $region76: #{dsmil_forward.4} parent=39 // pred_fallthru
          _
        // Predicated region
        $region77: #{dsmil_forward.4} parent=39 // pred_check
          %p1841 = pneg %p212
        $region78: #{dsmil_forward.4} parent=39 // pred_check_branch
          %1843 = sbr.rel (%p1841) target = $region80
        $region79: #{dsmil_forward.4} parent=39 // pred_region
          _
        $region80: #{dsmil_forward.4} parent=39 // pred_fallthru
          _
      $region40: #{dsmil_forward.4} parent=5 // pred_fallthru
        _
      %p1844 = scmp.le.s32.totalorder 2, %s16
      // Predicated region
      $region81: #{dsmil_forward.4} parent=5 // pred_check
        %p1845 = pneg %p1844
      $region82: #{dsmil_forward.4} parent=5 // pred_check_branch
        %1847 = sbr.rel (%p1845) target = $region84
      $region83: #{dsmil_forward.4} parent=5 // pred_region
        %s1848 = ssub.s32 %s16, 2
      $region84: #{dsmil_forward.4} parent=5 // pred_fallthru
        _
    $region6: #{dsmil_forward.4} parent=1 // loop_footer
      %s20 = sadd.s32 1, %s16
    $region7: #{dsmil_forward.4} parent=1 // loop_footer_branch
      %15 = sbr.rel target = $region3
    $region8: #{dsmil_forward.4} parent=1 // loop_exit
      _
    %1849 = vsyncpa [#allocation3], 1
    %s1850 = scalar_lea.sflag [#allocation3], 1
    %1851 = vsyncpa %s1850, 1

</llo_original>
